<compile_context>
chip_gen: v7x
topology: tpu7x:2x2x1
jax: 0.10.0
libtpu: 0.0.40
codegen_flags: <defaults>
</compile_context>

<pallas_src>
import functools
import math

import jax
import jax.numpy as jnp
from jax.experimental import pallas as pl
from jax.experimental.pallas import tpu as pltpu


def _round_up(n, m):
    return ((n + m - 1) // m) * m


def _gru_chunk_kernel(*refs, t_block, b_block, h_pad, apply_out_proj):
    """One grid step = one (batch block, time chunk) of the GRU."""
    if apply_out_proj:
        (x_ref, w_ih_t_ref, w_hh_t_ref, b_i_ref, b_hn_ref,
         w_out_t_ref, b_out_ref, out_ref, h_ref, gi_ref, h_seq_ref) = refs
    else:
        (x_ref, w_ih_t_ref, w_hh_t_ref, b_i_ref, b_hn_ref,
         out_ref, h_ref, gi_ref, h_seq_ref) = refs
        w_out_t_ref = b_out_ref = None

    tc = pl.program_id(1)  # time-chunk index (sequential / "arbitrary")

    # h_0 = 0 at the start of every batch block's sequence.
    @pl.when(tc == 0)
    def _():
        h_ref[...] = jnp.zeros_like(h_ref)

    # ---- Phase 1: batched input-to-hidden matmul for the whole chunk -------
    # Rows are time-major, batch-minor: row t*b_block + b.  b_i already folds
    # b_ih + (b_hr, b_hz, 0).  Result lands in VMEM scratch so nothing large
    # stays live across the unrolled recurrence.
    gi_ref[...] = jnp.dot(x_ref[0], w_ih_t_ref[...],
                          preferred_element_type=jnp.float32) + b_i_ref[...]

    w_hh_t = w_hh_t_ref[...]                            # (h_pad, 3*h_pad)
    b_hn = b_hn_ref[...]                                # (1, h_pad)

    # ---- Phase 2: the recurrence (unrolled fori_loop, f32 h carry) ---------
    # Only the (b_block, h_pad)x(h_pad, 3h_pad) matmul + the gate update are
    # serial; per-step gi loads / h stores are aligned and hide under the MXU.
    def step(t, h):
        lo = pl.multiple_of(t * b_block, b_block)
        gi_t = gi_ref[pl.ds(lo, b_block), :]            # (b_block, 3*h_pad)
        gh = jnp.dot(h.astype(w_hh_t.dtype), w_hh_t,
                     preferred_element_type=jnp.float32)
        # PyTorch gate order along the 3H axis is (r, z, n); h_pad is a
        # multiple of 128 so these slices are lane-aligned views.
        r = jax.nn.sigmoid(gi_t[:, 0:h_pad] + gh[:, 0:h_pad])
        z = jax.nn.sigmoid(gi_t[:, h_pad:2 * h_pad] + gh[:, h_pad:2 * h_pad])
        n = jnp.tanh(gi_t[:, 2 * h_pad:] + r * (gh[:, 2 * h_pad:] + b_hn))
        h = (1.0 - z) * n + z * h
        h_seq_ref[pl.ds(lo, b_block), :] = h            # aligned, unmasked
        return h

    h_ref[...] = jax.lax.fori_loop(0, t_block, step, h_ref[...], unroll=True)

    # ---- Phase 3: batched output projection for the whole chunk ------------
    # Off the serial per-step path; output columns are lane-dense (>=128).
    h_all = h_seq_ref[...]                              # (t_block*b_block, h_pad)
    if apply_out_proj:
        y = jnp.dot(h_all.astype(w_out_t_ref.dtype), w_out_t_ref[...],
                    preferred_element_type=jnp.float32) + b_out_ref[...]
        out_ref[0] = y.astype(out_ref.dtype)
    else:
        # out_proj = nn.Identity(): store full padded columns; wrapper slices.
        out_ref[0] = h_all.astype(out_ref.dtype)


def gru_state_module_forward(x, w_ih, w_hh, b_ih, b_hh, w_out=None, b_out=None,
                             *, t_block=16, b_block=None,
                             param_dtype=jnp.float32):
    """Pallas GRUStateModule forward.

    Args:
      x:     (B, S, D)  input, PyTorch batch_first layout.
      w_ih:  (3H, D)    GRU weight_ih_l0.
      w_hh:  (3H, H)    GRU weight_hh_l0.
      b_ih:  (3H,)      GRU bias_ih_l0.
      b_hh:  (3H,)      GRU bias_hh_l0.
      w_out: (D, H)     out_proj weight, or None for nn.Identity (H == D).
      b_out: (D,)       out_proj bias,   or None for nn.Identity.
      t_block: timesteps per grid step (chunking of the recurrence).
      b_block: batch rows per batch block (multiple of 8; default pads B up to
               a multiple of 8, capped at 256 rows per block).
      param_dtype: storage/matmul-input dtype for x & weights (f32 or bf16);
                   accumulation, the carried h and the gate update are f32.
    Returns:
      (B, S, D_out) output sequence (D_out = D when projecting, H otherwise).
    """
    B, S, D = x.shape
    H = w_hh.shape[-1]
    apply_out_proj = w_out is not None
    d_out = D if apply_out_proj else H
    if not apply_out_proj:
        assert H == D, "Identity out_proj requires gru_hidden == d_model"

    # Batch occupancy: pad to full sublanes / MXU rows; padded rows are zeros
    # and are sliced off at the end.
    if b_block is None:
        b_block = min(_round_up(B, 8), 256)
    assert b_block % 8 == 0
    b_pad = _round_up(B, b_block)
    n_b_blocks = b_pad // b_block

    h_pad = _round_up(H, 128)          # lane-aligned gate blocks (use 256 at
                                       # production H on v6e/v7x)
    d_pad = _round_up(d_out, 128) if apply_out_proj else h_pad  # lane-dense out
    s_pad = _round_up(S, t_block)      # extra steps are causal-only -> cannot
                                       # affect the first S outputs.

    # ---- weight / bias prep (gate-wise zero padding H -> h_pad) ------------
    def pad_gate_rows(w):              # (3H, K) -> (3*h_pad, K)
        w = jnp.asarray(w, jnp.float32).reshape(3, H, -1)
        w = jnp.pad(w, ((0, 0), (0, h_pad - H), (0, 0)))
        return w.reshape(3 * h_pad, -1)

    w_ih_p = pad_gate_rows(w_ih)                                     # (3h_pad, D)
    w_hh_p = jnp.pad(pad_gate_rows(w_hh), ((0, 0), (0, h_pad - H)))  # (3h_pad, h_pad)
    w_ih_t = w_ih_p.T.astype(param_dtype)                            # (D, 3h_pad)
    w_hh_t = w_hh_p.T.astype(param_dtype)                            # (h_pad, 3h_pad)

    def pad_gate_vec(b):               # (3H,) -> (3, h_pad)
        b = jnp.asarray(b, jnp.float32).reshape(3, H)
        return jnp.pad(b, ((0, 0), (0, h_pad - H)))

    b_ih_g = pad_gate_vec(b_ih)
    b_hh_g = pad_gate_vec(b_hh)
    # Fold b_hh's r/z rows into the input-side bias (always summed); b_hn
    # stays separate because it is scaled by r inside the recurrence.
    b_i = jnp.concatenate([b_ih_g[0] + b_hh_g[0],
                           b_ih_g[1] + b_hh_g[1],
                           b_ih_g[2]]).reshape(1, 3 * h_pad)
    b_hn = b_hh_g[2].reshape(1, h_pad)

    if apply_out_proj:
        w_out_t = jnp.pad(jnp.asarray(w_out, jnp.float32).T,
                          ((0, h_pad - H), (0, d_pad - d_out))
                          ).astype(param_dtype)                      # (h_pad, d_pad)
        b_out2 = jnp.pad(jnp.asarray(b_out, jnp.float32),
                         (0, d_pad - d_out)).reshape(1, d_pad)
        proj_args = (w_out_t, b_out2)
        proj_specs = [pl.BlockSpec((h_pad, d_pad), lambda b, tc: (0, 0)),
                      pl.BlockSpec((1, d_pad), lambda b, tc: (0, 0))]
    else:
        proj_args, proj_specs = (), []

    # ---- input layout: (batch_blocks, s_pad * b_block, D), time-major rows --
    x_p = jnp.asarray(x, jnp.float32)
    x_p = jnp.pad(x_p, ((0, b_pad - B), (0, s_pad - S), (0, 0)))
    x_p = x_p.reshape(n_b_blocks, b_block, s_pad, D)
    x_p = jnp.transpose(x_p, (0, 2, 1, 3)).reshape(n_b_blocks, s_pad * b_block, D)
    x_p = x_p.astype(param_dtype)

    kernel = functools.partial(_gru_chunk_kernel, t_block=t_block,
                               b_block=b_block, h_pad=h_pad,
                               apply_out_proj=apply_out_proj)

    out_flat = pl.pallas_call(
        kernel,
        out_shape=jax.ShapeDtypeStruct((n_b_blocks, s_pad * b_block, d_pad),
                                       jnp.float32),
        grid_spec=pltpu.PrefetchScalarGridSpec(
            num_scalar_prefetch=0,
            grid=(n_b_blocks, s_pad // t_block),
            in_specs=[
                pl.BlockSpec((1, t_block * b_block, D),
                             lambda b, tc: (b, tc, 0)),               # x chunk
                pl.BlockSpec((D, 3 * h_pad), lambda b, tc: (0, 0)),   # W_ih^T
                pl.BlockSpec((h_pad, 3 * h_pad), lambda b, tc: (0, 0)),  # W_hh^T
                pl.BlockSpec((1, 3 * h_pad), lambda b, tc: (0, 0)),   # folded bias
                pl.BlockSpec((1, h_pad), lambda b, tc: (0, 0)),       # b_hn
            ] + proj_specs,
            out_specs=pl.BlockSpec((1, t_block * b_block, d_pad),
                                   lambda b, tc: (b, tc, 0)),
            scratch_shapes=[
                pltpu.VMEM((b_block, h_pad), jnp.float32),              # carried h
                pltpu.VMEM((t_block * b_block, 3 * h_pad), jnp.float32),  # gi chunk
                pltpu.VMEM((t_block * b_block, h_pad), jnp.float32),    # chunk h's
            ],
        ),
        compiler_params=pltpu.CompilerParams(
            # batch blocks are independent; the time-chunk axis carries the
            # recurrence -> sequential.  vmem_limit_bytes intentionally left
            # at the default (footprint here is << scoped limit); size it from
            # pltpu.get_tpu_info() with headroom at production shapes.
            dimension_semantics=("parallel", "arbitrary"),
        ),
    )(x_p, w_ih_t, w_hh_t, b_i, b_hn, *proj_args)

    out = out_flat.reshape(n_b_blocks, s_pad, b_block, d_pad)
    out = jnp.transpose(out, (0, 2, 1, 3)).reshape(b_pad, s_pad, d_pad)
    return out[:B, :S, :d_out]


def _reference_forward(x, w_ih, w_hh, b_ih, b_hh, w_out=None, b_out=None):
    """Pure-JAX reference (lax.scan GRU) mirroring PyTorch semantics."""
    H = w_hh.shape[-1]
    B = x.shape[0]

    def step(h, x_t):
        gi = x_t @ w_ih.T + b_ih
        gh = h @ w_hh.T + b_hh
        i_r, i_z, i_n = jnp.split(gi, 3, axis=-1)
        h_r, h_z, h_n = jnp.split(gh, 3, axis=-1)
        r = jax.nn.sigmoid(i_r + h_r)
        z = jax.nn.sigmoid(i_z + h_z)
        n = jnp.tanh(i_n + r * h_n)
        h_new = (1.0 - z) * n + z * h
        return h_new, h_new

    h0 = jnp.zeros((B, H), jnp.float32)
    _, hs = jax.lax.scan(step, h0, jnp.swapaxes(x, 0, 1))
    out = jnp.swapaxes(hs, 0, 1)
    if w_out is not None:
        out = out @ w_out.T + b_out
    return out


def init_params(key, d_model, gru_hidden):
    """Parameter init matching the shapes of nn.GRU / nn.Linear."""
    k = 1.0 / math.sqrt(gru_hidden)
    keys = jax.random.split(key, 6)
    w_ih = jax.random.uniform(keys[0], (3 * gru_hidden, d_model), jnp.float32, -k, k)
    w_hh = jax.random.uniform(keys[1], (3 * gru_hidden, gru_hidden), jnp.float32, -k, k)
    b_ih = jax.random.uniform(keys[2], (3 * gru_hidden,), jnp.float32, -k, k)
    b_hh = jax.random.uniform(keys[3], (3 * gru_hidden,), jnp.float32, -k, k)
    if gru_hidden != d_model:
        w_out = jax.random.uniform(keys[4], (d_model, gru_hidden), jnp.float32, -k, k)
        b_out = jax.random.uniform(keys[5], (d_model,), jnp.float32, -k, k)
    else:
        w_out, b_out = None, None          # out_proj = nn.Identity()
    return w_ih, w_hh, b_ih, b_hh, w_out, b_out


if __name__ == "__main__":
    key = jax.random.PRNGKey(0)
    k_x1, k_p1, k_x2, k_p2 = jax.random.split(key, 4)

    # --- Config A: gru_hidden != d_model (Linear out_proj), f32 params ------
    B, S, d_model, gru_hidden = 2, 13, 32, 64
    x_a = jax.random.normal(k_x1, (B, S, d_model), jnp.float32)
    params_a = init_params(k_p1, d_model, gru_hidden)

    out_a = jax.block_until_ready(
        gru_state_module_forward(x_a, *params_a, param_dtype=jnp.float32))
    ref_a = _reference_forward(x_a, *params_a)
    assert out_a.shape == (B, S, d_model), out_a.shape
    assert jnp.allclose(out_a, ref_a, atol=1e-4, rtol=1e-4), (
        float(jnp.max(jnp.abs(out_a - ref_a))))

    # --- Config B: gru_hidden == d_model (Identity out_proj), f32 params ----
    B2, S2, d2 = 2, 16, 64
    x_b = jax.random.normal(k_x2, (B2, S2, d2), jnp.float32)
    params_b = init_params(k_p2, d2, d2)

    out_b = jax.block_until_ready(
        gru_state_module_forward(x_b, *params_b, param_dtype=jnp.float32))
    ref_b = _reference_forward(x_b, *params_b)
    assert out_b.shape == (B2, S2, d2), out_b.shape
    assert jnp.allclose(out_b, ref_b, atol=1e-4, rtol=1e-4), (
        float(jnp.max(jnp.abs(out_b - ref_b))))

    # --- Config C: same as A but bf16 storage / MXU inputs (f32 accumulate) -
    out_c = jax.block_until_ready(
        gru_state_module_forward(x_a, *params_a, param_dtype=jnp.bfloat16))
    assert out_c.shape == (B, S, d_model), out_c.shape
    assert jnp.allclose(out_c, ref_a, atol=3e-2, rtol=3e-2), (
        float(jnp.max(jnp.abs(out_c - ref_a))))

    print("KERNEL_OK")
</pallas_src>

<mosaic_0001>
module attributes {stable_mosaic.version = 11 : i64} {
  func.func @_gru_chunk_kernel(%arg0: i32, %arg1: i32, %arg2: memref<1x128x32xf32, #tpu.memory_space<vmem>>, %arg3: memref<32x384xf32, #tpu.memory_space<vmem>>, %arg4: memref<128x384xf32, #tpu.memory_space<vmem>>, %arg5: memref<1x384xf32, #tpu.memory_space<vmem>>, %arg6: memref<1x128xf32, #tpu.memory_space<vmem>>, %arg7: memref<128x128xf32, #tpu.memory_space<vmem>>, %arg8: memref<1x128xf32, #tpu.memory_space<vmem>>, %arg9: memref<1x128x128xf32, #tpu.memory_space<vmem>>, %arg10: memref<8x128xf32, #tpu.memory_space<vmem>>, %arg11: memref<128x384xf32, #tpu.memory_space<vmem>>, %arg12: memref<128x128xf32, #tpu.memory_space<vmem>>) attributes {dimension_semantics = [#tpu.dimension_semantics<parallel>, #tpu.dimension_semantics<arbitrary>], iteration_bounds = array<i64: 1, 1>, scalar_prefetch = 0 : i64, scratch_operands = 3 : i64, tpu.core_type = #tpu.core_type<tc>, window_params = [{transform_indices = @transform_0, window_bounds = array<i64: 1, 128, 32>}, {pipeline_mode = #tpu.pipeline_mode<synchronous>, transform_indices = @transform_1, window_bounds = array<i64: 32, 384>}, {pipeline_mode = #tpu.pipeline_mode<synchronous>, transform_indices = @transform_2, window_bounds = array<i64: 128, 384>}, {pipeline_mode = #tpu.pipeline_mode<synchronous>, transform_indices = @transform_3, window_bounds = array<i64: 1, 384>}, {pipeline_mode = #tpu.pipeline_mode<synchronous>, transform_indices = @transform_4, window_bounds = array<i64: 1, 128>}, {pipeline_mode = #tpu.pipeline_mode<synchronous>, transform_indices = @transform_5, window_bounds = array<i64: 128, 128>}, {pipeline_mode = #tpu.pipeline_mode<synchronous>, transform_indices = @transform_6, window_bounds = array<i64: 1, 128>}, {transform_indices = @transform_7, window_bounds = array<i64: 1, 128, 128>}]} {
    %c0_i32 = arith.constant 0 : i32
    %0 = arith.cmpi eq, %arg1, %c0_i32 : i32
    %1 = arith.extui %0 : i1 to i32
    %c0_i32_0 = arith.constant 0 : i32
    %2 = arith.cmpi ne, %1, %c0_i32_0 : i32
    scf.if %2 {
      %cst_140 = arith.constant 0.000000e+00 : f32
      %584 = vector.broadcast %cst_140 : f32 to vector<8x128xf32>
      %c0_141 = arith.constant 0 : index
      %c0_142 = arith.constant 0 : index
      %585 = vector.load %arg10[%c0_141, %c0_142] : memref<8x128xf32, #tpu.memory_space<vmem>>, vector<8x128xf32>
      tpu.vector_store %arg10[%c0_141, %c0_142], %584 {strides = array<i32>} : memref<8x128xf32, #tpu.memory_space<vmem>>, vector<8x128xf32>,
    } else {
    }
    %c0 = arith.constant 0 : index
    %c0_1 = arith.constant 0 : index
    %c0_2 = arith.constant 0 : index
    %3 = vector.load %arg2[%c0, %c0_1, %c0_2] : memref<1x128x32xf32, #tpu.memory_space<vmem>>, vector<1x128x32xf32>
    %4 = vector.shape_cast %3 : vector<1x128x32xf32> to vector<128x32xf32>
    %c0_3 = arith.constant 0 : index
    %c0_4 = arith.constant 0 : index
    %5 = vector.load %arg3[%c0_3, %c0_4] : memref<32x384xf32, #tpu.memory_space<vmem>>, vector<32x384xf32>
    %cst = arith.constant dense<0.000000e+00> : vector<128x384xf32>
    %6 = tpu.matmul %4, %5, %cst {dimension_numbers = #tpu.dot_dimension_numbers<[1], [0], [0], [1], [0, 0, 1, 1], [], []>} : vector<128x32xf32>, vector<32x384xf32>, vector<128x384xf32> -> vector<128x384xf32>
    %c0_5 = arith.constant 0 : index
    %c0_6 = arith.constant 0 : index
    %7 = vector.load %arg5[%c0_5, %c0_6] : memref<1x384xf32, #tpu.memory_space<vmem>>, vector<1x384xf32>
    %8 = vector.broadcast %7 : vector<1x384xf32> to vector<128x384xf32>
    %9 = arith.addf %6, %8 : vector<128x384xf32>
    %c0_7 = arith.constant 0 : index
    %c0_8 = arith.constant 0 : index
    %10 = vector.load %arg11[%c0_7, %c0_8] : memref<128x384xf32, #tpu.memory_space<vmem>>, vector<128x384xf32>
    tpu.vector_store %arg11[%c0_7, %c0_8], %9 {strides = array<i32>} : memref<128x384xf32, #tpu.memory_space<vmem>>, vector<128x384xf32>,
    %c0_9 = arith.constant 0 : index
    %c0_10 = arith.constant 0 : index
    %11 = vector.load %arg4[%c0_9, %c0_10] : memref<128x384xf32, #tpu.memory_space<vmem>>, vector<128x384xf32>
    %c0_11 = arith.constant 0 : index
    %c0_12 = arith.constant 0 : index
    %12 = vector.load %arg6[%c0_11, %c0_12] : memref<1x128xf32, #tpu.memory_space<vmem>>, vector<1x128xf32>
    %c0_13 = arith.constant 0 : index
    %c0_14 = arith.constant 0 : index
    %13 = vector.load %arg10[%c0_13, %c0_14] : memref<8x128xf32, #tpu.memory_space<vmem>>, vector<8x128xf32>
    %c0_i32_15 = arith.constant 0 : i32
    %c8_i32 = arith.constant 8 : i32
    %14 = arith.muli %c0_i32_15, %c8_i32 : i32
    %15 = tpu.assume_multiple %14, 8 : i32
    %16 = arith.index_cast %15 : i32 to index
    %c0_16 = arith.constant 0 : index
    %17 = vector.load %arg11[%16, %c0_16] : memref<128x384xf32, #tpu.memory_space<vmem>>, vector<8x384xf32>
    %cst_17 = arith.constant dense<0.000000e+00> : vector<8x384xf32>
    %18 = tpu.matmul %13, %11, %cst_17 {dimension_numbers = #tpu.dot_dimension_numbers<[1], [0], [0], [1], [0, 0, 1, 1], [], []>} : vector<8x128xf32>, vector<128x384xf32>, vector<8x384xf32> -> vector<8x384xf32>
    %19 = vector.extract_strided_slice %17 {offsets = [0, 0], sizes = [8, 128], strides = [1, 1]} : vector<8x384xf32> to vector<8x128xf32>
    %20 = vector.extract_strided_slice %18 {offsets = [0, 0], sizes = [8, 128], strides = [1, 1]} : vector<8x384xf32> to vector<8x128xf32>
    %21 = arith.addf %19, %20 : vector<8x128xf32>
    %22 = arith.negf %21 : vector<8x128xf32>
    %23 = math.exp %22 : vector<8x128xf32>
    %cst_18 = arith.constant 1.000000e+00 : f32
    %24 = vector.broadcast %cst_18 : f32 to vector<8x128xf32>
    %25 = arith.addf %24, %23 : vector<8x128xf32>
    %26 = arith.divf %24, %25 : vector<8x128xf32>
    %27 = vector.extract_strided_slice %17 {offsets = [0, 128], sizes = [8, 128], strides = [1, 1]} : vector<8x384xf32> to vector<8x128xf32>
    %28 = vector.extract_strided_slice %18 {offsets = [0, 128], sizes = [8, 128], strides = [1, 1]} : vector<8x384xf32> to vector<8x128xf32>
    %29 = arith.addf %27, %28 : vector<8x128xf32>
    %30 = arith.negf %29 : vector<8x128xf32>
    %31 = math.exp %30 : vector<8x128xf32>
    %cst_19 = arith.constant 1.000000e+00 : f32
    %32 = vector.broadcast %cst_19 : f32 to vector<8x128xf32>
    %33 = arith.addf %32, %31 : vector<8x128xf32>
    %34 = arith.divf %32, %33 : vector<8x128xf32>
    %35 = vector.extract_strided_slice %17 {offsets = [0, 256], sizes = [8, 128], strides = [1, 1]} : vector<8x384xf32> to vector<8x128xf32>
    %36 = vector.extract_strided_slice %18 {offsets = [0, 256], sizes = [8, 128], strides = [1, 1]} : vector<8x384xf32> to vector<8x128xf32>
    %37 = vector.broadcast %12 : vector<1x128xf32> to vector<8x128xf32>
    %38 = arith.addf %36, %37 : vector<8x128xf32>
    %39 = arith.mulf %26, %38 : vector<8x128xf32>
    %40 = arith.addf %35, %39 : vector<8x128xf32>
    %41 = math.tanh %40 : vector<8x128xf32>
    %cst_20 = arith.constant 1.000000e+00 : f32
    %42 = vector.broadcast %cst_20 : f32 to vector<8x128xf32>
    %43 = arith.subf %42, %34 : vector<8x128xf32>
    %44 = arith.mulf %43, %41 : vector<8x128xf32>
    %45 = arith.mulf %34, %13 : vector<8x128xf32>
    %46 = arith.addf %44, %45 : vector<8x128xf32>
    %47 = arith.index_cast %15 : i32 to index
    %c0_21 = arith.constant 0 : index
    %48 = vector.load %arg12[%47, %c0_21] : memref<128x128xf32, #tpu.memory_space<vmem>>, vector<8x128xf32>
    tpu.vector_store %arg12[%47, %c0_21], %46 {strides = array<i32>} : memref<128x128xf32, #tpu.memory_space<vmem>>, vector<8x128xf32>,
    %c1_i32 = arith.constant 1 : i32
    %c8_i32_22 = arith.constant 8 : i32
    %49 = arith.muli %c1_i32, %c8_i32_22 : i32
    %50 = tpu.assume_multiple %49, 8 : i32
    %51 = arith.index_cast %50 : i32 to index
    %c0_23 = arith.constant 0 : index
    %52 = vector.load %arg11[%51, %c0_23] : memref<128x384xf32, #tpu.memory_space<vmem>>, vector<8x384xf32>
    %cst_24 = arith.constant dense<0.000000e+00> : vector<8x384xf32>
    %53 = tpu.matmul %46, %11, %cst_24 {dimension_numbers = #tpu.dot_dimension_numbers<[1], [0], [0], [1], [0, 0, 1, 1], [], []>} : vector<8x128xf32>, vector<128x384xf32>, vector<8x384xf32> -> vector<8x384xf32>
    %54 = vector.extract_strided_slice %52 {offsets = [0, 0], sizes = [8, 128], strides = [1, 1]} : vector<8x384xf32> to vector<8x128xf32>
    %55 = vector.extract_strided_slice %53 {offsets = [0, 0], sizes = [8, 128], strides = [1, 1]} : vector<8x384xf32> to vector<8x128xf32>
    %56 = arith.addf %54, %55 : vector<8x128xf32>
    %57 = arith.negf %56 : vector<8x128xf32>
    %58 = math.exp %57 : vector<8x128xf32>
    %cst_25 = arith.constant 1.000000e+00 : f32
    %59 = vector.broadcast %cst_25 : f32 to vector<8x128xf32>
    %60 = arith.addf %59, %58 : vector<8x128xf32>
    %61 = arith.divf %59, %60 : vector<8x128xf32>
    %62 = vector.extract_strided_slice %52 {offsets = [0, 128], sizes = [8, 128], strides = [1, 1]} : vector<8x384xf32> to vector<8x128xf32>
    %63 = vector.extract_strided_slice %53 {offsets = [0, 128], sizes = [8, 128], strides = [1, 1]} : vector<8x384xf32> to vector<8x128xf32>
    %64 = arith.addf %62, %63 : vector<8x128xf32>
    %65 = arith.negf %64 : vector<8x128xf32>
    %66 = math.exp %65 : vector<8x128xf32>
    %cst_26 = arith.constant 1.000000e+00 : f32
    %67 = vector.broadcast %cst_26 : f32 to vector<8x128xf32>
    %68 = arith.addf %67, %66 : vector<8x128xf32>
    %69 = arith.divf %67, %68 : vector<8x128xf32>
    %70 = vector.extract_strided_slice %52 {offsets = [0, 256], sizes = [8, 128], strides = [1, 1]} : vector<8x384xf32> to vector<8x128xf32>
    %71 = vector.extract_strided_slice %53 {offsets = [0, 256], sizes = [8, 128], strides = [1, 1]} : vector<8x384xf32> to vector<8x128xf32>
    %72 = vector.broadcast %12 : vector<1x128xf32> to vector<8x128xf32>
    %73 = arith.addf %71, %72 : vector<8x128xf32>
    %74 = arith.mulf %61, %73 : vector<8x128xf32>
    %75 = arith.addf %70, %74 : vector<8x128xf32>
    %76 = math.tanh %75 : vector<8x128xf32>
    %cst_27 = arith.constant 1.000000e+00 : f32
    %77 = vector.broadcast %cst_27 : f32 to vector<8x128xf32>
    %78 = arith.subf %77, %69 : vector<8x128xf32>
    %79 = arith.mulf %78, %76 : vector<8x128xf32>
    %80 = arith.mulf %69, %46 : vector<8x128xf32>
    %81 = arith.addf %79, %80 : vector<8x128xf32>
    %82 = arith.index_cast %50 : i32 to index
    %c0_28 = arith.constant 0 : index
    %83 = vector.load %arg12[%82, %c0_28] : memref<128x128xf32, #tpu.memory_space<vmem>>, vector<8x128xf32>
    tpu.vector_store %arg12[%82, %c0_28], %81 {strides = array<i32>} : memref<128x128xf32, #tpu.memory_space<vmem>>, vector<8x128xf32>,
    %c2_i32 = arith.constant 2 : i32
    %c8_i32_29 = arith.constant 8 : i32
    %84 = arith.muli %c2_i32, %c8_i32_29 : i32
    %85 = tpu.assume_multiple %84, 8 : i32
    %86 = arith.index_cast %85 : i32 to index
    %c0_30 = arith.constant 0 : index
    %87 = vector.load %arg11[%86, %c0_30] : memref<128x384xf32, #tpu.memory_space<vmem>>, vector<8x384xf32>
    %cst_31 = arith.constant dense<0.000000e+00> : vector<8x384xf32>
    %88 = tpu.matmul %81, %11, %cst_31 {dimension_numbers = #tpu.dot_dimension_numbers<[1], [0], [0], [1], [0, 0, 1, 1], [], []>} : vector<8x128xf32>, vector<128x384xf32>, vector<8x384xf32> -> vector<8x384xf32>
    %89 = vector.extract_strided_slice %87 {offsets = [0, 0], sizes = [8, 128], strides = [1, 1]} : vector<8x384xf32> to vector<8x128xf32>
    %90 = vector.extract_strided_slice %88 {offsets = [0, 0], sizes = [8, 128], strides = [1, 1]} : vector<8x384xf32> to vector<8x128xf32>
    %91 = arith.addf %89, %90 : vector<8x128xf32>
    %92 = arith.negf %91 : vector<8x128xf32>
    %93 = math.exp %92 : vector<8x128xf32>
    %cst_32 = arith.constant 1.000000e+00 : f32
    %94 = vector.broadcast %cst_32 : f32 to vector<8x128xf32>
    %95 = arith.addf %94, %93 : vector<8x128xf32>
    %96 = arith.divf %94, %95 : vector<8x128xf32>
    %97 = vector.extract_strided_slice %87 {offsets = [0, 128], sizes = [8, 128], strides = [1, 1]} : vector<8x384xf32> to vector<8x128xf32>
    %98 = vector.extract_strided_slice %88 {offsets = [0, 128], sizes = [8, 128], strides = [1, 1]} : vector<8x384xf32> to vector<8x128xf32>
    %99 = arith.addf %97, %98 : vector<8x128xf32>
    %100 = arith.negf %99 : vector<8x128xf32>
    %101 = math.exp %100 : vector<8x128xf32>
    %cst_33 = arith.constant 1.000000e+00 : f32
    %102 = vector.broadcast %cst_33 : f32 to vector<8x128xf32>
    %103 = arith.addf %102, %101 : vector<8x128xf32>
    %104 = arith.divf %102, %103 : vector<8x128xf32>
    %105 = vector.extract_strided_slice %87 {offsets = [0, 256], sizes = [8, 128], strides = [1, 1]} : vector<8x384xf32> to vector<8x128xf32>
    %106 = vector.extract_strided_slice %88 {offsets = [0, 256], sizes = [8, 128], strides = [1, 1]} : vector<8x384xf32> to vector<8x128xf32>
    %107 = vector.broadcast %12 : vector<1x128xf32> to vector<8x128xf32>
    %108 = arith.addf %106, %107 : vector<8x128xf32>
    %109 = arith.mulf %96, %108 : vector<8x128xf32>
    %110 = arith.addf %105, %109 : vector<8x128xf32>
    %111 = math.tanh %110 : vector<8x128xf32>
    %cst_34 = arith.constant 1.000000e+00 : f32
    %112 = vector.broadcast %cst_34 : f32 to vector<8x128xf32>
    %113 = arith.subf %112, %104 : vector<8x128xf32>
    %114 = arith.mulf %113, %111 : vector<8x128xf32>
    %115 = arith.mulf %104, %81 : vector<8x128xf32>
    %116 = arith.addf %114, %115 : vector<8x128xf32>
    %117 = arith.index_cast %85 : i32 to index
    %c0_35 = arith.constant 0 : index
    %118 = vector.load %arg12[%117, %c0_35] : memref<128x128xf32, #tpu.memory_space<vmem>>, vector<8x128xf32>
    tpu.vector_store %arg12[%117, %c0_35], %116 {strides = array<i32>} : memref<128x128xf32, #tpu.memory_space<vmem>>, vector<8x128xf32>,
    %c3_i32 = arith.constant 3 : i32
    %c8_i32_36 = arith.constant 8 : i32
    %119 = arith.muli %c3_i32, %c8_i32_36 : i32
    %120 = tpu.assume_multiple %119, 8 : i32
    %121 = arith.index_cast %120 : i32 to index
    %c0_37 = arith.constant 0 : index
    %122 = vector.load %arg11[%121, %c0_37] : memref<128x384xf32, #tpu.memory_space<vmem>>, vector<8x384xf32>
    %cst_38 = arith.constant dense<0.000000e+00> : vector<8x384xf32>
    %123 = tpu.matmul %116, %11, %cst_38 {dimension_numbers = #tpu.dot_dimension_numbers<[1], [0], [0], [1], [0, 0, 1, 1], [], []>} : vector<8x128xf32>, vector<128x384xf32>, vector<8x384xf32> -> vector<8x384xf32>
    %124 = vector.extract_strided_slice %122 {offsets = [0, 0], sizes = [8, 128], strides = [1, 1]} : vector<8x384xf32> to vector<8x128xf32>
    %125 = vector.extract_strided_slice %123 {offsets = [0, 0], sizes = [8, 128], strides = [1, 1]} : vector<8x384xf32> to vector<8x128xf32>
    %126 = arith.addf %124, %125 : vector<8x128xf32>
    %127 = arith.negf %126 : vector<8x128xf32>
    %128 = math.exp %127 : vector<8x128xf32>
    %cst_39 = arith.constant 1.000000e+00 : f32
    %129 = vector.broadcast %cst_39 : f32 to vector<8x128xf32>
    %130 = arith.addf %129, %128 : vector<8x128xf32>
    %131 = arith.divf %129, %130 : vector<8x128xf32>
    %132 = vector.extract_strided_slice %122 {offsets = [0, 128], sizes = [8, 128], strides = [1, 1]} : vector<8x384xf32> to vector<8x128xf32>
    %133 = vector.extract_strided_slice %123 {offsets = [0, 128], sizes = [8, 128], strides = [1, 1]} : vector<8x384xf32> to vector<8x128xf32>
    %134 = arith.addf %132, %133 : vector<8x128xf32>
    %135 = arith.negf %134 : vector<8x128xf32>
    %136 = math.exp %135 : vector<8x128xf32>
    %cst_40 = arith.constant 1.000000e+00 : f32
    %137 = vector.broadcast %cst_40 : f32 to vector<8x128xf32>
    %138 = arith.addf %137, %136 : vector<8x128xf32>
    %139 = arith.divf %137, %138 : vector<8x128xf32>
    %140 = vector.extract_strided_slice %122 {offsets = [0, 256], sizes = [8, 128], strides = [1, 1]} : vector<8x384xf32> to vector<8x128xf32>
    %141 = vector.extract_strided_slice %123 {offsets = [0, 256], sizes = [8, 128], strides = [1, 1]} : vector<8x384xf32> to vector<8x128xf32>
    %142 = vector.broadcast %12 : vector<1x128xf32> to vector<8x128xf32>
    %143 = arith.addf %141, %142 : vector<8x128xf32>
    %144 = arith.mulf %131, %143 : vector<8x128xf32>
    %145 = arith.addf %140, %144 : vector<8x128xf32>
    %146 = math.tanh %145 : vector<8x128xf32>
    %cst_41 = arith.constant 1.000000e+00 : f32
    %147 = vector.broadcast %cst_41 : f32 to vector<8x128xf32>
    %148 = arith.subf %147, %139 : vector<8x128xf32>
    %149 = arith.mulf %148, %146 : vector<8x128xf32>
    %150 = arith.mulf %139, %116 : vector<8x128xf32>
    %151 = arith.addf %149, %150 : vector<8x128xf32>
    %152 = arith.index_cast %120 : i32 to index
    %c0_42 = arith.constant 0 : index
    %153 = vector.load %arg12[%152, %c0_42] : memref<128x128xf32, #tpu.memory_space<vmem>>, vector<8x128xf32>
    tpu.vector_store %arg12[%152, %c0_42], %151 {strides = array<i32>} : memref<128x128xf32, #tpu.memory_space<vmem>>, vector<8x128xf32>,
    %c4_i32 = arith.constant 4 : i32
    %c8_i32_43 = arith.constant 8 : i32
    %154 = arith.muli %c4_i32, %c8_i32_43 : i32
    %155 = tpu.assume_multiple %154, 8 : i32
    %156 = arith.index_cast %155 : i32 to index
    %c0_44 = arith.constant 0 : index
    %157 = vector.load %arg11[%156, %c0_44] : memref<128x384xf32, #tpu.memory_space<vmem>>, vector<8x384xf32>
    %cst_45 = arith.constant dense<0.000000e+00> : vector<8x384xf32>
    %158 = tpu.matmul %151, %11, %cst_45 {dimension_numbers = #tpu.dot_dimension_numbers<[1], [0], [0], [1], [0, 0, 1, 1], [], []>} : vector<8x128xf32>, vector<128x384xf32>, vector<8x384xf32> -> vector<8x384xf32>
    %159 = vector.extract_strided_slice %157 {offsets = [0, 0], sizes = [8, 128], strides = [1, 1]} : vector<8x384xf32> to vector<8x128xf32>
    %160 = vector.extract_strided_slice %158 {offsets = [0, 0], sizes = [8, 128], strides = [1, 1]} : vector<8x384xf32> to vector<8x128xf32>
    %161 = arith.addf %159, %160 : vector<8x128xf32>
    %162 = arith.negf %161 : vector<8x128xf32>
    %163 = math.exp %162 : vector<8x128xf32>
    %cst_46 = arith.constant 1.000000e+00 : f32
    %164 = vector.broadcast %cst_46 : f32 to vector<8x128xf32>
    %165 = arith.addf %164, %163 : vector<8x128xf32>
    %166 = arith.divf %164, %165 : vector<8x128xf32>
    %167 = vector.extract_strided_slice %157 {offsets = [0, 128], sizes = [8, 128], strides = [1, 1]} : vector<8x384xf32> to vector<8x128xf32>
    %168 = vector.extract_strided_slice %158 {offsets = [0, 128], sizes = [8, 128], strides = [1, 1]} : vector<8x384xf32> to vector<8x128xf32>
    %169 = arith.addf %167, %168 : vector<8x128xf32>
    %170 = arith.negf %169 : vector<8x128xf32>
    %171 = math.exp %170 : vector<8x128xf32>
    %cst_47 = arith.constant 1.000000e+00 : f32
    %172 = vector.broadcast %cst_47 : f32 to vector<8x128xf32>
    %173 = arith.addf %172, %171 : vector<8x128xf32>
    %174 = arith.divf %172, %173 : vector<8x128xf32>
    %175 = vector.extract_strided_slice %157 {offsets = [0, 256], sizes = [8, 128], strides = [1, 1]} : vector<8x384xf32> to vector<8x128xf32>
    %176 = vector.extract_strided_slice %158 {offsets = [0, 256], sizes = [8, 128], strides = [1, 1]} : vector<8x384xf32> to vector<8x128xf32>
    %177 = vector.broadcast %12 : vector<1x128xf32> to vector<8x128xf32>
    %178 = arith.addf %176, %177 : vector<8x128xf32>
    %179 = arith.mulf %166, %178 : vector<8x128xf32>
    %180 = arith.addf %175, %179 : vector<8x128xf32>
    %181 = math.tanh %180 : vector<8x128xf32>
    %cst_48 = arith.constant 1.000000e+00 : f32
    %182 = vector.broadcast %cst_48 : f32 to vector<8x128xf32>
    %183 = arith.subf %182, %174 : vector<8x128xf32>
    %184 = arith.mulf %183, %181 : vector<8x128xf32>
    %185 = arith.mulf %174, %151 : vector<8x128xf32>
    %186 = arith.addf %184, %185 : vector<8x128xf32>
    %187 = arith.index_cast %155 : i32 to index
    %c0_49 = arith.constant 0 : index
    %188 = vector.load %arg12[%187, %c0_49] : memref<128x128xf32, #tpu.memory_space<vmem>>, vector<8x128xf32>
    tpu.vector_store %arg12[%187, %c0_49], %186 {strides = array<i32>} : memref<128x128xf32, #tpu.memory_space<vmem>>, vector<8x128xf32>,
    %c5_i32 = arith.constant 5 : i32
    %c8_i32_50 = arith.constant 8 : i32
    %189 = arith.muli %c5_i32, %c8_i32_50 : i32
    %190 = tpu.assume_multiple %189, 8 : i32
    %191 = arith.index_cast %190 : i32 to index
    %c0_51 = arith.constant 0 : index
    %192 = vector.load %arg11[%191, %c0_51] : memref<128x384xf32, #tpu.memory_space<vmem>>, vector<8x384xf32>
    %cst_52 = arith.constant dense<0.000000e+00> : vector<8x384xf32>
    %193 = tpu.matmul %186, %11, %cst_52 {dimension_numbers = #tpu.dot_dimension_numbers<[1], [0], [0], [1], [0, 0, 1, 1], [], []>} : vector<8x128xf32>, vector<128x384xf32>, vector<8x384xf32> -> vector<8x384xf32>
    %194 = vector.extract_strided_slice %192 {offsets = [0, 0], sizes = [8, 128], strides = [1, 1]} : vector<8x384xf32> to vector<8x128xf32>
    %195 = vector.extract_strided_slice %193 {offsets = [0, 0], sizes = [8, 128], strides = [1, 1]} : vector<8x384xf32> to vector<8x128xf32>
    %196 = arith.addf %194, %195 : vector<8x128xf32>
    %197 = arith.negf %196 : vector<8x128xf32>
    %198 = math.exp %197 : vector<8x128xf32>
    %cst_53 = arith.constant 1.000000e+00 : f32
    %199 = vector.broadcast %cst_53 : f32 to vector<8x128xf32>
    %200 = arith.addf %199, %198 : vector<8x128xf32>
    %201 = arith.divf %199, %200 : vector<8x128xf32>
    %202 = vector.extract_strided_slice %192 {offsets = [0, 128], sizes = [8, 128], strides = [1, 1]} : vector<8x384xf32> to vector<8x128xf32>
    %203 = vector.extract_strided_slice %193 {offsets = [0, 128], sizes = [8, 128], strides = [1, 1]} : vector<8x384xf32> to vector<8x128xf32>
    %204 = arith.addf %202, %203 : vector<8x128xf32>
    %205 = arith.negf %204 : vector<8x128xf32>
    %206 = math.exp %205 : vector<8x128xf32>
    %cst_54 = arith.constant 1.000000e+00 : f32
    %207 = vector.broadcast %cst_54 : f32 to vector<8x128xf32>
    %208 = arith.addf %207, %206 : vector<8x128xf32>
    %209 = arith.divf %207, %208 : vector<8x128xf32>
    %210 = vector.extract_strided_slice %192 {offsets = [0, 256], sizes = [8, 128], strides = [1, 1]} : vector<8x384xf32> to vector<8x128xf32>
    %211 = vector.extract_strided_slice %193 {offsets = [0, 256], sizes = [8, 128], strides = [1, 1]} : vector<8x384xf32> to vector<8x128xf32>
    %212 = vector.broadcast %12 : vector<1x128xf32> to vector<8x128xf32>
    %213 = arith.addf %211, %212 : vector<8x128xf32>
    %214 = arith.mulf %201, %213 : vector<8x128xf32>
    %215 = arith.addf %210, %214 : vector<8x128xf32>
    %216 = math.tanh %215 : vector<8x128xf32>
    %cst_55 = arith.constant 1.000000e+00 : f32
    %217 = vector.broadcast %cst_55 : f32 to vector<8x128xf32>
    %218 = arith.subf %217, %209 : vector<8x128xf32>
    %219 = arith.mulf %218, %216 : vector<8x128xf32>
    %220 = arith.mulf %209, %186 : vector<8x128xf32>
    %221 = arith.addf %219, %220 : vector<8x128xf32>
    %222 = arith.index_cast %190 : i32 to index
    %c0_56 = arith.constant 0 : index
    %223 = vector.load %arg12[%222, %c0_56] : memref<128x128xf32, #tpu.memory_space<vmem>>, vector<8x128xf32>
    tpu.vector_store %arg12[%222, %c0_56], %221 {strides = array<i32>} : memref<128x128xf32, #tpu.memory_space<vmem>>, vector<8x128xf32>,
    %c6_i32 = arith.constant 6 : i32
    %c8_i32_57 = arith.constant 8 : i32
    %224 = arith.muli %c6_i32, %c8_i32_57 : i32
    %225 = tpu.assume_multiple %224, 8 : i32
    %226 = arith.index_cast %225 : i32 to index
    %c0_58 = arith.constant 0 : index
    %227 = vector.load %arg11[%226, %c0_58] : memref<128x384xf32, #tpu.memory_space<vmem>>, vector<8x384xf32>
    %cst_59 = arith.constant dense<0.000000e+00> : vector<8x384xf32>
    %228 = tpu.matmul %221, %11, %cst_59 {dimension_numbers = #tpu.dot_dimension_numbers<[1], [0], [0], [1], [0, 0, 1, 1], [], []>} : vector<8x128xf32>, vector<128x384xf32>, vector<8x384xf32> -> vector<8x384xf32>
    %229 = vector.extract_strided_slice %227 {offsets = [0, 0], sizes = [8, 128], strides = [1, 1]} : vector<8x384xf32> to vector<8x128xf32>
    %230 = vector.extract_strided_slice %228 {offsets = [0, 0], sizes = [8, 128], strides = [1, 1]} : vector<8x384xf32> to vector<8x128xf32>
    %231 = arith.addf %229, %230 : vector<8x128xf32>
    %232 = arith.negf %231 : vector<8x128xf32>
    %233 = math.exp %232 : vector<8x128xf32>
    %cst_60 = arith.constant 1.000000e+00 : f32
    %234 = vector.broadcast %cst_60 : f32 to vector<8x128xf32>
    %235 = arith.addf %234, %233 : vector<8x128xf32>
    %236 = arith.divf %234, %235 : vector<8x128xf32>
    %237 = vector.extract_strided_slice %227 {offsets = [0, 128], sizes = [8, 128], strides = [1, 1]} : vector<8x384xf32> to vector<8x128xf32>
    %238 = vector.extract_strided_slice %228 {offsets = [0, 128], sizes = [8, 128], strides = [1, 1]} : vector<8x384xf32> to vector<8x128xf32>
    %239 = arith.addf %237, %238 : vector<8x128xf32>
    %240 = arith.negf %239 : vector<8x128xf32>
    %241 = math.exp %240 : vector<8x128xf32>
    %cst_61 = arith.constant 1.000000e+00 : f32
    %242 = vector.broadcast %cst_61 : f32 to vector<8x128xf32>
    %243 = arith.addf %242, %241 : vector<8x128xf32>
    %244 = arith.divf %242, %243 : vector<8x128xf32>
    %245 = vector.extract_strided_slice %227 {offsets = [0, 256], sizes = [8, 128], strides = [1, 1]} : vector<8x384xf32> to vector<8x128xf32>
    %246 = vector.extract_strided_slice %228 {offsets = [0, 256], sizes = [8, 128], strides = [1, 1]} : vector<8x384xf32> to vector<8x128xf32>
    %247 = vector.broadcast %12 : vector<1x128xf32> to vector<8x128xf32>
    %248 = arith.addf %246, %247 : vector<8x128xf32>
    %249 = arith.mulf %236, %248 : vector<8x128xf32>
    %250 = arith.addf %245, %249 : vector<8x128xf32>
    %251 = math.tanh %250 : vector<8x128xf32>
    %cst_62 = arith.constant 1.000000e+00 : f32
    %252 = vector.broadcast %cst_62 : f32 to vector<8x128xf32>
    %253 = arith.subf %252, %244 : vector<8x128xf32>
    %254 = arith.mulf %253, %251 : vector<8x128xf32>
    %255 = arith.mulf %244, %221 : vector<8x128xf32>
    %256 = arith.addf %254, %255 : vector<8x128xf32>
    %257 = arith.index_cast %225 : i32 to index
    %c0_63 = arith.constant 0 : index
    %258 = vector.load %arg12[%257, %c0_63] : memref<128x128xf32, #tpu.memory_space<vmem>>, vector<8x128xf32>
    tpu.vector_store %arg12[%257, %c0_63], %256 {strides = array<i32>} : memref<128x128xf32, #tpu.memory_space<vmem>>, vector<8x128xf32>,
    %c7_i32 = arith.constant 7 : i32
    %c8_i32_64 = arith.constant 8 : i32
    %259 = arith.muli %c7_i32, %c8_i32_64 : i32
    %260 = tpu.assume_multiple %259, 8 : i32
    %261 = arith.index_cast %260 : i32 to index
    %c0_65 = arith.constant 0 : index
    %262 = vector.load %arg11[%261, %c0_65] : memref<128x384xf32, #tpu.memory_space<vmem>>, vector<8x384xf32>
    %cst_66 = arith.constant dense<0.000000e+00> : vector<8x384xf32>
    %263 = tpu.matmul %256, %11, %cst_66 {dimension_numbers = #tpu.dot_dimension_numbers<[1], [0], [0], [1], [0, 0, 1, 1], [], []>} : vector<8x128xf32>, vector<128x384xf32>, vector<8x384xf32> -> vector<8x384xf32>
    %264 = vector.extract_strided_slice %262 {offsets = [0, 0], sizes = [8, 128], strides = [1, 1]} : vector<8x384xf32> to vector<8x128xf32>
    %265 = vector.extract_strided_slice %263 {offsets = [0, 0], sizes = [8, 128], strides = [1, 1]} : vector<8x384xf32> to vector<8x128xf32>
    %266 = arith.addf %264, %265 : vector<8x128xf32>
    %267 = arith.negf %266 : vector<8x128xf32>
    %268 = math.exp %267 : vector<8x128xf32>
    %cst_67 = arith.constant 1.000000e+00 : f32
    %269 = vector.broadcast %cst_67 : f32 to vector<8x128xf32>
    %270 = arith.addf %269, %268 : vector<8x128xf32>
    %271 = arith.divf %269, %270 : vector<8x128xf32>
    %272 = vector.extract_strided_slice %262 {offsets = [0, 128], sizes = [8, 128], strides = [1, 1]} : vector<8x384xf32> to vector<8x128xf32>
    %273 = vector.extract_strided_slice %263 {offsets = [0, 128], sizes = [8, 128], strides = [1, 1]} : vector<8x384xf32> to vector<8x128xf32>
    %274 = arith.addf %272, %273 : vector<8x128xf32>
    %275 = arith.negf %274 : vector<8x128xf32>
    %276 = math.exp %275 : vector<8x128xf32>
    %cst_68 = arith.constant 1.000000e+00 : f32
    %277 = vector.broadcast %cst_68 : f32 to vector<8x128xf32>
    %278 = arith.addf %277, %276 : vector<8x128xf32>
    %279 = arith.divf %277, %278 : vector<8x128xf32>
    %280 = vector.extract_strided_slice %262 {offsets = [0, 256], sizes = [8, 128], strides = [1, 1]} : vector<8x384xf32> to vector<8x128xf32>
    %281 = vector.extract_strided_slice %263 {offsets = [0, 256], sizes = [8, 128], strides = [1, 1]} : vector<8x384xf32> to vector<8x128xf32>
    %282 = vector.broadcast %12 : vector<1x128xf32> to vector<8x128xf32>
    %283 = arith.addf %281, %282 : vector<8x128xf32>
    %284 = arith.mulf %271, %283 : vector<8x128xf32>
    %285 = arith.addf %280, %284 : vector<8x128xf32>
    %286 = math.tanh %285 : vector<8x128xf32>
    %cst_69 = arith.constant 1.000000e+00 : f32
    %287 = vector.broadcast %cst_69 : f32 to vector<8x128xf32>
    %288 = arith.subf %287, %279 : vector<8x128xf32>
    %289 = arith.mulf %288, %286 : vector<8x128xf32>
    %290 = arith.mulf %279, %256 : vector<8x128xf32>
    %291 = arith.addf %289, %290 : vector<8x128xf32>
    %292 = arith.index_cast %260 : i32 to index
    %c0_70 = arith.constant 0 : index
    %293 = vector.load %arg12[%292, %c0_70] : memref<128x128xf32, #tpu.memory_space<vmem>>, vector<8x128xf32>
    tpu.vector_store %arg12[%292, %c0_70], %291 {strides = array<i32>} : memref<128x128xf32, #tpu.memory_space<vmem>>, vector<8x128xf32>,
    %c8_i32_71 = arith.constant 8 : i32
    %c8_i32_72 = arith.constant 8 : i32
    %294 = arith.muli %c8_i32_71, %c8_i32_72 : i32
    %295 = tpu.assume_multiple %294, 8 : i32
    %296 = arith.index_cast %295 : i32 to index
    %c0_73 = arith.constant 0 : index
    %297 = vector.load %arg11[%296, %c0_73] : memref<128x384xf32, #tpu.memory_space<vmem>>, vector<8x384xf32>
    %cst_74 = arith.constant dense<0.000000e+00> : vector<8x384xf32>
    %298 = tpu.matmul %291, %11, %cst_74 {dimension_numbers = #tpu.dot_dimension_numbers<[1], [0], [0], [1], [0, 0, 1, 1], [], []>} : vector<8x128xf32>, vector<128x384xf32>, vector<8x384xf32> -> vector<8x384xf32>
    %299 = vector.extract_strided_slice %297 {offsets = [0, 0], sizes = [8, 128], strides = [1, 1]} : vector<8x384xf32> to vector<8x128xf32>
    %300 = vector.extract_strided_slice %298 {offsets = [0, 0], sizes = [8, 128], strides = [1, 1]} : vector<8x384xf32> to vector<8x128xf32>
    %301 = arith.addf %299, %300 : vector<8x128xf32>
    %302 = arith.negf %301 : vector<8x128xf32>
    %303 = math.exp %302 : vector<8x128xf32>
    %cst_75 = arith.constant 1.000000e+00 : f32
    %304 = vector.broadcast %cst_75 : f32 to vector<8x128xf32>
    %305 = arith.addf %304, %303 : vector<8x128xf32>
    %306 = arith.divf %304, %305 : vector<8x128xf32>
    %307 = vector.extract_strided_slice %297 {offsets = [0, 128], sizes = [8, 128], strides = [1, 1]} : vector<8x384xf32> to vector<8x128xf32>
    %308 = vector.extract_strided_slice %298 {offsets = [0, 128], sizes = [8, 128], strides = [1, 1]} : vector<8x384xf32> to vector<8x128xf32>
    %309 = arith.addf %307, %308 : vector<8x128xf32>
    %310 = arith.negf %309 : vector<8x128xf32>
    %311 = math.exp %310 : vector<8x128xf32>
    %cst_76 = arith.constant 1.000000e+00 : f32
    %312 = vector.broadcast %cst_76 : f32 to vector<8x128xf32>
    %313 = arith.addf %312, %311 : vector<8x128xf32>
    %314 = arith.divf %312, %313 : vector<8x128xf32>
    %315 = vector.extract_strided_slice %297 {offsets = [0, 256], sizes = [8, 128], strides = [1, 1]} : vector<8x384xf32> to vector<8x128xf32>
    %316 = vector.extract_strided_slice %298 {offsets = [0, 256], sizes = [8, 128], strides = [1, 1]} : vector<8x384xf32> to vector<8x128xf32>
    %317 = vector.broadcast %12 : vector<1x128xf32> to vector<8x128xf32>
    %318 = arith.addf %316, %317 : vector<8x128xf32>
    %319 = arith.mulf %306, %318 : vector<8x128xf32>
    %320 = arith.addf %315, %319 : vector<8x128xf32>
    %321 = math.tanh %320 : vector<8x128xf32>
    %cst_77 = arith.constant 1.000000e+00 : f32
    %322 = vector.broadcast %cst_77 : f32 to vector<8x128xf32>
    %323 = arith.subf %322, %314 : vector<8x128xf32>
    %324 = arith.mulf %323, %321 : vector<8x128xf32>
    %325 = arith.mulf %314, %291 : vector<8x128xf32>
    %326 = arith.addf %324, %325 : vector<8x128xf32>
    %327 = arith.index_cast %295 : i32 to index
    %c0_78 = arith.constant 0 : index
    %328 = vector.load %arg12[%327, %c0_78] : memref<128x128xf32, #tpu.memory_space<vmem>>, vector<8x128xf32>
    tpu.vector_store %arg12[%327, %c0_78], %326 {strides = array<i32>} : memref<128x128xf32, #tpu.memory_space<vmem>>, vector<8x128xf32>,
    %c9_i32 = arith.constant 9 : i32
    %c8_i32_79 = arith.constant 8 : i32
    %329 = arith.muli %c9_i32, %c8_i32_79 : i32
    %330 = tpu.assume_multiple %329, 8 : i32
    %331 = arith.index_cast %330 : i32 to index
    %c0_80 = arith.constant 0 : index
    %332 = vector.load %arg11[%331, %c0_80] : memref<128x384xf32, #tpu.memory_space<vmem>>, vector<8x384xf32>
    %cst_81 = arith.constant dense<0.000000e+00> : vector<8x384xf32>
    %333 = tpu.matmul %326, %11, %cst_81 {dimension_numbers = #tpu.dot_dimension_numbers<[1], [0], [0], [1], [0, 0, 1, 1], [], []>} : vector<8x128xf32>, vector<128x384xf32>, vector<8x384xf32> -> vector<8x384xf32>
    %334 = vector.extract_strided_slice %332 {offsets = [0, 0], sizes = [8, 128], strides = [1, 1]} : vector<8x384xf32> to vector<8x128xf32>
    %335 = vector.extract_strided_slice %333 {offsets = [0, 0], sizes = [8, 128], strides = [1, 1]} : vector<8x384xf32> to vector<8x128xf32>
    %336 = arith.addf %334, %335 : vector<8x128xf32>
    %337 = arith.negf %336 : vector<8x128xf32>
    %338 = math.exp %337 : vector<8x128xf32>
    %cst_82 = arith.constant 1.000000e+00 : f32
    %339 = vector.broadcast %cst_82 : f32 to vector<8x128xf32>
    %340 = arith.addf %339, %338 : vector<8x128xf32>
    %341 = arith.divf %339, %340 : vector<8x128xf32>
    %342 = vector.extract_strided_slice %332 {offsets = [0, 128], sizes = [8, 128], strides = [1, 1]} : vector<8x384xf32> to vector<8x128xf32>
    %343 = vector.extract_strided_slice %333 {offsets = [0, 128], sizes = [8, 128], strides = [1, 1]} : vector<8x384xf32> to vector<8x128xf32>
    %344 = arith.addf %342, %343 : vector<8x128xf32>
    %345 = arith.negf %344 : vector<8x128xf32>
    %346 = math.exp %345 : vector<8x128xf32>
    %cst_83 = arith.constant 1.000000e+00 : f32
    %347 = vector.broadcast %cst_83 : f32 to vector<8x128xf32>
    %348 = arith.addf %347, %346 : vector<8x128xf32>
    %349 = arith.divf %347, %348 : vector<8x128xf32>
    %350 = vector.extract_strided_slice %332 {offsets = [0, 256], sizes = [8, 128], strides = [1, 1]} : vector<8x384xf32> to vector<8x128xf32>
    %351 = vector.extract_strided_slice %333 {offsets = [0, 256], sizes = [8, 128], strides = [1, 1]} : vector<8x384xf32> to vector<8x128xf32>
    %352 = vector.broadcast %12 : vector<1x128xf32> to vector<8x128xf32>
    %353 = arith.addf %351, %352 : vector<8x128xf32>
    %354 = arith.mulf %341, %353 : vector<8x128xf32>
    %355 = arith.addf %350, %354 : vector<8x128xf32>
    %356 = math.tanh %355 : vector<8x128xf32>
    %cst_84 = arith.constant 1.000000e+00 : f32
    %357 = vector.broadcast %cst_84 : f32 to vector<8x128xf32>
    %358 = arith.subf %357, %349 : vector<8x128xf32>
    %359 = arith.mulf %358, %356 : vector<8x128xf32>
    %360 = arith.mulf %349, %326 : vector<8x128xf32>
    %361 = arith.addf %359, %360 : vector<8x128xf32>
    %362 = arith.index_cast %330 : i32 to index
    %c0_85 = arith.constant 0 : index
    %363 = vector.load %arg12[%362, %c0_85] : memref<128x128xf32, #tpu.memory_space<vmem>>, vector<8x128xf32>
    tpu.vector_store %arg12[%362, %c0_85], %361 {strides = array<i32>} : memref<128x128xf32, #tpu.memory_space<vmem>>, vector<8x128xf32>,
    %c10_i32 = arith.constant 10 : i32
    %c8_i32_86 = arith.constant 8 : i32
    %364 = arith.muli %c10_i32, %c8_i32_86 : i32
    %365 = tpu.assume_multiple %364, 8 : i32
    %366 = arith.index_cast %365 : i32 to index
    %c0_87 = arith.constant 0 : index
    %367 = vector.load %arg11[%366, %c0_87] : memref<128x384xf32, #tpu.memory_space<vmem>>, vector<8x384xf32>
    %cst_88 = arith.constant dense<0.000000e+00> : vector<8x384xf32>
    %368 = tpu.matmul %361, %11, %cst_88 {dimension_numbers = #tpu.dot_dimension_numbers<[1], [0], [0], [1], [0, 0, 1, 1], [], []>} : vector<8x128xf32>, vector<128x384xf32>, vector<8x384xf32> -> vector<8x384xf32>
    %369 = vector.extract_strided_slice %367 {offsets = [0, 0], sizes = [8, 128], strides = [1, 1]} : vector<8x384xf32> to vector<8x128xf32>
    %370 = vector.extract_strided_slice %368 {offsets = [0, 0], sizes = [8, 128], strides = [1, 1]} : vector<8x384xf32> to vector<8x128xf32>
    %371 = arith.addf %369, %370 : vector<8x128xf32>
    %372 = arith.negf %371 : vector<8x128xf32>
    %373 = math.exp %372 : vector<8x128xf32>
    %cst_89 = arith.constant 1.000000e+00 : f32
    %374 = vector.broadcast %cst_89 : f32 to vector<8x128xf32>
    %375 = arith.addf %374, %373 : vector<8x128xf32>
    %376 = arith.divf %374, %375 : vector<8x128xf32>
    %377 = vector.extract_strided_slice %367 {offsets = [0, 128], sizes = [8, 128], strides = [1, 1]} : vector<8x384xf32> to vector<8x128xf32>
    %378 = vector.extract_strided_slice %368 {offsets = [0, 128], sizes = [8, 128], strides = [1, 1]} : vector<8x384xf32> to vector<8x128xf32>
    %379 = arith.addf %377, %378 : vector<8x128xf32>
    %380 = arith.negf %379 : vector<8x128xf32>
    %381 = math.exp %380 : vector<8x128xf32>
    %cst_90 = arith.constant 1.000000e+00 : f32
    %382 = vector.broadcast %cst_90 : f32 to vector<8x128xf32>
    %383 = arith.addf %382, %381 : vector<8x128xf32>
    %384 = arith.divf %382, %383 : vector<8x128xf32>
    %385 = vector.extract_strided_slice %367 {offsets = [0, 256], sizes = [8, 128], strides = [1, 1]} : vector<8x384xf32> to vector<8x128xf32>
    %386 = vector.extract_strided_slice %368 {offsets = [0, 256], sizes = [8, 128], strides = [1, 1]} : vector<8x384xf32> to vector<8x128xf32>
    %387 = vector.broadcast %12 : vector<1x128xf32> to vector<8x128xf32>
    %388 = arith.addf %386, %387 : vector<8x128xf32>
    %389 = arith.mulf %376, %388 : vector<8x128xf32>
    %390 = arith.addf %385, %389 : vector<8x128xf32>
    %391 = math.tanh %390 : vector<8x128xf32>
    %cst_91 = arith.constant 1.000000e+00 : f32
    %392 = vector.broadcast %cst_91 : f32 to vector<8x128xf32>
    %393 = arith.subf %392, %384 : vector<8x128xf32>
    %394 = arith.mulf %393, %391 : vector<8x128xf32>
    %395 = arith.mulf %384, %361 : vector<8x128xf32>
    %396 = arith.addf %394, %395 : vector<8x128xf32>
    %397 = arith.index_cast %365 : i32 to index
    %c0_92 = arith.constant 0 : index
    %398 = vector.load %arg12[%397, %c0_92] : memref<128x128xf32, #tpu.memory_space<vmem>>, vector<8x128xf32>
    tpu.vector_store %arg12[%397, %c0_92], %396 {strides = array<i32>} : memref<128x128xf32, #tpu.memory_space<vmem>>, vector<8x128xf32>,
    %c11_i32 = arith.constant 11 : i32
    %c8_i32_93 = arith.constant 8 : i32
    %399 = arith.muli %c11_i32, %c8_i32_93 : i32
    %400 = tpu.assume_multiple %399, 8 : i32
    %401 = arith.index_cast %400 : i32 to index
    %c0_94 = arith.constant 0 : index
    %402 = vector.load %arg11[%401, %c0_94] : memref<128x384xf32, #tpu.memory_space<vmem>>, vector<8x384xf32>
    %cst_95 = arith.constant dense<0.000000e+00> : vector<8x384xf32>
    %403 = tpu.matmul %396, %11, %cst_95 {dimension_numbers = #tpu.dot_dimension_numbers<[1], [0], [0], [1], [0, 0, 1, 1], [], []>} : vector<8x128xf32>, vector<128x384xf32>, vector<8x384xf32> -> vector<8x384xf32>
    %404 = vector.extract_strided_slice %402 {offsets = [0, 0], sizes = [8, 128], strides = [1, 1]} : vector<8x384xf32> to vector<8x128xf32>
    %405 = vector.extract_strided_slice %403 {offsets = [0, 0], sizes = [8, 128], strides = [1, 1]} : vector<8x384xf32> to vector<8x128xf32>
    %406 = arith.addf %404, %405 : vector<8x128xf32>
    %407 = arith.negf %406 : vector<8x128xf32>
    %408 = math.exp %407 : vector<8x128xf32>
    %cst_96 = arith.constant 1.000000e+00 : f32
    %409 = vector.broadcast %cst_96 : f32 to vector<8x128xf32>
    %410 = arith.addf %409, %408 : vector<8x128xf32>
    %411 = arith.divf %409, %410 : vector<8x128xf32>
    %412 = vector.extract_strided_slice %402 {offsets = [0, 128], sizes = [8, 128], strides = [1, 1]} : vector<8x384xf32> to vector<8x128xf32>
    %413 = vector.extract_strided_slice %403 {offsets = [0, 128], sizes = [8, 128], strides = [1, 1]} : vector<8x384xf32> to vector<8x128xf32>
    %414 = arith.addf %412, %413 : vector<8x128xf32>
    %415 = arith.negf %414 : vector<8x128xf32>
    %416 = math.exp %415 : vector<8x128xf32>
    %cst_97 = arith.constant 1.000000e+00 : f32
    %417 = vector.broadcast %cst_97 : f32 to vector<8x128xf32>
    %418 = arith.addf %417, %416 : vector<8x128xf32>
    %419 = arith.divf %417, %418 : vector<8x128xf32>
    %420 = vector.extract_strided_slice %402 {offsets = [0, 256], sizes = [8, 128], strides = [1, 1]} : vector<8x384xf32> to vector<8x128xf32>
    %421 = vector.extract_strided_slice %403 {offsets = [0, 256], sizes = [8, 128], strides = [1, 1]} : vector<8x384xf32> to vector<8x128xf32>
    %422 = vector.broadcast %12 : vector<1x128xf32> to vector<8x128xf32>
    %423 = arith.addf %421, %422 : vector<8x128xf32>
    %424 = arith.mulf %411, %423 : vector<8x128xf32>
    %425 = arith.addf %420, %424 : vector<8x128xf32>
    %426 = math.tanh %425 : vector<8x128xf32>
    %cst_98 = arith.constant 1.000000e+00 : f32
    %427 = vector.broadcast %cst_98 : f32 to vector<8x128xf32>
    %428 = arith.subf %427, %419 : vector<8x128xf32>
    %429 = arith.mulf %428, %426 : vector<8x128xf32>
    %430 = arith.mulf %419, %396 : vector<8x128xf32>
    %431 = arith.addf %429, %430 : vector<8x128xf32>
    %432 = arith.index_cast %400 : i32 to index
    %c0_99 = arith.constant 0 : index
    %433 = vector.load %arg12[%432, %c0_99] : memref<128x128xf32, #tpu.memory_space<vmem>>, vector<8x128xf32>
    tpu.vector_store %arg12[%432, %c0_99], %431 {strides = array<i32>} : memref<128x128xf32, #tpu.memory_space<vmem>>, vector<8x128xf32>,
    %c12_i32 = arith.constant 12 : i32
    %c8_i32_100 = arith.constant 8 : i32
    %434 = arith.muli %c12_i32, %c8_i32_100 : i32
    %435 = tpu.assume_multiple %434, 8 : i32
    %436 = arith.index_cast %435 : i32 to index
    %c0_101 = arith.constant 0 : index
    %437 = vector.load %arg11[%436, %c0_101] : memref<128x384xf32, #tpu.memory_space<vmem>>, vector<8x384xf32>
    %cst_102 = arith.constant dense<0.000000e+00> : vector<8x384xf32>
    %438 = tpu.matmul %431, %11, %cst_102 {dimension_numbers = #tpu.dot_dimension_numbers<[1], [0], [0], [1], [0, 0, 1, 1], [], []>} : vector<8x128xf32>, vector<128x384xf32>, vector<8x384xf32> -> vector<8x384xf32>
    %439 = vector.extract_strided_slice %437 {offsets = [0, 0], sizes = [8, 128], strides = [1, 1]} : vector<8x384xf32> to vector<8x128xf32>
    %440 = vector.extract_strided_slice %438 {offsets = [0, 0], sizes = [8, 128], strides = [1, 1]} : vector<8x384xf32> to vector<8x128xf32>
    %441 = arith.addf %439, %440 : vector<8x128xf32>
    %442 = arith.negf %441 : vector<8x128xf32>
    %443 = math.exp %442 : vector<8x128xf32>
    %cst_103 = arith.constant 1.000000e+00 : f32
    %444 = vector.broadcast %cst_103 : f32 to vector<8x128xf32>
    %445 = arith.addf %444, %443 : vector<8x128xf32>
    %446 = arith.divf %444, %445 : vector<8x128xf32>
    %447 = vector.extract_strided_slice %437 {offsets = [0, 128], sizes = [8, 128], strides = [1, 1]} : vector<8x384xf32> to vector<8x128xf32>
    %448 = vector.extract_strided_slice %438 {offsets = [0, 128], sizes = [8, 128], strides = [1, 1]} : vector<8x384xf32> to vector<8x128xf32>
    %449 = arith.addf %447, %448 : vector<8x128xf32>
    %450 = arith.negf %449 : vector<8x128xf32>
    %451 = math.exp %450 : vector<8x128xf32>
    %cst_104 = arith.constant 1.000000e+00 : f32
    %452 = vector.broadcast %cst_104 : f32 to vector<8x128xf32>
    %453 = arith.addf %452, %451 : vector<8x128xf32>
    %454 = arith.divf %452, %453 : vector<8x128xf32>
    %455 = vector.extract_strided_slice %437 {offsets = [0, 256], sizes = [8, 128], strides = [1, 1]} : vector<8x384xf32> to vector<8x128xf32>
    %456 = vector.extract_strided_slice %438 {offsets = [0, 256], sizes = [8, 128], strides = [1, 1]} : vector<8x384xf32> to vector<8x128xf32>
    %457 = vector.broadcast %12 : vector<1x128xf32> to vector<8x128xf32>
    %458 = arith.addf %456, %457 : vector<8x128xf32>
    %459 = arith.mulf %446, %458 : vector<8x128xf32>
    %460 = arith.addf %455, %459 : vector<8x128xf32>
    %461 = math.tanh %460 : vector<8x128xf32>
    %cst_105 = arith.constant 1.000000e+00 : f32
    %462 = vector.broadcast %cst_105 : f32 to vector<8x128xf32>
    %463 = arith.subf %462, %454 : vector<8x128xf32>
    %464 = arith.mulf %463, %461 : vector<8x128xf32>
    %465 = arith.mulf %454, %431 : vector<8x128xf32>
    %466 = arith.addf %464, %465 : vector<8x128xf32>
    %467 = arith.index_cast %435 : i32 to index
    %c0_106 = arith.constant 0 : index
    %468 = vector.load %arg12[%467, %c0_106] : memref<128x128xf32, #tpu.memory_space<vmem>>, vector<8x128xf32>
    tpu.vector_store %arg12[%467, %c0_106], %466 {strides = array<i32>} : memref<128x128xf32, #tpu.memory_space<vmem>>, vector<8x128xf32>,
    %c13_i32 = arith.constant 13 : i32
    %c8_i32_107 = arith.constant 8 : i32
    %469 = arith.muli %c13_i32, %c8_i32_107 : i32
    %470 = tpu.assume_multiple %469, 8 : i32
    %471 = arith.index_cast %470 : i32 to index
    %c0_108 = arith.constant 0 : index
    %472 = vector.load %arg11[%471, %c0_108] : memref<128x384xf32, #tpu.memory_space<vmem>>, vector<8x384xf32>
    %cst_109 = arith.constant dense<0.000000e+00> : vector<8x384xf32>
    %473 = tpu.matmul %466, %11, %cst_109 {dimension_numbers = #tpu.dot_dimension_numbers<[1], [0], [0], [1], [0, 0, 1, 1], [], []>} : vector<8x128xf32>, vector<128x384xf32>, vector<8x384xf32> -> vector<8x384xf32>
    %474 = vector.extract_strided_slice %472 {offsets = [0, 0], sizes = [8, 128], strides = [1, 1]} : vector<8x384xf32> to vector<8x128xf32>
    %475 = vector.extract_strided_slice %473 {offsets = [0, 0], sizes = [8, 128], strides = [1, 1]} : vector<8x384xf32> to vector<8x128xf32>
    %476 = arith.addf %474, %475 : vector<8x128xf32>
    %477 = arith.negf %476 : vector<8x128xf32>
    %478 = math.exp %477 : vector<8x128xf32>
    %cst_110 = arith.constant 1.000000e+00 : f32
    %479 = vector.broadcast %cst_110 : f32 to vector<8x128xf32>
    %480 = arith.addf %479, %478 : vector<8x128xf32>
    %481 = arith.divf %479, %480 : vector<8x128xf32>
    %482 = vector.extract_strided_slice %472 {offsets = [0, 128], sizes = [8, 128], strides = [1, 1]} : vector<8x384xf32> to vector<8x128xf32>
    %483 = vector.extract_strided_slice %473 {offsets = [0, 128], sizes = [8, 128], strides = [1, 1]} : vector<8x384xf32> to vector<8x128xf32>
    %484 = arith.addf %482, %483 : vector<8x128xf32>
    %485 = arith.negf %484 : vector<8x128xf32>
    %486 = math.exp %485 : vector<8x128xf32>
    %cst_111 = arith.constant 1.000000e+00 : f32
    %487 = vector.broadcast %cst_111 : f32 to vector<8x128xf32>
    %488 = arith.addf %487, %486 : vector<8x128xf32>
    %489 = arith.divf %487, %488 : vector<8x128xf32>
    %490 = vector.extract_strided_slice %472 {offsets = [0, 256], sizes = [8, 128], strides = [1, 1]} : vector<8x384xf32> to vector<8x128xf32>
    %491 = vector.extract_strided_slice %473 {offsets = [0, 256], sizes = [8, 128], strides = [1, 1]} : vector<8x384xf32> to vector<8x128xf32>
    %492 = vector.broadcast %12 : vector<1x128xf32> to vector<8x128xf32>
    %493 = arith.addf %491, %492 : vector<8x128xf32>
    %494 = arith.mulf %481, %493 : vector<8x128xf32>
    %495 = arith.addf %490, %494 : vector<8x128xf32>
    %496 = math.tanh %495 : vector<8x128xf32>
    %cst_112 = arith.constant 1.000000e+00 : f32
    %497 = vector.broadcast %cst_112 : f32 to vector<8x128xf32>
    %498 = arith.subf %497, %489 : vector<8x128xf32>
    %499 = arith.mulf %498, %496 : vector<8x128xf32>
    %500 = arith.mulf %489, %466 : vector<8x128xf32>
    %501 = arith.addf %499, %500 : vector<8x128xf32>
    %502 = arith.index_cast %470 : i32 to index
    %c0_113 = arith.constant 0 : index
    %503 = vector.load %arg12[%502, %c0_113] : memref<128x128xf32, #tpu.memory_space<vmem>>, vector<8x128xf32>
    tpu.vector_store %arg12[%502, %c0_113], %501 {strides = array<i32>} : memref<128x128xf32, #tpu.memory_space<vmem>>, vector<8x128xf32>,
    %c14_i32 = arith.constant 14 : i32
    %c8_i32_114 = arith.constant 8 : i32
    %504 = arith.muli %c14_i32, %c8_i32_114 : i32
    %505 = tpu.assume_multiple %504, 8 : i32
    %506 = arith.index_cast %505 : i32 to index
    %c0_115 = arith.constant 0 : index
    %507 = vector.load %arg11[%506, %c0_115] : memref<128x384xf32, #tpu.memory_space<vmem>>, vector<8x384xf32>
    %cst_116 = arith.constant dense<0.000000e+00> : vector<8x384xf32>
    %508 = tpu.matmul %501, %11, %cst_116 {dimension_numbers = #tpu.dot_dimension_numbers<[1], [0], [0], [1], [0, 0, 1, 1], [], []>} : vector<8x128xf32>, vector<128x384xf32>, vector<8x384xf32> -> vector<8x384xf32>
    %509 = vector.extract_strided_slice %507 {offsets = [0, 0], sizes = [8, 128], strides = [1, 1]} : vector<8x384xf32> to vector<8x128xf32>
    %510 = vector.extract_strided_slice %508 {offsets = [0, 0], sizes = [8, 128], strides = [1, 1]} : vector<8x384xf32> to vector<8x128xf32>
    %511 = arith.addf %509, %510 : vector<8x128xf32>
    %512 = arith.negf %511 : vector<8x128xf32>
    %513 = math.exp %512 : vector<8x128xf32>
    %cst_117 = arith.constant 1.000000e+00 : f32
    %514 = vector.broadcast %cst_117 : f32 to vector<8x128xf32>
    %515 = arith.addf %514, %513 : vector<8x128xf32>
    %516 = arith.divf %514, %515 : vector<8x128xf32>
    %517 = vector.extract_strided_slice %507 {offsets = [0, 128], sizes = [8, 128], strides = [1, 1]} : vector<8x384xf32> to vector<8x128xf32>
    %518 = vector.extract_strided_slice %508 {offsets = [0, 128], sizes = [8, 128], strides = [1, 1]} : vector<8x384xf32> to vector<8x128xf32>
    %519 = arith.addf %517, %518 : vector<8x128xf32>
    %520 = arith.negf %519 : vector<8x128xf32>
    %521 = math.exp %520 : vector<8x128xf32>
    %cst_118 = arith.constant 1.000000e+00 : f32
    %522 = vector.broadcast %cst_118 : f32 to vector<8x128xf32>
    %523 = arith.addf %522, %521 : vector<8x128xf32>
    %524 = arith.divf %522, %523 : vector<8x128xf32>
    %525 = vector.extract_strided_slice %507 {offsets = [0, 256], sizes = [8, 128], strides = [1, 1]} : vector<8x384xf32> to vector<8x128xf32>
    %526 = vector.extract_strided_slice %508 {offsets = [0, 256], sizes = [8, 128], strides = [1, 1]} : vector<8x384xf32> to vector<8x128xf32>
    %527 = vector.broadcast %12 : vector<1x128xf32> to vector<8x128xf32>
    %528 = arith.addf %526, %527 : vector<8x128xf32>
    %529 = arith.mulf %516, %528 : vector<8x128xf32>
    %530 = arith.addf %525, %529 : vector<8x128xf32>
    %531 = math.tanh %530 : vector<8x128xf32>
    %cst_119 = arith.constant 1.000000e+00 : f32
    %532 = vector.broadcast %cst_119 : f32 to vector<8x128xf32>
    %533 = arith.subf %532, %524 : vector<8x128xf32>
    %534 = arith.mulf %533, %531 : vector<8x128xf32>
    %535 = arith.mulf %524, %501 : vector<8x128xf32>
    %536 = arith.addf %534, %535 : vector<8x128xf32>
    %537 = arith.index_cast %505 : i32 to index
    %c0_120 = arith.constant 0 : index
    %538 = vector.load %arg12[%537, %c0_120] : memref<128x128xf32, #tpu.memory_space<vmem>>, vector<8x128xf32>
    tpu.vector_store %arg12[%537, %c0_120], %536 {strides = array<i32>} : memref<128x128xf32, #tpu.memory_space<vmem>>, vector<8x128xf32>,
    %c15_i32 = arith.constant 15 : i32
    %c8_i32_121 = arith.constant 8 : i32
    %539 = arith.muli %c15_i32, %c8_i32_121 : i32
    %540 = tpu.assume_multiple %539, 8 : i32
    %541 = arith.index_cast %540 : i32 to index
    %c0_122 = arith.constant 0 : index
    %542 = vector.load %arg11[%541, %c0_122] : memref<128x384xf32, #tpu.memory_space<vmem>>, vector<8x384xf32>
    %cst_123 = arith.constant dense<0.000000e+00> : vector<8x384xf32>
    %543 = tpu.matmul %536, %11, %cst_123 {dimension_numbers = #tpu.dot_dimension_numbers<[1], [0], [0], [1], [0, 0, 1, 1], [], []>} : vector<8x128xf32>, vector<128x384xf32>, vector<8x384xf32> -> vector<8x384xf32>
    %544 = vector.extract_strided_slice %542 {offsets = [0, 0], sizes = [8, 128], strides = [1, 1]} : vector<8x384xf32> to vector<8x128xf32>
    %545 = vector.extract_strided_slice %543 {offsets = [0, 0], sizes = [8, 128], strides = [1, 1]} : vector<8x384xf32> to vector<8x128xf32>
    %546 = arith.addf %544, %545 : vector<8x128xf32>
    %547 = arith.negf %546 : vector<8x128xf32>
    %548 = math.exp %547 : vector<8x128xf32>
    %cst_124 = arith.constant 1.000000e+00 : f32
    %549 = vector.broadcast %cst_124 : f32 to vector<8x128xf32>
    %550 = arith.addf %549, %548 : vector<8x128xf32>
    %551 = arith.divf %549, %550 : vector<8x128xf32>
    %552 = vector.extract_strided_slice %542 {offsets = [0, 128], sizes = [8, 128], strides = [1, 1]} : vector<8x384xf32> to vector<8x128xf32>
    %553 = vector.extract_strided_slice %543 {offsets = [0, 128], sizes = [8, 128], strides = [1, 1]} : vector<8x384xf32> to vector<8x128xf32>
    %554 = arith.addf %552, %553 : vector<8x128xf32>
    %555 = arith.negf %554 : vector<8x128xf32>
    %556 = math.exp %555 : vector<8x128xf32>
    %cst_125 = arith.constant 1.000000e+00 : f32
    %557 = vector.broadcast %cst_125 : f32 to vector<8x128xf32>
    %558 = arith.addf %557, %556 : vector<8x128xf32>
    %559 = arith.divf %557, %558 : vector<8x128xf32>
    %560 = vector.extract_strided_slice %542 {offsets = [0, 256], sizes = [8, 128], strides = [1, 1]} : vector<8x384xf32> to vector<8x128xf32>
    %561 = vector.extract_strided_slice %543 {offsets = [0, 256], sizes = [8, 128], strides = [1, 1]} : vector<8x384xf32> to vector<8x128xf32>
    %562 = vector.broadcast %12 : vector<1x128xf32> to vector<8x128xf32>
    %563 = arith.addf %561, %562 : vector<8x128xf32>
    %564 = arith.mulf %551, %563 : vector<8x128xf32>
    %565 = arith.addf %560, %564 : vector<8x128xf32>
    %566 = math.tanh %565 : vector<8x128xf32>
    %cst_126 = arith.constant 1.000000e+00 : f32
    %567 = vector.broadcast %cst_126 : f32 to vector<8x128xf32>
    %568 = arith.subf %567, %559 : vector<8x128xf32>
    %569 = arith.mulf %568, %566 : vector<8x128xf32>
    %570 = arith.mulf %559, %536 : vector<8x128xf32>
    %571 = arith.addf %569, %570 : vector<8x128xf32>
    %572 = arith.index_cast %540 : i32 to index
    %c0_127 = arith.constant 0 : index
    %573 = vector.load %arg12[%572, %c0_127] : memref<128x128xf32, #tpu.memory_space<vmem>>, vector<8x128xf32>
    tpu.vector_store %arg12[%572, %c0_127], %571 {strides = array<i32>} : memref<128x128xf32, #tpu.memory_space<vmem>>, vector<8x128xf32>,
    %c16_i32 = arith.constant 16 : i32
    %c0_128 = arith.constant 0 : index
    %c0_129 = arith.constant 0 : index
    %574 = vector.load %arg10[%c0_128, %c0_129] : memref<8x128xf32, #tpu.memory_space<vmem>>, vector<8x128xf32>
    tpu.vector_store %arg10[%c0_128, %c0_129], %571 {strides = array<i32>} : memref<8x128xf32, #tpu.memory_space<vmem>>, vector<8x128xf32>,
    %c0_130 = arith.constant 0 : index
    %c0_131 = arith.constant 0 : index
    %575 = vector.load %arg12[%c0_130, %c0_131] : memref<128x128xf32, #tpu.memory_space<vmem>>, vector<128x128xf32>
    %c0_132 = arith.constant 0 : index
    %c0_133 = arith.constant 0 : index
    %576 = vector.load %arg7[%c0_132, %c0_133] : memref<128x128xf32, #tpu.memory_space<vmem>>, vector<128x128xf32>
    %cst_134 = arith.constant dense<0.000000e+00> : vector<128x128xf32>
    %577 = tpu.matmul %575, %576, %cst_134 {dimension_numbers = #tpu.dot_dimension_numbers<[1], [0], [0], [1], [0, 0, 1, 1], [], []>} : vector<128x128xf32>, vector<128x128xf32>, vector<128x128xf32> -> vector<128x128xf32>
    %c0_135 = arith.constant 0 : index
    %c0_136 = arith.constant 0 : index
    %578 = vector.load %arg8[%c0_135, %c0_136] : memref<1x128xf32, #tpu.memory_space<vmem>>, vector<1x128xf32>
    %579 = vector.broadcast %578 : vector<1x128xf32> to vector<128x128xf32>
    %580 = arith.addf %577, %579 : vector<128x128xf32>
    %c0_137 = arith.constant 0 : index
    %c0_138 = arith.constant 0 : index
    %c0_139 = arith.constant 0 : index
    %581 = vector.load %arg9[%c0_137, %c0_138, %c0_139] : memref<1x128x128xf32, #tpu.memory_space<vmem>>, vector<1x128x128xf32>
    %582 = vector.shape_cast %581 : vector<1x128x128xf32> to vector<128x128xf32>
    %583 = vector.shape_cast %580 : vector<128x128xf32> to vector<1x128x128xf32>
    tpu.vector_store %arg9[%c0_137, %c0_138, %c0_139], %583 {strides = array<i32>} : memref<1x128x128xf32, #tpu.memory_space<vmem>>, vector<1x128x128xf32>,
    return
  }
  func.func @transform_0(%arg0: i32, %arg1: i32) -> (i32, i32, i32) {
    %c0_i32 = arith.constant 0 : i32
    %c0_i32_0 = arith.constant 0 : i32
    return %arg0, %arg1, %c0_i32 : i32, i32, i32
  }
  func.func @transform_1(%arg0: i32, %arg1: i32) -> (i32, i32) {
    %c0_i32 = arith.constant 0 : i32
    %c0_i32_0 = arith.constant 0 : i32
    %c0_i32_1 = arith.constant 0 : i32
    return %c0_i32, %c0_i32_0 : i32, i32
  }
  func.func @transform_2(%arg0: i32, %arg1: i32) -> (i32, i32) {
    %c0_i32 = arith.constant 0 : i32
    %c0_i32_0 = arith.constant 0 : i32
    %c0_i32_1 = arith.constant 0 : i32
    return %c0_i32, %c0_i32_0 : i32, i32
  }
  func.func @transform_3(%arg0: i32, %arg1: i32) -> (i32, i32) {
    %c0_i32 = arith.constant 0 : i32
    %c0_i32_0 = arith.constant 0 : i32
    %c0_i32_1 = arith.constant 0 : i32
    return %c0_i32, %c0_i32_0 : i32, i32
  }
  func.func @transform_4(%arg0: i32, %arg1: i32) -> (i32, i32) {
    %c0_i32 = arith.constant 0 : i32
    %c0_i32_0 = arith.constant 0 : i32
    %c0_i32_1 = arith.constant 0 : i32
    return %c0_i32, %c0_i32_0 : i32, i32
  }
  func.func @transform_5(%arg0: i32, %arg1: i32) -> (i32, i32) {
    %c0_i32 = arith.constant 0 : i32
    %c0_i32_0 = arith.constant 0 : i32
    %c0_i32_1 = arith.constant 0 : i32
    return %c0_i32, %c0_i32_0 : i32, i32
  }
  func.func @transform_6(%arg0: i32, %arg1: i32) -> (i32, i32) {
    %c0_i32 = arith.constant 0 : i32
    %c0_i32_0 = arith.constant 0 : i32
    %c0_i32_1 = arith.constant 0 : i32
    return %c0_i32, %c0_i32_0 : i32, i32
  }
  func.func @transform_7(%arg0: i32, %arg1: i32) -> (i32, i32, i32) {
    %c0_i32 = arith.constant 0 : i32
    %c0_i32_0 = arith.constant 0 : i32
    return %arg0, %arg1, %c0_i32 : i32, i32, i32
  }
}

</mosaic_0001>

<llo_original>
// kernel: tpu_custom_call.1
$region0: #{tpu_custom_call.1}
  #allocation0 [shape = 'u32[]', space=smem, size = 0x4, offset = 0x4, fixed_abs, tag = 'smem constant byte address 0x4 - core index']
  #allocation1 [shape = 'u32[144,128]{1,0:T(1,128)}', space=vmem, size = 0x12000, scoped, tag = 'internal scratch']
  #allocation2 [shape = 'f32[8,128]{1,0:T(8,128)}', space=vmem, size = 0x1000, scoped, tag = 'scratch operand']
  #allocation3 [shape = 'f32[128,384]{1,0:T(8,128)}', space=vmem, size = 0x30000, scoped, tag = 'scratch operand']
  #allocation4 [shape = 'f32[128,128]{1,0:T(8,128)}', space=vmem, size = 0x10000, scoped, tag = 'scratch operand']
  %s0 = inlined_call_operand.vmem [shape: f32[1,128,32], index: 0, kind: input, shape index: {}]
  %s1 = inlined_call_operand.hbm [shape: f32[32,384], index: 1, kind: input, shape index: {}]
  %s2 = inlined_call_operand.hbm [shape: f32[128,384], index: 2, kind: input, shape index: {}]
  %s3 = inlined_call_operand.vmem [shape: f32[1,384], index: 3, kind: input, shape index: {}]
  %s4 = inlined_call_operand.vmem [shape: f32[1,128], index: 4, kind: input, shape index: {}]
  %s5 = inlined_call_operand.vmem [shape: f32[128,128], index: 5, kind: input, shape index: {}]
  %s6 = inlined_call_operand.vmem [shape: f32[1,128], index: 6, kind: input, shape index: {}]
  %s7 = inlined_call_operand.hbm [shape: f32[1,128,128], index: 7, kind: output, shape index: {}]
  %s8 = sld [smem:[#allocation0]]
  $region50: #{tpu_custom_call.1} parent=0
    _
  %s10 = ssub.s32 1, %s8
  %s11 = scalar_select 0, %s10, %s8
  $region1: #{tpu_custom_call.1} parent=0
    #allocation5 [shape = 'u8[49152]{0}', space=vmem, size = 0xc000, scoped, tag = 'input window, operand 1, single buffered']
    #allocation6 [shape = 's32[1]{0}', space=sflag, size = 0x4, scoped, tag = 'scoped memory for tpu_custom_call.1']
    #allocation7 [shape = 's32[1]{0}', space=sflag, size = 0x4, scoped, tag = 'scoped memory for tpu_custom_call.1']
    #allocation8 [shape = 'u8[196608]{0}', space=vmem, size = 0x30000, scoped, tag = 'input window, operand 2, single buffered']
    #allocation9 [shape = 's32[1]{0}', space=sflag, size = 0x4, scoped, tag = 'scoped memory for tpu_custom_call.1']
    #allocation10 [shape = 'u8[65536]{0}', space=vmem, size = 0x10000, scoped, tag = 'output window, operand 0, single buffered']
    %12 = vsyncpa [#allocation6], 0
    %13 = vsyncpa [#allocation9], 0
    %14 = vsyncpa [#allocation7], 0
    // Predicated region
    $region2: #{tpu_custom_call.1} parent=1 // pred_check
      _
    $region3: #{tpu_custom_call.1} parent=1 // pred_check_branch
      %16 = sbr.rel (0) target = $region5
    $region4: #{tpu_custom_call.1} parent=1 // pred_region
      _
    $region5: #{tpu_custom_call.1} parent=1 // pred_fallthru
      _
    // Predicated region
    $region6: #{tpu_custom_call.1} parent=1 // pred_check
      _
    $region7: #{tpu_custom_call.1} parent=1 // pred_check_branch
      %18 = sbr.rel (0) target = $region9
    $region8: #{tpu_custom_call.1} parent=1 // pred_region
      %s20 = ssub.s32 1536, 1536
      %21 = vsyncadd [#allocation6], %s20
      %s22 = sshll.u32 [#allocation5], 4
      %s23 = int_to_ptr.vmem [resolvable:$true] %s22
      %28 = dma.hbm_to_vmem [thread:$0]  %s1, 1536, %s23, [#allocation6], 384, 384, 24
    $region9: #{tpu_custom_call.1} parent=1 // pred_fallthru
      _
    // Predicated region
    $region10: #{tpu_custom_call.1} parent=1 // pred_check
      _
    $region11: #{tpu_custom_call.1} parent=1 // pred_check_branch
      %30 = sbr.rel (0) target = $region13
    $region12: #{tpu_custom_call.1} parent=1 // pred_region
      %s32 = ssub.s32 6144, 6144
      %33 = vsyncadd [#allocation9], %s32
      %s34 = sshll.u32 [#allocation8], 4
      %s35 = int_to_ptr.vmem [resolvable:$true] %s34
      %40 = dma.hbm_to_vmem [thread:$0]  %s2, 6144, %s35, [#allocation9], 384, 384, 24
    $region13: #{tpu_custom_call.1} parent=1 // pred_fallthru
      _
    // Predicated region
    $region14: #{tpu_custom_call.1} parent=1 // pred_check
      _
    $region15: #{tpu_custom_call.1} parent=1 // pred_check_branch
      %42 = sbr.rel (0) target = $region17
    $region16: #{tpu_custom_call.1} parent=1 // pred_region
      _
    $region17: #{tpu_custom_call.1} parent=1 // pred_fallthru
      _
    // Predicated region
    $region18: #{tpu_custom_call.1} parent=1 // pred_check
      _
    $region19: #{tpu_custom_call.1} parent=1 // pred_check_branch
      %44 = sbr.rel (0) target = $region21
    $region20: #{tpu_custom_call.1} parent=1 // pred_region
      _
    $region21: #{tpu_custom_call.1} parent=1 // pred_fallthru
      _
    // Predicated region
    $region22: #{tpu_custom_call.1} parent=1 // pred_check
      _
    $region23: #{tpu_custom_call.1} parent=1 // pred_check_branch
      %46 = sbr.rel (0) target = $region25
    $region24: #{tpu_custom_call.1} parent=1 // pred_region
      _
    $region25: #{tpu_custom_call.1} parent=1 // pred_fallthru
      _
    // Predicated region
    $region26: #{tpu_custom_call.1} parent=1 // pred_check
      _
    $region27: #{tpu_custom_call.1} parent=1 // pred_check_branch
      %48 = sbr.rel (0) target = $region29
    $region28: #{tpu_custom_call.1} parent=1 // pred_region
      _
    $region29: #{tpu_custom_call.1} parent=1 // pred_fallthru
      _
    // Predicated region
    $region30: #{tpu_custom_call.1} parent=1 // pred_check
      _
    $region31: #{tpu_custom_call.1} parent=1 // pred_check_branch
      %50 = sbr.rel (0) target = $region33
    $region32: #{tpu_custom_call.1} parent=1 // pred_region
      %51 = dma.done [#allocation6], 1536
    $region33: #{tpu_custom_call.1} parent=1 // pred_fallthru
      _
    // Predicated region
    $region34: #{tpu_custom_call.1} parent=1 // pred_check
      _
    $region35: #{tpu_custom_call.1} parent=1 // pred_check_branch
      %53 = sbr.rel (0) target = $region37
    $region36: #{tpu_custom_call.1} parent=1 // pred_region
      %54 = dma.done [#allocation9], 6144
    $region37: #{tpu_custom_call.1} parent=1 // pred_fallthru
      _
    %p55 = scmp.eq.s32.totalorder 0, 0
    // Predicated region
    $region38: #{tpu_custom_call.1} parent=1 // pred_check
      %p56 = pneg %p55
    $region39: #{tpu_custom_call.1} parent=1 // pred_check_branch
      %58 = sbr.rel (%p56) target = $region41
    $region40: #{tpu_custom_call.1} parent=1 // pred_region
      %59 = vst [vmem:[#allocation2] sm:$0xff] 0.0
    $region41: #{tpu_custom_call.1} parent=1 // pred_fallthru
      _
    %v60 = vld [vmem:[%s0] sm:$0xff]
    %v61 = vld [vmem:[%s0 + $0x8] sm:$0xff]
    %v62 = vld [vmem:[%s0 + $0x10] sm:$0xff]
    %v63 = vld [vmem:[%s0 + $0x18] sm:$0xff]
    %v64 = vld [vmem:[%s0 + $0x20] sm:$0xff]
    %v65 = vld [vmem:[%s0 + $0x28] sm:$0xff]
    %v66 = vld [vmem:[%s0 + $0x30] sm:$0xff]
    %v67 = vld [vmem:[%s0 + $0x38] sm:$0xff]
    %v68 = vld [vmem:[%s0 + $0x40] sm:$0xff]
    %v69 = vld [vmem:[%s0 + $0x48] sm:$0xff]
    %v70 = vld [vmem:[%s0 + $0x50] sm:$0xff]
    %v71 = vld [vmem:[%s0 + $0x58] sm:$0xff]
    %v72 = vld [vmem:[%s0 + $0x60] sm:$0xff]
    %v73 = vld [vmem:[%s0 + $0x68] sm:$0xff]
    %v74 = vld [vmem:[%s0 + $0x70] sm:$0xff]
    %v75 = vld [vmem:[%s0 + $0x78] sm:$0xff]
    %v76 = vld [vmem:[#allocation5] sm:$0xff]
    %v77 = vld [vmem:[#allocation5 + $0x8] sm:$0xff]
    %v78 = vld [vmem:[#allocation5 + $0x10] sm:$0xff]
    %v79 = vld [vmem:[#allocation5 + $0x18] sm:$0xff]
    %v80 = vld [vmem:[#allocation5 + $0x20] sm:$0xff]
    %v81 = vld [vmem:[#allocation5 + $0x28] sm:$0xff]
    %v82 = vld [vmem:[#allocation5 + $0x30] sm:$0xff]
    %v83 = vld [vmem:[#allocation5 + $0x38] sm:$0xff]
    %v84 = vld [vmem:[#allocation5 + $0x40] sm:$0xff]
    %v85 = vld [vmem:[#allocation5 + $0x48] sm:$0xff]
    %v86 = vld [vmem:[#allocation5 + $0x50] sm:$0xff]
    %v87 = vld [vmem:[#allocation5 + $0x58] sm:$0xff]
    %v88 = vld [vmem:[%s3] sm:$0x7]
    %v90 = vlaneseq
    %v91 = vshrl.u32 %v90, 7
    %v92 = vsub.s32 0, %v91
    %v93 = vrot.slane %v88, %v92
    %v94 = vlaneseq
    %v95 = vshrl.u32 %v94, 7
    %v96 = vsub.s32 1, %v95
    %v97 = vrot.slane %v88, %v96
    %v98 = vlaneseq
    %v99 = vshrl.u32 %v98, 7
    %v100 = vsub.s32 2, %v99
    %v101 = vrot.slane %v88, %v100
    %vm105 = vcmask 261120
    %v107 = vsel %vm105, %v60, 0
    %v110 = vsel %vm105, %v61, 0
    %v113 = vsel %vm105, %v62, 0
    %v116 = vsel %vm105, %v63, 0
    %v119 = vsel %vm105, %v64, 0
    %v122 = vsel %vm105, %v65, 0
    %v125 = vsel %vm105, %v66, 0
    %v128 = vsel %vm105, %v67, 0
    %v131 = vsel %vm105, %v68, 0
    %v134 = vsel %vm105, %v69, 0
    %v137 = vsel %vm105, %v70, 0
    %v140 = vsel %vm105, %v71, 0
    %v143 = vsel %vm105, %v72, 0
    %v146 = vsel %vm105, %v73, 0
    %v149 = vsel %vm105, %v74, 0
    %v152 = vsel %vm105, %v75, 0
    %154 = vmatprep.subr.mxu0 %v77
    %155 = vmatpush1.msra.mxu0 %v76
    %156 = vmatprep.subr.mxu0 %v80
    %157 = vmatpush1.msra.mxu0 %v79
    %158 = vmatprep.subr.mxu0 %v83
    %159 = vmatpush1.msra.mxu0 %v82
    %160 = vmatprep.subr.mxu0 %v86
    %161 = vmatpush1.msra.mxu0 %v85
    %162 = vmatprep.subr.mxu0 0.0
    %163 = vmatpush1.msra.mxu0 0.0
    %164 = vmatprep.subr.mxu0 0.0
    %165 = vmatpush1.msra.mxu0 0.0
    %166 = vmatprep.subr.mxu0 0.0
    %167 = vmatpush1.msra.mxu0 0.0
    %168 = vmatprep.subr.mxu0 0.0
    %169 = vmatpush1.msra.mxu0 0.0
    %170 = vmatprep.subr.mxu0 0.0
    %171 = vmatpush1.msra.mxu0 0.0
    %172 = vmatprep.subr.mxu0 0.0
    %173 = vmatpush1.msra.mxu0 0.0
    %174 = vmatprep.subr.mxu0 0.0
    %175 = vmatpush1.msra.mxu0 0.0
    %176 = vmatprep.subr.mxu0 0.0
    %177 = vmatpush1.msra.mxu0 0.0
    %178 = vmatprep.subr.mxu0 0.0
    %179 = vmatpush1.msra.mxu0 0.0
    %180 = vmatprep.subr.mxu0 0.0
    %181 = vmatpush1.msra.mxu0 0.0
    %182 = vmatprep.subr.mxu0 0.0
    %183 = vmatpush1.msra.mxu0 0.0
    %184 = vmatprep.subr.mxu0 0.0
    %185 = vmatpush1.msra.mxu0 0.0
    %186 = vmatprep.subr.mxu0 0.0
    %187 = vmatpush1.msra.mxu0 0.0
    %188 = vmatprep.subr.mxu0 0.0
    %189 = vmatpush1.msra.mxu0 0.0
    %190 = vmatprep.subr.mxu0 0.0
    %191 = vmatpush1.msra.mxu0 0.0
    %192 = vmatprep.subr.mxu0 0.0
    %193 = vmatpush1.msra.mxu0 0.0
    %194 = vmatprep.subr.mxu0 0.0
    %195 = vmatpush1.msra.mxu0 0.0
    %196 = vmatprep.subr.mxu0 0.0
    %197 = vmatpush1.msra.mxu0 0.0
    %198 = vmatprep.subr.mxu0 0.0
    %199 = vmatpush1.msra.mxu0 0.0
    %200 = vmatprep.subr.mxu0 0.0
    %201 = vmatpush1.msra.mxu0 0.0
    %202 = vmatprep.subr.mxu0 0.0
    %203 = vmatpush1.msra.mxu0 0.0
    %204 = vmatprep.subr.mxu0 0.0
    %205 = vmatpush1.msra.mxu0 0.0
    %206 = vmatprep.subr.mxu0 0.0
    %207 = vmatpush1.msra.mxu0 0.0
    %208 = vmatprep.subr.mxu0 0.0
    %209 = vmatpush1.msra.mxu0 0.0
    %210 = vmatprep.subr.mxu0 0.0
    %211 = vmatpush1.msra.mxu0 0.0
    %212 = vmatprep.subr.mxu0 0.0
    %213 = vmatpush1.msra.mxu0 0.0
    %214 = vmatprep.subr.mxu0 0.0
    %215 = vmatpush1.msra.mxu0 0.0
    %216 = vmatprep.subr.mxu0 0.0
    %217 = vmatpush1.msra.mxu0 0.0
    %218 = vmatprep.mubr.f32.mxu0 0.0
    %219 = vmatmul.mubr.f32.gmra.mrb[0].mxu0 %v107
    %v220 = vpop.f32.mrb[0].mxu0
    %v221 = vadd.f32 %v93, %v220
    %v222 = vpop.f32.mrb[0].mxu0
    %v223 = vadd.f32 %v97, %v222
    %224 = vmatprep.mubr.f32.mxu0 0.0
    %225 = vmatmul.mubr.f32.gmra.mrb[0].mxu0 %v110
    %v226 = vpop.f32.mrb[0].mxu0
    %v227 = vadd.f32 %v93, %v226
    %v228 = vpop.f32.mrb[0].mxu0
    %v229 = vadd.f32 %v97, %v228
    %230 = vmatprep.mubr.f32.mxu0 0.0
    %231 = vmatmul.mubr.f32.gmra.mrb[0].mxu0 %v113
    %v232 = vpop.f32.mrb[0].mxu0
    %v233 = vadd.f32 %v93, %v232
    %v234 = vpop.f32.mrb[0].mxu0
    %v235 = vadd.f32 %v97, %v234
    %236 = vmatprep.mubr.f32.mxu0 0.0
    %237 = vmatmul.mubr.f32.gmra.mrb[0].mxu0 %v116
    %v238 = vpop.f32.mrb[0].mxu0
    %v239 = vadd.f32 %v93, %v238
    %v240 = vpop.f32.mrb[0].mxu0
    %v241 = vadd.f32 %v97, %v240
    %242 = vmatprep.mubr.f32.mxu0 0.0
    %243 = vmatmul.mubr.f32.gmra.mrb[0].mxu0 %v119
    %v244 = vpop.f32.mrb[0].mxu0
    %v245 = vadd.f32 %v93, %v244
    %v246 = vpop.f32.mrb[0].mxu0
    %v247 = vadd.f32 %v97, %v246
    %248 = vmatprep.mubr.f32.mxu0 0.0
    %249 = vmatmul.mubr.f32.gmra.mrb[0].mxu0 %v122
    %v250 = vpop.f32.mrb[0].mxu0
    %v251 = vadd.f32 %v93, %v250
    %v252 = vpop.f32.mrb[0].mxu0
    %v253 = vadd.f32 %v97, %v252
    %254 = vmatprep.mubr.f32.mxu0 0.0
    %255 = vmatmul.mubr.f32.gmra.mrb[0].mxu0 %v125
    %v256 = vpop.f32.mrb[0].mxu0
    %v257 = vadd.f32 %v93, %v256
    %v258 = vpop.f32.mrb[0].mxu0
    %v259 = vadd.f32 %v97, %v258
    %260 = vmatprep.mubr.f32.mxu0 0.0
    %261 = vmatmul.mubr.f32.gmra.mrb[0].mxu0 %v128
    %v262 = vpop.f32.mrb[0].mxu0
    %v263 = vadd.f32 %v93, %v262
    %v264 = vpop.f32.mrb[0].mxu0
    %v265 = vadd.f32 %v97, %v264
    %266 = vmatprep.mubr.f32.mxu0 0.0
    %267 = vmatmul.mubr.f32.gmra.mrb[0].mxu0 %v131
    %v268 = vpop.f32.mrb[0].mxu0
    %v269 = vadd.f32 %v93, %v268
    %v270 = vpop.f32.mrb[0].mxu0
    %v271 = vadd.f32 %v97, %v270
    %272 = vmatprep.mubr.f32.mxu0 0.0
    %273 = vmatmul.mubr.f32.gmra.mrb[0].mxu0 %v134
    %v274 = vpop.f32.mrb[0].mxu0
    %v275 = vadd.f32 %v93, %v274
    %v276 = vpop.f32.mrb[0].mxu0
    %v277 = vadd.f32 %v97, %v276
    %278 = vmatprep.mubr.f32.mxu0 0.0
    %279 = vmatmul.mubr.f32.gmra.mrb[0].mxu0 %v137
    %v280 = vpop.f32.mrb[0].mxu0
    %v281 = vadd.f32 %v93, %v280
    %v282 = vpop.f32.mrb[0].mxu0
    %v283 = vadd.f32 %v97, %v282
    %284 = vmatprep.mubr.f32.mxu0 0.0
    %285 = vmatmul.mubr.f32.gmra.mrb[0].mxu0 %v140
    %v286 = vpop.f32.mrb[0].mxu0
    %v287 = vadd.f32 %v93, %v286
    %v288 = vpop.f32.mrb[0].mxu0
    %v289 = vadd.f32 %v97, %v288
    %290 = vmatprep.mubr.f32.mxu0 0.0
    %291 = vmatmul.mubr.f32.gmra.mrb[0].mxu0 %v143
    %v292 = vpop.f32.mrb[0].mxu0
    %v293 = vadd.f32 %v93, %v292
    %v294 = vpop.f32.mrb[0].mxu0
    %v295 = vadd.f32 %v97, %v294
    %296 = vmatprep.mubr.f32.mxu0 0.0
    %297 = vmatmul.mubr.f32.gmra.mrb[0].mxu0 %v146
    %v298 = vpop.f32.mrb[0].mxu0
    %v299 = vadd.f32 %v93, %v298
    %v300 = vpop.f32.mrb[0].mxu0
    %v301 = vadd.f32 %v97, %v300
    %302 = vmatprep.mubr.f32.mxu0 0.0
    %303 = vmatmul.mubr.f32.gmra.mrb[0].mxu0 %v149
    %v304 = vpop.f32.mrb[0].mxu0
    %v305 = vadd.f32 %v93, %v304
    %v306 = vpop.f32.mrb[0].mxu0
    %v307 = vadd.f32 %v97, %v306
    %308 = vmatprep.mubr.f32.mxu0 0.0
    %309 = vmatmul.mubr.f32.gmra.mrb[0].mxu0 %v152
    %v310 = vpop.f32.mrb[0].mxu0
    %v311 = vadd.f32 %v93, %v310
    %v312 = vpop.f32.mrb[0].mxu0
    %v313 = vadd.f32 %v97, %v312
    %314 = vdwg.mxu0
    %315 = vmatprep.subr.mxu0 0.0
    %316 = vmatpush1.msra.mxu0 %v78
    %317 = vmatprep.subr.mxu0 0.0
    %318 = vmatpush1.msra.mxu0 %v81
    %319 = vmatprep.subr.mxu0 0.0
    %320 = vmatpush1.msra.mxu0 %v84
    %321 = vmatprep.subr.mxu0 0.0
    %322 = vmatpush1.msra.mxu0 %v87
    %323 = vmatprep.subr.mxu0 0.0
    %324 = vmatpush1.msra.mxu0 0.0
    %325 = vmatprep.subr.mxu0 0.0
    %326 = vmatpush1.msra.mxu0 0.0
    %327 = vmatprep.subr.mxu0 0.0
    %328 = vmatpush1.msra.mxu0 0.0
    %329 = vmatprep.subr.mxu0 0.0
    %330 = vmatpush1.msra.mxu0 0.0
    %331 = vmatprep.subr.mxu0 0.0
    %332 = vmatpush1.msra.mxu0 0.0
    %333 = vmatprep.subr.mxu0 0.0
    %334 = vmatpush1.msra.mxu0 0.0
    %335 = vmatprep.subr.mxu0 0.0
    %336 = vmatpush1.msra.mxu0 0.0
    %337 = vmatprep.subr.mxu0 0.0
    %338 = vmatpush1.msra.mxu0 0.0
    %339 = vmatprep.subr.mxu0 0.0
    %340 = vmatpush1.msra.mxu0 0.0
    %341 = vmatprep.subr.mxu0 0.0
    %342 = vmatpush1.msra.mxu0 0.0
    %343 = vmatprep.subr.mxu0 0.0
    %344 = vmatpush1.msra.mxu0 0.0
    %345 = vmatprep.subr.mxu0 0.0
    %346 = vmatpush1.msra.mxu0 0.0
    %347 = vmatprep.subr.mxu0 0.0
    %348 = vmatpush1.msra.mxu0 0.0
    %349 = vmatprep.subr.mxu0 0.0
    %350 = vmatpush1.msra.mxu0 0.0
    %351 = vmatprep.subr.mxu0 0.0
    %352 = vmatpush1.msra.mxu0 0.0
    %353 = vmatprep.subr.mxu0 0.0
    %354 = vmatpush1.msra.mxu0 0.0
    %355 = vmatprep.subr.mxu0 0.0
    %356 = vmatpush1.msra.mxu0 0.0
    %357 = vmatprep.subr.mxu0 0.0
    %358 = vmatpush1.msra.mxu0 0.0
    %359 = vmatprep.subr.mxu0 0.0
    %360 = vmatpush1.msra.mxu0 0.0
    %361 = vmatprep.subr.mxu0 0.0
    %362 = vmatpush1.msra.mxu0 0.0
    %363 = vmatprep.subr.mxu0 0.0
    %364 = vmatpush1.msra.mxu0 0.0
    %365 = vmatprep.subr.mxu0 0.0
    %366 = vmatpush1.msra.mxu0 0.0
    %367 = vmatprep.subr.mxu0 0.0
    %368 = vmatpush1.msra.mxu0 0.0
    %369 = vmatprep.subr.mxu0 0.0
    %370 = vmatpush1.msra.mxu0 0.0
    %371 = vmatprep.subr.mxu0 0.0
    %372 = vmatpush1.msra.mxu0 0.0
    %373 = vmatprep.subr.mxu0 0.0
    %374 = vmatpush1.msra.mxu0 0.0
    %375 = vmatprep.subr.mxu0 0.0
    %376 = vmatpush1.msra.mxu0 0.0
    %377 = vmatprep.subr.mxu0 0.0
    %378 = vmatpush1.msra.mxu0 0.0
    %379 = vmatprep.mubr.f32.mxu0 0.0
    %380 = vmatmul.mubr.f32.gmra.mrb[0].mxu0 %v107
    %v381 = vpop.f32.mrb[0].mxu0
    %v382 = vadd.f32 %v101, %v381
    %v383 = vpop.f32.mrb[0].mxu0
    %384 = vmatprep.mubr.f32.mxu0 0.0
    %385 = vmatmul.mubr.f32.gmra.mrb[0].mxu0 %v110
    %v386 = vpop.f32.mrb[0].mxu0
    %v387 = vadd.f32 %v101, %v386
    %v388 = vpop.f32.mrb[0].mxu0
    %389 = vmatprep.mubr.f32.mxu0 0.0
    %390 = vmatmul.mubr.f32.gmra.mrb[0].mxu0 %v113
    %v391 = vpop.f32.mrb[0].mxu0
    %v392 = vadd.f32 %v101, %v391
    %v393 = vpop.f32.mrb[0].mxu0
    %394 = vmatprep.mubr.f32.mxu0 0.0
    %395 = vmatmul.mubr.f32.gmra.mrb[0].mxu0 %v116
    %v396 = vpop.f32.mrb[0].mxu0
    %v397 = vadd.f32 %v101, %v396
    %v398 = vpop.f32.mrb[0].mxu0
    %399 = vmatprep.mubr.f32.mxu0 0.0
    %400 = vmatmul.mubr.f32.gmra.mrb[0].mxu0 %v119
    %v401 = vpop.f32.mrb[0].mxu0
    %v402 = vadd.f32 %v101, %v401
    %v403 = vpop.f32.mrb[0].mxu0
    %404 = vmatprep.mubr.f32.mxu0 0.0
    %405 = vmatmul.mubr.f32.gmra.mrb[0].mxu0 %v122
    %v406 = vpop.f32.mrb[0].mxu0
    %v407 = vadd.f32 %v101, %v406
    %v408 = vpop.f32.mrb[0].mxu0
    %409 = vmatprep.mubr.f32.mxu0 0.0
    %410 = vmatmul.mubr.f32.gmra.mrb[0].mxu0 %v125
    %v411 = vpop.f32.mrb[0].mxu0
    %v412 = vadd.f32 %v101, %v411
    %v413 = vpop.f32.mrb[0].mxu0
    %414 = vmatprep.mubr.f32.mxu0 0.0
    %415 = vmatmul.mubr.f32.gmra.mrb[0].mxu0 %v128
    %v416 = vpop.f32.mrb[0].mxu0
    %v417 = vadd.f32 %v101, %v416
    %v418 = vpop.f32.mrb[0].mxu0
    %419 = vmatprep.mubr.f32.mxu0 0.0
    %420 = vmatmul.mubr.f32.gmra.mrb[0].mxu0 %v131
    %v421 = vpop.f32.mrb[0].mxu0
    %v422 = vadd.f32 %v101, %v421
    %v423 = vpop.f32.mrb[0].mxu0
    %424 = vmatprep.mubr.f32.mxu0 0.0
    %425 = vmatmul.mubr.f32.gmra.mrb[0].mxu0 %v134
    %v426 = vpop.f32.mrb[0].mxu0
    %v427 = vadd.f32 %v101, %v426
    %v428 = vpop.f32.mrb[0].mxu0
    %429 = vmatprep.mubr.f32.mxu0 0.0
    %430 = vmatmul.mubr.f32.gmra.mrb[0].mxu0 %v137
    %v431 = vpop.f32.mrb[0].mxu0
    %v432 = vadd.f32 %v101, %v431
    %v433 = vpop.f32.mrb[0].mxu0
    %434 = vmatprep.mubr.f32.mxu0 0.0
    %435 = vmatmul.mubr.f32.gmra.mrb[0].mxu0 %v140
    %v436 = vpop.f32.mrb[0].mxu0
    %v437 = vadd.f32 %v101, %v436
    %v438 = vpop.f32.mrb[0].mxu0
    %439 = vmatprep.mubr.f32.mxu0 0.0
    %440 = vmatmul.mubr.f32.gmra.mrb[0].mxu0 %v143
    %v441 = vpop.f32.mrb[0].mxu0
    %v442 = vadd.f32 %v101, %v441
    %v443 = vpop.f32.mrb[0].mxu0
    %444 = vmatprep.mubr.f32.mxu0 0.0
    %445 = vmatmul.mubr.f32.gmra.mrb[0].mxu0 %v146
    %v446 = vpop.f32.mrb[0].mxu0
    %v447 = vadd.f32 %v101, %v446
    %v448 = vpop.f32.mrb[0].mxu0
    %449 = vmatprep.mubr.f32.mxu0 0.0
    %450 = vmatmul.mubr.f32.gmra.mrb[0].mxu0 %v149
    %v451 = vpop.f32.mrb[0].mxu0
    %v452 = vadd.f32 %v101, %v451
    %v453 = vpop.f32.mrb[0].mxu0
    %454 = vmatprep.mubr.f32.mxu0 0.0
    %455 = vmatmul.mubr.f32.gmra.mrb[0].mxu0 %v152
    %v456 = vpop.f32.mrb[0].mxu0
    %v457 = vadd.f32 %v101, %v456
    %v458 = vpop.f32.mrb[0].mxu0
    %459 = vdwg.mxu0
    %460 = vst [vmem:[#allocation3] sm:$0xff] %v221
    %461 = vst [vmem:[#allocation3 + $0x8] sm:$0xff] %v223
    %462 = vst [vmem:[#allocation3 + $0x10] sm:$0xff] %v382
    %463 = vst [vmem:[#allocation3 + $0x18] sm:$0xff] %v227
    %464 = vst [vmem:[#allocation3 + $0x20] sm:$0xff] %v229
    %465 = vst [vmem:[#allocation3 + $0x28] sm:$0xff] %v387
    %466 = vst [vmem:[#allocation3 + $0x30] sm:$0xff] %v233
    %467 = vst [vmem:[#allocation3 + $0x38] sm:$0xff] %v235
    %468 = vst [vmem:[#allocation3 + $0x40] sm:$0xff] %v392
    %469 = vst [vmem:[#allocation3 + $0x48] sm:$0xff] %v239
    %470 = vst [vmem:[#allocation3 + $0x50] sm:$0xff] %v241
    %471 = vst [vmem:[#allocation3 + $0x58] sm:$0xff] %v397
    %472 = vst [vmem:[#allocation3 + $0x60] sm:$0xff] %v245
    %473 = vst [vmem:[#allocation3 + $0x68] sm:$0xff] %v247
    %474 = vst [vmem:[#allocation3 + $0x70] sm:$0xff] %v402
    %475 = vst [vmem:[#allocation3 + $0x78] sm:$0xff] %v251
    %476 = vst [vmem:[#allocation3 + $0x80] sm:$0xff] %v253
    %477 = vst [vmem:[#allocation3 + $0x88] sm:$0xff] %v407
    %478 = vst [vmem:[#allocation3 + $0x90] sm:$0xff] %v257
    %479 = vst [vmem:[#allocation3 + $0x98] sm:$0xff] %v259
    %480 = vst [vmem:[#allocation3 + $0xa0] sm:$0xff] %v412
    %481 = vst [vmem:[#allocation3 + $0xa8] sm:$0xff] %v263
    %482 = vst [vmem:[#allocation3 + $0xb0] sm:$0xff] %v265
    %483 = vst [vmem:[#allocation3 + $0xb8] sm:$0xff] %v417
    %484 = vst [vmem:[#allocation3 + $0xc0] sm:$0xff] %v269
    %485 = vst [vmem:[#allocation3 + $0xc8] sm:$0xff] %v271
    %486 = vst [vmem:[#allocation3 + $0xd0] sm:$0xff] %v422
    %487 = vst [vmem:[#allocation3 + $0xd8] sm:$0xff] %v275
    %488 = vst [vmem:[#allocation3 + $0xe0] sm:$0xff] %v277
    %489 = vst [vmem:[#allocation3 + $0xe8] sm:$0xff] %v427
    %490 = vst [vmem:[#allocation3 + $0xf0] sm:$0xff] %v281
    %491 = vst [vmem:[#allocation3 + $0xf8] sm:$0xff] %v283
    %492 = vst [vmem:[#allocation3 + $0x100] sm:$0xff] %v432
    %493 = vst [vmem:[#allocation3 + $0x108] sm:$0xff] %v287
    %494 = vst [vmem:[#allocation3 + $0x110] sm:$0xff] %v289
    %495 = vst [vmem:[#allocation3 + $0x118] sm:$0xff] %v437
    %496 = vst [vmem:[#allocation3 + $0x120] sm:$0xff] %v293
    %497 = vst [vmem:[#allocation3 + $0x128] sm:$0xff] %v295
    %498 = vst [vmem:[#allocation3 + $0x130] sm:$0xff] %v442
    %499 = vst [vmem:[#allocation3 + $0x138] sm:$0xff] %v299
    %500 = vst [vmem:[#allocation3 + $0x140] sm:$0xff] %v301
    %501 = vst [vmem:[#allocation3 + $0x148] sm:$0xff] %v447
    %502 = vst [vmem:[#allocation3 + $0x150] sm:$0xff] %v305
    %503 = vst [vmem:[#allocation3 + $0x158] sm:$0xff] %v307
    %504 = vst [vmem:[#allocation3 + $0x160] sm:$0xff] %v452
    %505 = vst [vmem:[#allocation3 + $0x168] sm:$0xff] %v311
    %506 = vst [vmem:[#allocation3 + $0x170] sm:$0xff] %v313
    %507 = vst [vmem:[#allocation3 + $0x178] sm:$0xff] %v457
    %v508 = vld [vmem:[#allocation8] sm:$0xff]
    %v509 = vld [vmem:[#allocation8 + $0x8] sm:$0xff]
    %v510 = vld [vmem:[#allocation8 + $0x10] sm:$0xff]
    %v511 = vld [vmem:[#allocation8 + $0x18] sm:$0xff]
    %v512 = vld [vmem:[#allocation8 + $0x20] sm:$0xff]
    %v513 = vld [vmem:[#allocation8 + $0x28] sm:$0xff]
    %v514 = vld [vmem:[#allocation8 + $0x30] sm:$0xff]
    %v515 = vld [vmem:[#allocation8 + $0x38] sm:$0xff]
    %v516 = vld [vmem:[#allocation8 + $0x40] sm:$0xff]
    %v517 = vld [vmem:[#allocation8 + $0x48] sm:$0xff]
    %v518 = vld [vmem:[#allocation8 + $0x50] sm:$0xff]
    %v519 = vld [vmem:[#allocation8 + $0x58] sm:$0xff]
    %v520 = vld [vmem:[#allocation8 + $0x60] sm:$0xff]
    %v521 = vld [vmem:[#allocation8 + $0x68] sm:$0xff]
    %v522 = vld [vmem:[#allocation8 + $0x70] sm:$0xff]
    %v523 = vld [vmem:[#allocation8 + $0x78] sm:$0xff]
    %v524 = vld [vmem:[#allocation8 + $0x80] sm:$0xff]
    %v525 = vld [vmem:[#allocation8 + $0x88] sm:$0xff]
    %v526 = vld [vmem:[#allocation8 + $0x90] sm:$0xff]
    %v527 = vld [vmem:[#allocation8 + $0x98] sm:$0xff]
    %v528 = vld [vmem:[#allocation8 + $0xa0] sm:$0xff]
    %v529 = vld [vmem:[#allocation8 + $0xa8] sm:$0xff]
    %v530 = vld [vmem:[#allocation8 + $0xb0] sm:$0xff]
    %v531 = vld [vmem:[#allocation8 + $0xb8] sm:$0xff]
    %v532 = vld [vmem:[#allocation8 + $0xc0] sm:$0xff]
    %v533 = vld [vmem:[#allocation8 + $0xc8] sm:$0xff]
    %v534 = vld [vmem:[#allocation8 + $0xd0] sm:$0xff]
    %v535 = vld [vmem:[#allocation8 + $0xd8] sm:$0xff]
    %v536 = vld [vmem:[#allocation8 + $0xe0] sm:$0xff]
    %v537 = vld [vmem:[#allocation8 + $0xe8] sm:$0xff]
    %v538 = vld [vmem:[#allocation8 + $0xf0] sm:$0xff]
    %v539 = vld [vmem:[#allocation8 + $0xf8] sm:$0xff]
    %v540 = vld [vmem:[#allocation8 + $0x100] sm:$0xff]
    %v541 = vld [vmem:[#allocation8 + $0x108] sm:$0xff]
    %v542 = vld [vmem:[#allocation8 + $0x110] sm:$0xff]
    %v543 = vld [vmem:[#allocation8 + $0x118] sm:$0xff]
    %v544 = vld [vmem:[#allocation8 + $0x120] sm:$0xff]
    %v545 = vld [vmem:[#allocation8 + $0x128] sm:$0xff]
    %v546 = vld [vmem:[#allocation8 + $0x130] sm:$0xff]
    %v547 = vld [vmem:[#allocation8 + $0x138] sm:$0xff]
    %v548 = vld [vmem:[#allocation8 + $0x140] sm:$0xff]
    %v549 = vld [vmem:[#allocation8 + $0x148] sm:$0xff]
    %v550 = vld [vmem:[#allocation8 + $0x150] sm:$0xff]
    %v551 = vld [vmem:[#allocation8 + $0x158] sm:$0xff]
    %v552 = vld [vmem:[#allocation8 + $0x160] sm:$0xff]
    %v553 = vld [vmem:[#allocation8 + $0x168] sm:$0xff]
    %v554 = vld [vmem:[#allocation8 + $0x170] sm:$0xff]
    %v555 = vld [vmem:[#allocation8 + $0x178] sm:$0xff]
    %v556 = vld [vmem:[%s4] sm:$0x1]
    %v557 = vld [vmem:[#allocation2] sm:$0xff]
    %s558 = smul.u32 0, 3
    %s559 = smul.addr %s558, 8
    %s560 = scalar_lea.vmem [#allocation3], %s559
    %v561 = vld [vmem:[%s560] sm:$0xff]
    %v562 = vld [vmem:[%s560 + $0x8] sm:$0xff]
    %v563 = vld [vmem:[%s560 + $0x10] sm:$0xff]
    %564 = vmatprep.subr.mxu0 %v509
    %565 = vmatpush1.msra.mxu0 %v508
    %566 = vmatprep.subr.mxu0 %v512
    %567 = vmatpush1.msra.mxu0 %v511
    %568 = vmatprep.subr.mxu0 %v515
    %569 = vmatpush1.msra.mxu0 %v514
    %570 = vmatprep.subr.mxu0 %v518
    %571 = vmatpush1.msra.mxu0 %v517
    %572 = vmatprep.subr.mxu0 %v521
    %573 = vmatpush1.msra.mxu0 %v520
    %574 = vmatprep.subr.mxu0 %v524
    %575 = vmatpush1.msra.mxu0 %v523
    %576 = vmatprep.subr.mxu0 %v527
    %577 = vmatpush1.msra.mxu0 %v526
    %578 = vmatprep.subr.mxu0 %v530
    %579 = vmatpush1.msra.mxu0 %v529
    %580 = vmatprep.subr.mxu0 %v533
    %581 = vmatpush1.msra.mxu0 %v532
    %582 = vmatprep.subr.mxu0 %v536
    %583 = vmatpush1.msra.mxu0 %v535
    %584 = vmatprep.subr.mxu0 %v539
    %585 = vmatpush1.msra.mxu0 %v538
    %586 = vmatprep.subr.mxu0 %v542
    %587 = vmatpush1.msra.mxu0 %v541
    %588 = vmatprep.subr.mxu0 %v545
    %589 = vmatpush1.msra.mxu0 %v544
    %590 = vmatprep.subr.mxu0 %v548
    %591 = vmatpush1.msra.mxu0 %v547
    %592 = vmatprep.subr.mxu0 %v551
    %593 = vmatpush1.msra.mxu0 %v550
    %594 = vmatprep.subr.mxu0 %v554
    %595 = vmatpush1.msra.mxu0 %v553
    %596 = vmatprep.subr.mxu0 0.0
    %597 = vmatpush1.msra.mxu0 0.0
    %598 = vmatprep.subr.mxu0 0.0
    %599 = vmatpush1.msra.mxu0 0.0
    %600 = vmatprep.subr.mxu0 0.0
    %601 = vmatpush1.msra.mxu0 0.0
    %602 = vmatprep.subr.mxu0 0.0
    %603 = vmatpush1.msra.mxu0 0.0
    %604 = vmatprep.subr.mxu0 0.0
    %605 = vmatpush1.msra.mxu0 0.0
    %606 = vmatprep.subr.mxu0 0.0
    %607 = vmatpush1.msra.mxu0 0.0
    %608 = vmatprep.subr.mxu0 0.0
    %609 = vmatpush1.msra.mxu0 0.0
    %610 = vmatprep.subr.mxu0 0.0
    %611 = vmatpush1.msra.mxu0 0.0
    %612 = vmatprep.subr.mxu0 0.0
    %613 = vmatpush1.msra.mxu0 0.0
    %614 = vmatprep.subr.mxu0 0.0
    %615 = vmatpush1.msra.mxu0 0.0
    %616 = vmatprep.subr.mxu0 0.0
    %617 = vmatpush1.msra.mxu0 0.0
    %618 = vmatprep.subr.mxu0 0.0
    %619 = vmatpush1.msra.mxu0 0.0
    %620 = vmatprep.subr.mxu0 0.0
    %621 = vmatpush1.msra.mxu0 0.0
    %622 = vmatprep.subr.mxu0 0.0
    %623 = vmatpush1.msra.mxu0 0.0
    %624 = vmatprep.subr.mxu0 0.0
    %625 = vmatpush1.msra.mxu0 0.0
    %626 = vmatprep.subr.mxu0 0.0
    %627 = vmatpush1.msra.mxu0 0.0
    %628 = vmatprep.mubr.f32.mxu0 0.0
    %629 = vmatmul.mubr.f32.gmra.mrb[0].mxu0 %v557
    %v630 = vpop.f32.mrb[0].mxu0
    %v631 = vadd.f32 0.0, %v630
    %v632 = vpop.f32.mrb[0].mxu0
    %v633 = vadd.f32 0.0, %v632
    %634 = vdwg.mxu0
    %635 = vmatprep.subr.mxu0 0.0
    %636 = vmatpush1.msra.mxu0 %v510
    %637 = vmatprep.subr.mxu0 0.0
    %638 = vmatpush1.msra.mxu0 %v513
    %639 = vmatprep.subr.mxu0 0.0
    %640 = vmatpush1.msra.mxu0 %v516
    %641 = vmatprep.subr.mxu0 0.0
    %642 = vmatpush1.msra.mxu0 %v519
    %643 = vmatprep.subr.mxu0 0.0
    %644 = vmatpush1.msra.mxu0 %v522
    %645 = vmatprep.subr.mxu0 0.0
    %646 = vmatpush1.msra.mxu0 %v525
    %647 = vmatprep.subr.mxu0 0.0
    %648 = vmatpush1.msra.mxu0 %v528
    %649 = vmatprep.subr.mxu0 0.0
    %650 = vmatpush1.msra.mxu0 %v531
    %651 = vmatprep.subr.mxu0 0.0
    %652 = vmatpush1.msra.mxu0 %v534
    %653 = vmatprep.subr.mxu0 0.0
    %654 = vmatpush1.msra.mxu0 %v537
    %655 = vmatprep.subr.mxu0 0.0
    %656 = vmatpush1.msra.mxu0 %v540
    %657 = vmatprep.subr.mxu0 0.0
    %658 = vmatpush1.msra.mxu0 %v543
    %659 = vmatprep.subr.mxu0 0.0
    %660 = vmatpush1.msra.mxu0 %v546
    %661 = vmatprep.subr.mxu0 0.0
    %662 = vmatpush1.msra.mxu0 %v549
    %663 = vmatprep.subr.mxu0 0.0
    %664 = vmatpush1.msra.mxu0 %v552
    %665 = vmatprep.subr.mxu0 0.0
    %666 = vmatpush1.msra.mxu0 %v555
    %667 = vmatprep.subr.mxu0 0.0
    %668 = vmatpush1.msra.mxu0 0.0
    %669 = vmatprep.subr.mxu0 0.0
    %670 = vmatpush1.msra.mxu0 0.0
    %671 = vmatprep.subr.mxu0 0.0
    %672 = vmatpush1.msra.mxu0 0.0
    %673 = vmatprep.subr.mxu0 0.0
    %674 = vmatpush1.msra.mxu0 0.0
    %675 = vmatprep.subr.mxu0 0.0
    %676 = vmatpush1.msra.mxu0 0.0
    %677 = vmatprep.subr.mxu0 0.0
    %678 = vmatpush1.msra.mxu0 0.0
    %679 = vmatprep.subr.mxu0 0.0
    %680 = vmatpush1.msra.mxu0 0.0
    %681 = vmatprep.subr.mxu0 0.0
    %682 = vmatpush1.msra.mxu0 0.0
    %683 = vmatprep.subr.mxu0 0.0
    %684 = vmatpush1.msra.mxu0 0.0
    %685 = vmatprep.subr.mxu0 0.0
    %686 = vmatpush1.msra.mxu0 0.0
    %687 = vmatprep.subr.mxu0 0.0
    %688 = vmatpush1.msra.mxu0 0.0
    %689 = vmatprep.subr.mxu0 0.0
    %690 = vmatpush1.msra.mxu0 0.0
    %691 = vmatprep.subr.mxu0 0.0
    %692 = vmatpush1.msra.mxu0 0.0
    %693 = vmatprep.subr.mxu0 0.0
    %694 = vmatpush1.msra.mxu0 0.0
    %695 = vmatprep.subr.mxu0 0.0
    %696 = vmatpush1.msra.mxu0 0.0
    %697 = vmatprep.subr.mxu0 0.0
    %698 = vmatpush1.msra.mxu0 0.0
    %699 = vmatprep.mubr.f32.mxu0 0.0
    %700 = vmatmul.mubr.f32.gmra.mrb[0].mxu0 %v557
    %v701 = vpop.f32.mrb[0].mxu0
    %v702 = vadd.f32 0.0, %v701
    %v703 = vpop.f32.mrb[0].mxu0
    %704 = vdwg.mxu0
    %v705 = vadd.f32 %v561, %v631
    %v706 = vxor.u32 %v705, 2147483648
    %v707 = vmul.f32 %v706, 1.442695
    %v708 = vpow.pop %v707
    %v709 = vadd.f32 %v708, 1.0
    %v710 = vrcp.pop %v709
    %v711 = vmul.f32 1.0, %v710
    %v712 = vadd.f32 %v562, %v633
    %v713 = vxor.u32 %v712, 2147483648
    %v714 = vmul.f32 %v713, 1.442695
    %v715 = vpow.pop %v714
    %v716 = vadd.f32 %v715, 1.0
    %v717 = vrcp.pop %v716
    %v718 = vmul.f32 1.0, %v717
    %v720 = vlaneseq
    %v721 = vshrl.u32 %v720, 7
    %v722 = vsub.s32 0, %v721
    %v723 = vrot.slane %v556, %v722
    %v725 = vadd.f32 %v702, %v723
    %v726 = vmul.f32 %v711, %v725
    %v727 = vadd.f32 %v563, %v726
    %v728 = vtanh.pop %v727
    %v729 = vsub.f32 1.0, %v718
    %v730 = vmul.f32 %v729, %v728
    %v731 = vmul.f32 %v718, %v557
    %v732 = vadd.f32 %v730, %v731
    %733 = vst [vmem:[#allocation4] sm:$0xff] %v732
    %s734 = smul.u32 1, 3
    %s735 = smul.addr %s734, 8
    %s736 = scalar_lea.vmem [#allocation3], %s735
    %v737 = vld [vmem:[%s736] sm:$0xff]
    %v738 = vld [vmem:[%s736 + $0x8] sm:$0xff]
    %v739 = vld [vmem:[%s736 + $0x10] sm:$0xff]
    %740 = vmatprep.subr.mxu0 %v509
    %741 = vmatpush1.msra.mxu0 %v508
    %742 = vmatprep.subr.mxu0 %v512
    %743 = vmatpush1.msra.mxu0 %v511
    %744 = vmatprep.subr.mxu0 %v515
    %745 = vmatpush1.msra.mxu0 %v514
    %746 = vmatprep.subr.mxu0 %v518
    %747 = vmatpush1.msra.mxu0 %v517
    %748 = vmatprep.subr.mxu0 %v521
    %749 = vmatpush1.msra.mxu0 %v520
    %750 = vmatprep.subr.mxu0 %v524
    %751 = vmatpush1.msra.mxu0 %v523
    %752 = vmatprep.subr.mxu0 %v527
    %753 = vmatpush1.msra.mxu0 %v526
    %754 = vmatprep.subr.mxu0 %v530
    %755 = vmatpush1.msra.mxu0 %v529
    %756 = vmatprep.subr.mxu0 %v533
    %757 = vmatpush1.msra.mxu0 %v532
    %758 = vmatprep.subr.mxu0 %v536
    %759 = vmatpush1.msra.mxu0 %v535
    %760 = vmatprep.subr.mxu0 %v539
    %761 = vmatpush1.msra.mxu0 %v538
    %762 = vmatprep.subr.mxu0 %v542
    %763 = vmatpush1.msra.mxu0 %v541
    %764 = vmatprep.subr.mxu0 %v545
    %765 = vmatpush1.msra.mxu0 %v544
    %766 = vmatprep.subr.mxu0 %v548
    %767 = vmatpush1.msra.mxu0 %v547
    %768 = vmatprep.subr.mxu0 %v551
    %769 = vmatpush1.msra.mxu0 %v550
    %770 = vmatprep.subr.mxu0 %v554
    %771 = vmatpush1.msra.mxu0 %v553
    %772 = vmatprep.subr.mxu0 0.0
    %773 = vmatpush1.msra.mxu0 0.0
    %774 = vmatprep.subr.mxu0 0.0
    %775 = vmatpush1.msra.mxu0 0.0
    %776 = vmatprep.subr.mxu0 0.0
    %777 = vmatpush1.msra.mxu0 0.0
    %778 = vmatprep.subr.mxu0 0.0
    %779 = vmatpush1.msra.mxu0 0.0
    %780 = vmatprep.subr.mxu0 0.0
    %781 = vmatpush1.msra.mxu0 0.0
    %782 = vmatprep.subr.mxu0 0.0
    %783 = vmatpush1.msra.mxu0 0.0
    %784 = vmatprep.subr.mxu0 0.0
    %785 = vmatpush1.msra.mxu0 0.0
    %786 = vmatprep.subr.mxu0 0.0
    %787 = vmatpush1.msra.mxu0 0.0
    %788 = vmatprep.subr.mxu0 0.0
    %789 = vmatpush1.msra.mxu0 0.0
    %790 = vmatprep.subr.mxu0 0.0
    %791 = vmatpush1.msra.mxu0 0.0
    %792 = vmatprep.subr.mxu0 0.0
    %793 = vmatpush1.msra.mxu0 0.0
    %794 = vmatprep.subr.mxu0 0.0
    %795 = vmatpush1.msra.mxu0 0.0
    %796 = vmatprep.subr.mxu0 0.0
    %797 = vmatpush1.msra.mxu0 0.0
    %798 = vmatprep.subr.mxu0 0.0
    %799 = vmatpush1.msra.mxu0 0.0
    %800 = vmatprep.subr.mxu0 0.0
    %801 = vmatpush1.msra.mxu0 0.0
    %802 = vmatprep.subr.mxu0 0.0
    %803 = vmatpush1.msra.mxu0 0.0
    %804 = vmatprep.mubr.f32.mxu0 0.0
    %805 = vmatmul.mubr.f32.gmra.mrb[0].mxu0 %v732
    %v806 = vpop.f32.mrb[0].mxu0
    %v807 = vadd.f32 0.0, %v806
    %v808 = vpop.f32.mrb[0].mxu0
    %v809 = vadd.f32 0.0, %v808
    %810 = vdwg.mxu0
    %811 = vmatprep.subr.mxu0 0.0
    %812 = vmatpush1.msra.mxu0 %v510
    %813 = vmatprep.subr.mxu0 0.0
    %814 = vmatpush1.msra.mxu0 %v513
    %815 = vmatprep.subr.mxu0 0.0
    %816 = vmatpush1.msra.mxu0 %v516
    %817 = vmatprep.subr.mxu0 0.0
    %818 = vmatpush1.msra.mxu0 %v519
    %819 = vmatprep.subr.mxu0 0.0
    %820 = vmatpush1.msra.mxu0 %v522
    %821 = vmatprep.subr.mxu0 0.0
    %822 = vmatpush1.msra.mxu0 %v525
    %823 = vmatprep.subr.mxu0 0.0
    %824 = vmatpush1.msra.mxu0 %v528
    %825 = vmatprep.subr.mxu0 0.0
    %826 = vmatpush1.msra.mxu0 %v531
    %827 = vmatprep.subr.mxu0 0.0
    %828 = vmatpush1.msra.mxu0 %v534
    %829 = vmatprep.subr.mxu0 0.0
    %830 = vmatpush1.msra.mxu0 %v537
    %831 = vmatprep.subr.mxu0 0.0
    %832 = vmatpush1.msra.mxu0 %v540
    %833 = vmatprep.subr.mxu0 0.0
    %834 = vmatpush1.msra.mxu0 %v543
    %835 = vmatprep.subr.mxu0 0.0
    %836 = vmatpush1.msra.mxu0 %v546
    %837 = vmatprep.subr.mxu0 0.0
    %838 = vmatpush1.msra.mxu0 %v549
    %839 = vmatprep.subr.mxu0 0.0
    %840 = vmatpush1.msra.mxu0 %v552
    %841 = vmatprep.subr.mxu0 0.0
    %842 = vmatpush1.msra.mxu0 %v555
    %843 = vmatprep.subr.mxu0 0.0
    %844 = vmatpush1.msra.mxu0 0.0
    %845 = vmatprep.subr.mxu0 0.0
    %846 = vmatpush1.msra.mxu0 0.0
    %847 = vmatprep.subr.mxu0 0.0
    %848 = vmatpush1.msra.mxu0 0.0
    %849 = vmatprep.subr.mxu0 0.0
    %850 = vmatpush1.msra.mxu0 0.0
    %851 = vmatprep.subr.mxu0 0.0
    %852 = vmatpush1.msra.mxu0 0.0
    %853 = vmatprep.subr.mxu0 0.0
    %854 = vmatpush1.msra.mxu0 0.0
    %855 = vmatprep.subr.mxu0 0.0
    %856 = vmatpush1.msra.mxu0 0.0
    %857 = vmatprep.subr.mxu0 0.0
    %858 = vmatpush1.msra.mxu0 0.0
    %859 = vmatprep.subr.mxu0 0.0
    %860 = vmatpush1.msra.mxu0 0.0
    %861 = vmatprep.subr.mxu0 0.0
    %862 = vmatpush1.msra.mxu0 0.0
    %863 = vmatprep.subr.mxu0 0.0
    %864 = vmatpush1.msra.mxu0 0.0
    %865 = vmatprep.subr.mxu0 0.0
    %866 = vmatpush1.msra.mxu0 0.0
    %867 = vmatprep.subr.mxu0 0.0
    %868 = vmatpush1.msra.mxu0 0.0
    %869 = vmatprep.subr.mxu0 0.0
    %870 = vmatpush1.msra.mxu0 0.0
    %871 = vmatprep.subr.mxu0 0.0
    %872 = vmatpush1.msra.mxu0 0.0
    %873 = vmatprep.subr.mxu0 0.0
    %874 = vmatpush1.msra.mxu0 0.0
    %875 = vmatprep.mubr.f32.mxu0 0.0
    %876 = vmatmul.mubr.f32.gmra.mrb[0].mxu0 %v732
    %v877 = vpop.f32.mrb[0].mxu0
    %v878 = vadd.f32 0.0, %v877
    %v879 = vpop.f32.mrb[0].mxu0
    %880 = vdwg.mxu0
    %v881 = vadd.f32 %v737, %v807
    %v882 = vxor.u32 %v881, 2147483648
    %v883 = vmul.f32 %v882, 1.442695
    %v884 = vpow.pop %v883
    %v885 = vadd.f32 %v884, 1.0
    %v886 = vrcp.pop %v885
    %v887 = vmul.f32 1.0, %v886
    %v888 = vadd.f32 %v738, %v809
    %v889 = vxor.u32 %v888, 2147483648
    %v890 = vmul.f32 %v889, 1.442695
    %v891 = vpow.pop %v890
    %v892 = vadd.f32 %v891, 1.0
    %v893 = vrcp.pop %v892
    %v894 = vmul.f32 1.0, %v893
    %v895 = vadd.f32 %v878, %v723
    %v896 = vmul.f32 %v887, %v895
    %v897 = vadd.f32 %v739, %v896
    %v898 = vtanh.pop %v897
    %v899 = vsub.f32 1.0, %v894
    %v900 = vmul.f32 %v899, %v898
    %v901 = vmul.f32 %v894, %v732
    %v902 = vadd.f32 %v900, %v901
    %s903 = scalar_lea.vmem [#allocation4], 8
    %904 = vst [vmem:[%s903] sm:$0xff] %v902
    %s905 = smul.u32 2, 3
    %s906 = smul.addr %s905, 8
    %s907 = scalar_lea.vmem [#allocation3], %s906
    %v908 = vld [vmem:[%s907] sm:$0xff]
    %v909 = vld [vmem:[%s907 + $0x8] sm:$0xff]
    %v910 = vld [vmem:[%s907 + $0x10] sm:$0xff]
    %911 = vmatprep.subr.mxu0 %v509
    %912 = vmatpush1.msra.mxu0 %v508
    %913 = vmatprep.subr.mxu0 %v512
    %914 = vmatpush1.msra.mxu0 %v511
    %915 = vmatprep.subr.mxu0 %v515
    %916 = vmatpush1.msra.mxu0 %v514
    %917 = vmatprep.subr.mxu0 %v518
    %918 = vmatpush1.msra.mxu0 %v517
    %919 = vmatprep.subr.mxu0 %v521
    %920 = vmatpush1.msra.mxu0 %v520
    %921 = vmatprep.subr.mxu0 %v524
    %922 = vmatpush1.msra.mxu0 %v523
    %923 = vmatprep.subr.mxu0 %v527
    %924 = vmatpush1.msra.mxu0 %v526
    %925 = vmatprep.subr.mxu0 %v530
    %926 = vmatpush1.msra.mxu0 %v529
    %927 = vmatprep.subr.mxu0 %v533
    %928 = vmatpush1.msra.mxu0 %v532
    %929 = vmatprep.subr.mxu0 %v536
    %930 = vmatpush1.msra.mxu0 %v535
    %931 = vmatprep.subr.mxu0 %v539
    %932 = vmatpush1.msra.mxu0 %v538
    %933 = vmatprep.subr.mxu0 %v542
    %934 = vmatpush1.msra.mxu0 %v541
    %935 = vmatprep.subr.mxu0 %v545
    %936 = vmatpush1.msra.mxu0 %v544
    %937 = vmatprep.subr.mxu0 %v548
    %938 = vmatpush1.msra.mxu0 %v547
    %939 = vmatprep.subr.mxu0 %v551
    %940 = vmatpush1.msra.mxu0 %v550
    %941 = vmatprep.subr.mxu0 %v554
    %942 = vmatpush1.msra.mxu0 %v553
    %943 = vmatprep.subr.mxu0 0.0
    %944 = vmatpush1.msra.mxu0 0.0
    %945 = vmatprep.subr.mxu0 0.0
    %946 = vmatpush1.msra.mxu0 0.0
    %947 = vmatprep.subr.mxu0 0.0
    %948 = vmatpush1.msra.mxu0 0.0
    %949 = vmatprep.subr.mxu0 0.0
    %950 = vmatpush1.msra.mxu0 0.0
    %951 = vmatprep.subr.mxu0 0.0
    %952 = vmatpush1.msra.mxu0 0.0
    %953 = vmatprep.subr.mxu0 0.0
    %954 = vmatpush1.msra.mxu0 0.0
    %955 = vmatprep.subr.mxu0 0.0
    %956 = vmatpush1.msra.mxu0 0.0
    %957 = vmatprep.subr.mxu0 0.0
    %958 = vmatpush1.msra.mxu0 0.0
    %959 = vmatprep.subr.mxu0 0.0
    %960 = vmatpush1.msra.mxu0 0.0
    %961 = vmatprep.subr.mxu0 0.0
    %962 = vmatpush1.msra.mxu0 0.0
    %963 = vmatprep.subr.mxu0 0.0
    %964 = vmatpush1.msra.mxu0 0.0
    %965 = vmatprep.subr.mxu0 0.0
    %966 = vmatpush1.msra.mxu0 0.0
    %967 = vmatprep.subr.mxu0 0.0
    %968 = vmatpush1.msra.mxu0 0.0
    %969 = vmatprep.subr.mxu0 0.0
    %970 = vmatpush1.msra.mxu0 0.0
    %971 = vmatprep.subr.mxu0 0.0
    %972 = vmatpush1.msra.mxu0 0.0
    %973 = vmatprep.subr.mxu0 0.0
    %974 = vmatpush1.msra.mxu0 0.0
    %975 = vmatprep.mubr.f32.mxu0 0.0
    %976 = vmatmul.mubr.f32.gmra.mrb[0].mxu0 %v902
    %v977 = vpop.f32.mrb[0].mxu0
    %v978 = vadd.f32 0.0, %v977
    %v979 = vpop.f32.mrb[0].mxu0
    %v980 = vadd.f32 0.0, %v979
    %981 = vdwg.mxu0
    %982 = vmatprep.subr.mxu0 0.0
    %983 = vmatpush1.msra.mxu0 %v510
    %984 = vmatprep.subr.mxu0 0.0
    %985 = vmatpush1.msra.mxu0 %v513
    %986 = vmatprep.subr.mxu0 0.0
    %987 = vmatpush1.msra.mxu0 %v516
    %988 = vmatprep.subr.mxu0 0.0
    %989 = vmatpush1.msra.mxu0 %v519
    %990 = vmatprep.subr.mxu0 0.0
    %991 = vmatpush1.msra.mxu0 %v522
    %992 = vmatprep.subr.mxu0 0.0
    %993 = vmatpush1.msra.mxu0 %v525
    %994 = vmatprep.subr.mxu0 0.0
    %995 = vmatpush1.msra.mxu0 %v528
    %996 = vmatprep.subr.mxu0 0.0
    %997 = vmatpush1.msra.mxu0 %v531
    %998 = vmatprep.subr.mxu0 0.0
    %999 = vmatpush1.msra.mxu0 %v534
    %1000 = vmatprep.subr.mxu0 0.0
    %1001 = vmatpush1.msra.mxu0 %v537
    %1002 = vmatprep.subr.mxu0 0.0
    %1003 = vmatpush1.msra.mxu0 %v540
    %1004 = vmatprep.subr.mxu0 0.0
    %1005 = vmatpush1.msra.mxu0 %v543
    %1006 = vmatprep.subr.mxu0 0.0
    %1007 = vmatpush1.msra.mxu0 %v546
    %1008 = vmatprep.subr.mxu0 0.0
    %1009 = vmatpush1.msra.mxu0 %v549
    %1010 = vmatprep.subr.mxu0 0.0
    %1011 = vmatpush1.msra.mxu0 %v552
    %1012 = vmatprep.subr.mxu0 0.0
    %1013 = vmatpush1.msra.mxu0 %v555
    %1014 = vmatprep.subr.mxu0 0.0
    %1015 = vmatpush1.msra.mxu0 0.0
    %1016 = vmatprep.subr.mxu0 0.0
    %1017 = vmatpush1.msra.mxu0 0.0
    %1018 = vmatprep.subr.mxu0 0.0
    %1019 = vmatpush1.msra.mxu0 0.0
    %1020 = vmatprep.subr.mxu0 0.0
    %1021 = vmatpush1.msra.mxu0 0.0
    %1022 = vmatprep.subr.mxu0 0.0
    %1023 = vmatpush1.msra.mxu0 0.0
    %1024 = vmatprep.subr.mxu0 0.0
    %1025 = vmatpush1.msra.mxu0 0.0
    %1026 = vmatprep.subr.mxu0 0.0
    %1027 = vmatpush1.msra.mxu0 0.0
    %1028 = vmatprep.subr.mxu0 0.0
    %1029 = vmatpush1.msra.mxu0 0.0
    %1030 = vmatprep.subr.mxu0 0.0
    %1031 = vmatpush1.msra.mxu0 0.0
    %1032 = vmatprep.subr.mxu0 0.0
    %1033 = vmatpush1.msra.mxu0 0.0
    %1034 = vmatprep.subr.mxu0 0.0
    %1035 = vmatpush1.msra.mxu0 0.0
    %1036 = vmatprep.subr.mxu0 0.0
    %1037 = vmatpush1.msra.mxu0 0.0
    %1038 = vmatprep.subr.mxu0 0.0
    %1039 = vmatpush1.msra.mxu0 0.0
    %1040 = vmatprep.subr.mxu0 0.0
    %1041 = vmatpush1.msra.mxu0 0.0
    %1042 = vmatprep.subr.mxu0 0.0
    %1043 = vmatpush1.msra.mxu0 0.0
    %1044 = vmatprep.subr.mxu0 0.0
    %1045 = vmatpush1.msra.mxu0 0.0
    %1046 = vmatprep.mubr.f32.mxu0 0.0
    %1047 = vmatmul.mubr.f32.gmra.mrb[0].mxu0 %v902
    %v1048 = vpop.f32.mrb[0].mxu0
    %v1049 = vadd.f32 0.0, %v1048
    %v1050 = vpop.f32.mrb[0].mxu0
    %1051 = vdwg.mxu0
    %v1052 = vadd.f32 %v908, %v978
    %v1053 = vxor.u32 %v1052, 2147483648
    %v1054 = vmul.f32 %v1053, 1.442695
    %v1055 = vpow.pop %v1054
    %v1056 = vadd.f32 %v1055, 1.0
    %v1057 = vrcp.pop %v1056
    %v1058 = vmul.f32 1.0, %v1057
    %v1059 = vadd.f32 %v909, %v980
    %v1060 = vxor.u32 %v1059, 2147483648
    %v1061 = vmul.f32 %v1060, 1.442695
    %v1062 = vpow.pop %v1061
    %v1063 = vadd.f32 %v1062, 1.0
    %v1064 = vrcp.pop %v1063
    %v1065 = vmul.f32 1.0, %v1064
    %v1066 = vadd.f32 %v1049, %v723
    %v1067 = vmul.f32 %v1058, %v1066
    %v1068 = vadd.f32 %v910, %v1067
    %v1069 = vtanh.pop %v1068
    %v1070 = vsub.f32 1.0, %v1065
    %v1071 = vmul.f32 %v1070, %v1069
    %v1072 = vmul.f32 %v1065, %v902
    %v1073 = vadd.f32 %v1071, %v1072
    %s1074 = scalar_lea.vmem [#allocation4], 16
    %1075 = vst [vmem:[%s1074] sm:$0xff] %v1073
    %s1076 = smul.u32 3, 3
    %s1077 = smul.addr %s1076, 8
    %s1078 = scalar_lea.vmem [#allocation3], %s1077
    %v1079 = vld [vmem:[%s1078] sm:$0xff]
    %v1080 = vld [vmem:[%s1078 + $0x8] sm:$0xff]
    %v1081 = vld [vmem:[%s1078 + $0x10] sm:$0xff]
    %1082 = vmatprep.subr.mxu0 %v509
    %1083 = vmatpush1.msra.mxu0 %v508
    %1084 = vmatprep.subr.mxu0 %v512
    %1085 = vmatpush1.msra.mxu0 %v511
    %1086 = vmatprep.subr.mxu0 %v515
    %1087 = vmatpush1.msra.mxu0 %v514
    %1088 = vmatprep.subr.mxu0 %v518
    %1089 = vmatpush1.msra.mxu0 %v517
    %1090 = vmatprep.subr.mxu0 %v521
    %1091 = vmatpush1.msra.mxu0 %v520
    %1092 = vmatprep.subr.mxu0 %v524
    %1093 = vmatpush1.msra.mxu0 %v523
    %1094 = vmatprep.subr.mxu0 %v527
    %1095 = vmatpush1.msra.mxu0 %v526
    %1096 = vmatprep.subr.mxu0 %v530
    %1097 = vmatpush1.msra.mxu0 %v529
    %1098 = vmatprep.subr.mxu0 %v533
    %1099 = vmatpush1.msra.mxu0 %v532
    %1100 = vmatprep.subr.mxu0 %v536
    %1101 = vmatpush1.msra.mxu0 %v535
    %1102 = vmatprep.subr.mxu0 %v539
    %1103 = vmatpush1.msra.mxu0 %v538
    %1104 = vmatprep.subr.mxu0 %v542
    %1105 = vmatpush1.msra.mxu0 %v541
    %1106 = vmatprep.subr.mxu0 %v545
    %1107 = vmatpush1.msra.mxu0 %v544
    %1108 = vmatprep.subr.mxu0 %v548
    %1109 = vmatpush1.msra.mxu0 %v547
    %1110 = vmatprep.subr.mxu0 %v551
    %1111 = vmatpush1.msra.mxu0 %v550
    %1112 = vmatprep.subr.mxu0 %v554
    %1113 = vmatpush1.msra.mxu0 %v553
    %1114 = vmatprep.subr.mxu0 0.0
    %1115 = vmatpush1.msra.mxu0 0.0
    %1116 = vmatprep.subr.mxu0 0.0
    %1117 = vmatpush1.msra.mxu0 0.0
    %1118 = vmatprep.subr.mxu0 0.0
    %1119 = vmatpush1.msra.mxu0 0.0
    %1120 = vmatprep.subr.mxu0 0.0
    %1121 = vmatpush1.msra.mxu0 0.0
    %1122 = vmatprep.subr.mxu0 0.0
    %1123 = vmatpush1.msra.mxu0 0.0
    %1124 = vmatprep.subr.mxu0 0.0
    %1125 = vmatpush1.msra.mxu0 0.0
    %1126 = vmatprep.subr.mxu0 0.0
    %1127 = vmatpush1.msra.mxu0 0.0
    %1128 = vmatprep.subr.mxu0 0.0
    %1129 = vmatpush1.msra.mxu0 0.0
    %1130 = vmatprep.subr.mxu0 0.0
    %1131 = vmatpush1.msra.mxu0 0.0
    %1132 = vmatprep.subr.mxu0 0.0
    %1133 = vmatpush1.msra.mxu0 0.0
    %1134 = vmatprep.subr.mxu0 0.0
    %1135 = vmatpush1.msra.mxu0 0.0
    %1136 = vmatprep.subr.mxu0 0.0
    %1137 = vmatpush1.msra.mxu0 0.0
    %1138 = vmatprep.subr.mxu0 0.0
    %1139 = vmatpush1.msra.mxu0 0.0
    %1140 = vmatprep.subr.mxu0 0.0
    %1141 = vmatpush1.msra.mxu0 0.0
    %1142 = vmatprep.subr.mxu0 0.0
    %1143 = vmatpush1.msra.mxu0 0.0
    %1144 = vmatprep.subr.mxu0 0.0
    %1145 = vmatpush1.msra.mxu0 0.0
    %1146 = vmatprep.mubr.f32.mxu0 0.0
    %1147 = vmatmul.mubr.f32.gmra.mrb[0].mxu0 %v1073
    %v1148 = vpop.f32.mrb[0].mxu0
    %v1149 = vadd.f32 0.0, %v1148
    %v1150 = vpop.f32.mrb[0].mxu0
    %v1151 = vadd.f32 0.0, %v1150
    %1152 = vdwg.mxu0
    %1153 = vmatprep.subr.mxu0 0.0
    %1154 = vmatpush1.msra.mxu0 %v510
    %1155 = vmatprep.subr.mxu0 0.0
    %1156 = vmatpush1.msra.mxu0 %v513
    %1157 = vmatprep.subr.mxu0 0.0
    %1158 = vmatpush1.msra.mxu0 %v516
    %1159 = vmatprep.subr.mxu0 0.0
    %1160 = vmatpush1.msra.mxu0 %v519
    %1161 = vmatprep.subr.mxu0 0.0
    %1162 = vmatpush1.msra.mxu0 %v522
    %1163 = vmatprep.subr.mxu0 0.0
    %1164 = vmatpush1.msra.mxu0 %v525
    %1165 = vmatprep.subr.mxu0 0.0
    %1166 = vmatpush1.msra.mxu0 %v528
    %1167 = vmatprep.subr.mxu0 0.0
    %1168 = vmatpush1.msra.mxu0 %v531
    %1169 = vmatprep.subr.mxu0 0.0
    %1170 = vmatpush1.msra.mxu0 %v534
    %1171 = vmatprep.subr.mxu0 0.0
    %1172 = vmatpush1.msra.mxu0 %v537
    %1173 = vmatprep.subr.mxu0 0.0
    %1174 = vmatpush1.msra.mxu0 %v540
    %1175 = vmatprep.subr.mxu0 0.0
    %1176 = vmatpush1.msra.mxu0 %v543
    %1177 = vmatprep.subr.mxu0 0.0
    %1178 = vmatpush1.msra.mxu0 %v546
    %1179 = vmatprep.subr.mxu0 0.0
    %1180 = vmatpush1.msra.mxu0 %v549
    %1181 = vmatprep.subr.mxu0 0.0
    %1182 = vmatpush1.msra.mxu0 %v552
    %1183 = vmatprep.subr.mxu0 0.0
    %1184 = vmatpush1.msra.mxu0 %v555
    %1185 = vmatprep.subr.mxu0 0.0
    %1186 = vmatpush1.msra.mxu0 0.0
    %1187 = vmatprep.subr.mxu0 0.0
    %1188 = vmatpush1.msra.mxu0 0.0
    %1189 = vmatprep.subr.mxu0 0.0
    %1190 = vmatpush1.msra.mxu0 0.0
    %1191 = vmatprep.subr.mxu0 0.0
    %1192 = vmatpush1.msra.mxu0 0.0
    %1193 = vmatprep.subr.mxu0 0.0
    %1194 = vmatpush1.msra.mxu0 0.0
    %1195 = vmatprep.subr.mxu0 0.0
    %1196 = vmatpush1.msra.mxu0 0.0
    %1197 = vmatprep.subr.mxu0 0.0
    %1198 = vmatpush1.msra.mxu0 0.0
    %1199 = vmatprep.subr.mxu0 0.0
    %1200 = vmatpush1.msra.mxu0 0.0
    %1201 = vmatprep.subr.mxu0 0.0
    %1202 = vmatpush1.msra.mxu0 0.0
    %1203 = vmatprep.subr.mxu0 0.0
    %1204 = vmatpush1.msra.mxu0 0.0
    %1205 = vmatprep.subr.mxu0 0.0
    %1206 = vmatpush1.msra.mxu0 0.0
    %1207 = vmatprep.subr.mxu0 0.0
    %1208 = vmatpush1.msra.mxu0 0.0
    %1209 = vmatprep.subr.mxu0 0.0
    %1210 = vmatpush1.msra.mxu0 0.0
    %1211 = vmatprep.subr.mxu0 0.0
    %1212 = vmatpush1.msra.mxu0 0.0
    %1213 = vmatprep.subr.mxu0 0.0
    %1214 = vmatpush1.msra.mxu0 0.0
    %1215 = vmatprep.subr.mxu0 0.0
    %1216 = vmatpush1.msra.mxu0 0.0
    %1217 = vmatprep.mubr.f32.mxu0 0.0
    %1218 = vmatmul.mubr.f32.gmra.mrb[0].mxu0 %v1073
    %v1219 = vpop.f32.mrb[0].mxu0
    %v1220 = vadd.f32 0.0, %v1219
    %v1221 = vpop.f32.mrb[0].mxu0
    %1222 = vdwg.mxu0
    %v1223 = vadd.f32 %v1079, %v1149
    %v1224 = vxor.u32 %v1223, 2147483648
    %v1225 = vmul.f32 %v1224, 1.442695
    %v1226 = vpow.pop %v1225
    %v1227 = vadd.f32 %v1226, 1.0
    %v1228 = vrcp.pop %v1227
    %v1229 = vmul.f32 1.0, %v1228
    %v1230 = vadd.f32 %v1080, %v1151
    %v1231 = vxor.u32 %v1230, 2147483648
    %v1232 = vmul.f32 %v1231, 1.442695
    %v1233 = vpow.pop %v1232
    %v1234 = vadd.f32 %v1233, 1.0
    %v1235 = vrcp.pop %v1234
    %v1236 = vmul.f32 1.0, %v1235
    %v1237 = vadd.f32 %v1220, %v723
    %v1238 = vmul.f32 %v1229, %v1237
    %v1239 = vadd.f32 %v1081, %v1238
    %v1240 = vtanh.pop %v1239
    %v1241 = vsub.f32 1.0, %v1236
    %v1242 = vmul.f32 %v1241, %v1240
    %v1243 = vmul.f32 %v1236, %v1073
    %v1244 = vadd.f32 %v1242, %v1243
    %s1245 = scalar_lea.vmem [#allocation4], 24
    %1246 = vst [vmem:[%s1245] sm:$0xff] %v1244
    %s1247 = smul.u32 4, 3
    %s1248 = smul.addr %s1247, 8
    %s1249 = scalar_lea.vmem [#allocation3], %s1248
    %v1250 = vld [vmem:[%s1249] sm:$0xff]
    %v1251 = vld [vmem:[%s1249 + $0x8] sm:$0xff]
    %v1252 = vld [vmem:[%s1249 + $0x10] sm:$0xff]
    %1253 = vmatprep.subr.mxu0 %v509
    %1254 = vmatpush1.msra.mxu0 %v508
    %1255 = vmatprep.subr.mxu0 %v512
    %1256 = vmatpush1.msra.mxu0 %v511
    %1257 = vmatprep.subr.mxu0 %v515
    %1258 = vmatpush1.msra.mxu0 %v514
    %1259 = vmatprep.subr.mxu0 %v518
    %1260 = vmatpush1.msra.mxu0 %v517
    %1261 = vmatprep.subr.mxu0 %v521
    %1262 = vmatpush1.msra.mxu0 %v520
    %1263 = vmatprep.subr.mxu0 %v524
    %1264 = vmatpush1.msra.mxu0 %v523
    %1265 = vmatprep.subr.mxu0 %v527
    %1266 = vmatpush1.msra.mxu0 %v526
    %1267 = vmatprep.subr.mxu0 %v530
    %1268 = vmatpush1.msra.mxu0 %v529
    %1269 = vmatprep.subr.mxu0 %v533
    %1270 = vmatpush1.msra.mxu0 %v532
    %1271 = vmatprep.subr.mxu0 %v536
    %1272 = vmatpush1.msra.mxu0 %v535
    %1273 = vmatprep.subr.mxu0 %v539
    %1274 = vmatpush1.msra.mxu0 %v538
    %1275 = vmatprep.subr.mxu0 %v542
    %1276 = vmatpush1.msra.mxu0 %v541
    %1277 = vmatprep.subr.mxu0 %v545
    %1278 = vmatpush1.msra.mxu0 %v544
    %1279 = vmatprep.subr.mxu0 %v548
    %1280 = vmatpush1.msra.mxu0 %v547
    %1281 = vmatprep.subr.mxu0 %v551
    %1282 = vmatpush1.msra.mxu0 %v550
    %1283 = vmatprep.subr.mxu0 %v554
    %1284 = vmatpush1.msra.mxu0 %v553
    %1285 = vmatprep.subr.mxu0 0.0
    %1286 = vmatpush1.msra.mxu0 0.0
    %1287 = vmatprep.subr.mxu0 0.0
    %1288 = vmatpush1.msra.mxu0 0.0
    %1289 = vmatprep.subr.mxu0 0.0
    %1290 = vmatpush1.msra.mxu0 0.0
    %1291 = vmatprep.subr.mxu0 0.0
    %1292 = vmatpush1.msra.mxu0 0.0
    %1293 = vmatprep.subr.mxu0 0.0
    %1294 = vmatpush1.msra.mxu0 0.0
    %1295 = vmatprep.subr.mxu0 0.0
    %1296 = vmatpush1.msra.mxu0 0.0
    %1297 = vmatprep.subr.mxu0 0.0
    %1298 = vmatpush1.msra.mxu0 0.0
    %1299 = vmatprep.subr.mxu0 0.0
    %1300 = vmatpush1.msra.mxu0 0.0
    %1301 = vmatprep.subr.mxu0 0.0
    %1302 = vmatpush1.msra.mxu0 0.0
    %1303 = vmatprep.subr.mxu0 0.0
    %1304 = vmatpush1.msra.mxu0 0.0
    %1305 = vmatprep.subr.mxu0 0.0
    %1306 = vmatpush1.msra.mxu0 0.0
    %1307 = vmatprep.subr.mxu0 0.0
    %1308 = vmatpush1.msra.mxu0 0.0
    %1309 = vmatprep.subr.mxu0 0.0
    %1310 = vmatpush1.msra.mxu0 0.0
    %1311 = vmatprep.subr.mxu0 0.0
    %1312 = vmatpush1.msra.mxu0 0.0
    %1313 = vmatprep.subr.mxu0 0.0
    %1314 = vmatpush1.msra.mxu0 0.0
    %1315 = vmatprep.subr.mxu0 0.0
    %1316 = vmatpush1.msra.mxu0 0.0
    %1317 = vmatprep.mubr.f32.mxu0 0.0
    %1318 = vmatmul.mubr.f32.gmra.mrb[0].mxu0 %v1244
    %v1319 = vpop.f32.mrb[0].mxu0
    %v1320 = vadd.f32 0.0, %v1319
    %v1321 = vpop.f32.mrb[0].mxu0
    %v1322 = vadd.f32 0.0, %v1321
    %1323 = vdwg.mxu0
    %1324 = vmatprep.subr.mxu0 0.0
    %1325 = vmatpush1.msra.mxu0 %v510
    %1326 = vmatprep.subr.mxu0 0.0
    %1327 = vmatpush1.msra.mxu0 %v513
    %1328 = vmatprep.subr.mxu0 0.0
    %1329 = vmatpush1.msra.mxu0 %v516
    %1330 = vmatprep.subr.mxu0 0.0
    %1331 = vmatpush1.msra.mxu0 %v519
    %1332 = vmatprep.subr.mxu0 0.0
    %1333 = vmatpush1.msra.mxu0 %v522
    %1334 = vmatprep.subr.mxu0 0.0
    %1335 = vmatpush1.msra.mxu0 %v525
    %1336 = vmatprep.subr.mxu0 0.0
    %1337 = vmatpush1.msra.mxu0 %v528
    %1338 = vmatprep.subr.mxu0 0.0
    %1339 = vmatpush1.msra.mxu0 %v531
    %1340 = vmatprep.subr.mxu0 0.0
    %1341 = vmatpush1.msra.mxu0 %v534
    %1342 = vmatprep.subr.mxu0 0.0
    %1343 = vmatpush1.msra.mxu0 %v537
    %1344 = vmatprep.subr.mxu0 0.0
    %1345 = vmatpush1.msra.mxu0 %v540
    %1346 = vmatprep.subr.mxu0 0.0
    %1347 = vmatpush1.msra.mxu0 %v543
    %1348 = vmatprep.subr.mxu0 0.0
    %1349 = vmatpush1.msra.mxu0 %v546
    %1350 = vmatprep.subr.mxu0 0.0
    %1351 = vmatpush1.msra.mxu0 %v549
    %1352 = vmatprep.subr.mxu0 0.0
    %1353 = vmatpush1.msra.mxu0 %v552
    %1354 = vmatprep.subr.mxu0 0.0
    %1355 = vmatpush1.msra.mxu0 %v555
    %1356 = vmatprep.subr.mxu0 0.0
    %1357 = vmatpush1.msra.mxu0 0.0
    %1358 = vmatprep.subr.mxu0 0.0
    %1359 = vmatpush1.msra.mxu0 0.0
    %1360 = vmatprep.subr.mxu0 0.0
    %1361 = vmatpush1.msra.mxu0 0.0
    %1362 = vmatprep.subr.mxu0 0.0
    %1363 = vmatpush1.msra.mxu0 0.0
    %1364 = vmatprep.subr.mxu0 0.0
    %1365 = vmatpush1.msra.mxu0 0.0
    %1366 = vmatprep.subr.mxu0 0.0
    %1367 = vmatpush1.msra.mxu0 0.0
    %1368 = vmatprep.subr.mxu0 0.0
    %1369 = vmatpush1.msra.mxu0 0.0
    %1370 = vmatprep.subr.mxu0 0.0
    %1371 = vmatpush1.msra.mxu0 0.0
    %1372 = vmatprep.subr.mxu0 0.0
    %1373 = vmatpush1.msra.mxu0 0.0
    %1374 = vmatprep.subr.mxu0 0.0
    %1375 = vmatpush1.msra.mxu0 0.0
    %1376 = vmatprep.subr.mxu0 0.0
    %1377 = vmatpush1.msra.mxu0 0.0
    %1378 = vmatprep.subr.mxu0 0.0
    %1379 = vmatpush1.msra.mxu0 0.0
    %1380 = vmatprep.subr.mxu0 0.0
    %1381 = vmatpush1.msra.mxu0 0.0
    %1382 = vmatprep.subr.mxu0 0.0
    %1383 = vmatpush1.msra.mxu0 0.0
    %1384 = vmatprep.subr.mxu0 0.0
    %1385 = vmatpush1.msra.mxu0 0.0
    %1386 = vmatprep.subr.mxu0 0.0
    %1387 = vmatpush1.msra.mxu0 0.0
    %1388 = vmatprep.mubr.f32.mxu0 0.0
    %1389 = vmatmul.mubr.f32.gmra.mrb[0].mxu0 %v1244
    %v1390 = vpop.f32.mrb[0].mxu0
    %v1391 = vadd.f32 0.0, %v1390
    %v1392 = vpop.f32.mrb[0].mxu0
    %1393 = vdwg.mxu0
    %v1394 = vadd.f32 %v1250, %v1320
    %v1395 = vxor.u32 %v1394, 2147483648
    %v1396 = vmul.f32 %v1395, 1.442695
    %v1397 = vpow.pop %v1396
    %v1398 = vadd.f32 %v1397, 1.0
    %v1399 = vrcp.pop %v1398
    %v1400 = vmul.f32 1.0, %v1399
    %v1401 = vadd.f32 %v1251, %v1322
    %v1402 = vxor.u32 %v1401, 2147483648
    %v1403 = vmul.f32 %v1402, 1.442695
    %v1404 = vpow.pop %v1403
    %v1405 = vadd.f32 %v1404, 1.0
    %v1406 = vrcp.pop %v1405
    %v1407 = vmul.f32 1.0, %v1406
    %v1408 = vadd.f32 %v1391, %v723
    %v1409 = vmul.f32 %v1400, %v1408
    %v1410 = vadd.f32 %v1252, %v1409
    %v1411 = vtanh.pop %v1410
    %v1412 = vsub.f32 1.0, %v1407
    %v1413 = vmul.f32 %v1412, %v1411
    %v1414 = vmul.f32 %v1407, %v1244
    %v1415 = vadd.f32 %v1413, %v1414
    %s1416 = scalar_lea.vmem [#allocation4], 32
    %1417 = vst [vmem:[%s1416] sm:$0xff] %v1415
    %s1418 = smul.u32 5, 3
    %s1419 = smul.addr %s1418, 8
    %s1420 = scalar_lea.vmem [#allocation3], %s1419
    %v1421 = vld [vmem:[%s1420] sm:$0xff]
    %v1422 = vld [vmem:[%s1420 + $0x8] sm:$0xff]
    %v1423 = vld [vmem:[%s1420 + $0x10] sm:$0xff]
    %1424 = vmatprep.subr.mxu0 %v509
    %1425 = vmatpush1.msra.mxu0 %v508
    %1426 = vmatprep.subr.mxu0 %v512
    %1427 = vmatpush1.msra.mxu0 %v511
    %1428 = vmatprep.subr.mxu0 %v515
    %1429 = vmatpush1.msra.mxu0 %v514
    %1430 = vmatprep.subr.mxu0 %v518
    %1431 = vmatpush1.msra.mxu0 %v517
    %1432 = vmatprep.subr.mxu0 %v521
    %1433 = vmatpush1.msra.mxu0 %v520
    %1434 = vmatprep.subr.mxu0 %v524
    %1435 = vmatpush1.msra.mxu0 %v523
    %1436 = vmatprep.subr.mxu0 %v527
    %1437 = vmatpush1.msra.mxu0 %v526
    %1438 = vmatprep.subr.mxu0 %v530
    %1439 = vmatpush1.msra.mxu0 %v529
    %1440 = vmatprep.subr.mxu0 %v533
    %1441 = vmatpush1.msra.mxu0 %v532
    %1442 = vmatprep.subr.mxu0 %v536
    %1443 = vmatpush1.msra.mxu0 %v535
    %1444 = vmatprep.subr.mxu0 %v539
    %1445 = vmatpush1.msra.mxu0 %v538
    %1446 = vmatprep.subr.mxu0 %v542
    %1447 = vmatpush1.msra.mxu0 %v541
    %1448 = vmatprep.subr.mxu0 %v545
    %1449 = vmatpush1.msra.mxu0 %v544
    %1450 = vmatprep.subr.mxu0 %v548
    %1451 = vmatpush1.msra.mxu0 %v547
    %1452 = vmatprep.subr.mxu0 %v551
    %1453 = vmatpush1.msra.mxu0 %v550
    %1454 = vmatprep.subr.mxu0 %v554
    %1455 = vmatpush1.msra.mxu0 %v553
    %1456 = vmatprep.subr.mxu0 0.0
    %1457 = vmatpush1.msra.mxu0 0.0
    %1458 = vmatprep.subr.mxu0 0.0
    %1459 = vmatpush1.msra.mxu0 0.0
    %1460 = vmatprep.subr.mxu0 0.0
    %1461 = vmatpush1.msra.mxu0 0.0
    %1462 = vmatprep.subr.mxu0 0.0
    %1463 = vmatpush1.msra.mxu0 0.0
    %1464 = vmatprep.subr.mxu0 0.0
    %1465 = vmatpush1.msra.mxu0 0.0
    %1466 = vmatprep.subr.mxu0 0.0
    %1467 = vmatpush1.msra.mxu0 0.0
    %1468 = vmatprep.subr.mxu0 0.0
    %1469 = vmatpush1.msra.mxu0 0.0
    %1470 = vmatprep.subr.mxu0 0.0
    %1471 = vmatpush1.msra.mxu0 0.0
    %1472 = vmatprep.subr.mxu0 0.0
    %1473 = vmatpush1.msra.mxu0 0.0
    %1474 = vmatprep.subr.mxu0 0.0
    %1475 = vmatpush1.msra.mxu0 0.0
    %1476 = vmatprep.subr.mxu0 0.0
    %1477 = vmatpush1.msra.mxu0 0.0
    %1478 = vmatprep.subr.mxu0 0.0
    %1479 = vmatpush1.msra.mxu0 0.0
    %1480 = vmatprep.subr.mxu0 0.0
    %1481 = vmatpush1.msra.mxu0 0.0
    %1482 = vmatprep.subr.mxu0 0.0
    %1483 = vmatpush1.msra.mxu0 0.0
    %1484 = vmatprep.subr.mxu0 0.0
    %1485 = vmatpush1.msra.mxu0 0.0
    %1486 = vmatprep.subr.mxu0 0.0
    %1487 = vmatpush1.msra.mxu0 0.0
    %1488 = vmatprep.mubr.f32.mxu0 0.0
    %1489 = vmatmul.mubr.f32.gmra.mrb[0].mxu0 %v1415
    %v1490 = vpop.f32.mrb[0].mxu0
    %v1491 = vadd.f32 0.0, %v1490
    %v1492 = vpop.f32.mrb[0].mxu0
    %v1493 = vadd.f32 0.0, %v1492
    %1494 = vdwg.mxu0
    %1495 = vmatprep.subr.mxu0 0.0
    %1496 = vmatpush1.msra.mxu0 %v510
    %1497 = vmatprep.subr.mxu0 0.0
    %1498 = vmatpush1.msra.mxu0 %v513
    %1499 = vmatprep.subr.mxu0 0.0
    %1500 = vmatpush1.msra.mxu0 %v516
    %1501 = vmatprep.subr.mxu0 0.0
    %1502 = vmatpush1.msra.mxu0 %v519
    %1503 = vmatprep.subr.mxu0 0.0
    %1504 = vmatpush1.msra.mxu0 %v522
    %1505 = vmatprep.subr.mxu0 0.0
    %1506 = vmatpush1.msra.mxu0 %v525
    %1507 = vmatprep.subr.mxu0 0.0
    %1508 = vmatpush1.msra.mxu0 %v528
    %1509 = vmatprep.subr.mxu0 0.0
    %1510 = vmatpush1.msra.mxu0 %v531
    %1511 = vmatprep.subr.mxu0 0.0
    %1512 = vmatpush1.msra.mxu0 %v534
    %1513 = vmatprep.subr.mxu0 0.0
    %1514 = vmatpush1.msra.mxu0 %v537
    %1515 = vmatprep.subr.mxu0 0.0
    %1516 = vmatpush1.msra.mxu0 %v540
    %1517 = vmatprep.subr.mxu0 0.0
    %1518 = vmatpush1.msra.mxu0 %v543
    %1519 = vmatprep.subr.mxu0 0.0
    %1520 = vmatpush1.msra.mxu0 %v546
    %1521 = vmatprep.subr.mxu0 0.0
    %1522 = vmatpush1.msra.mxu0 %v549
    %1523 = vmatprep.subr.mxu0 0.0
    %1524 = vmatpush1.msra.mxu0 %v552
    %1525 = vmatprep.subr.mxu0 0.0
    %1526 = vmatpush1.msra.mxu0 %v555
    %1527 = vmatprep.subr.mxu0 0.0
    %1528 = vmatpush1.msra.mxu0 0.0
    %1529 = vmatprep.subr.mxu0 0.0
    %1530 = vmatpush1.msra.mxu0 0.0
    %1531 = vmatprep.subr.mxu0 0.0
    %1532 = vmatpush1.msra.mxu0 0.0
    %1533 = vmatprep.subr.mxu0 0.0
    %1534 = vmatpush1.msra.mxu0 0.0
    %1535 = vmatprep.subr.mxu0 0.0
    %1536 = vmatpush1.msra.mxu0 0.0
    %1537 = vmatprep.subr.mxu0 0.0
    %1538 = vmatpush1.msra.mxu0 0.0
    %1539 = vmatprep.subr.mxu0 0.0
    %1540 = vmatpush1.msra.mxu0 0.0
    %1541 = vmatprep.subr.mxu0 0.0
    %1542 = vmatpush1.msra.mxu0 0.0
    %1543 = vmatprep.subr.mxu0 0.0
    %1544 = vmatpush1.msra.mxu0 0.0
    %1545 = vmatprep.subr.mxu0 0.0
    %1546 = vmatpush1.msra.mxu0 0.0
    %1547 = vmatprep.subr.mxu0 0.0
    %1548 = vmatpush1.msra.mxu0 0.0
    %1549 = vmatprep.subr.mxu0 0.0
    %1550 = vmatpush1.msra.mxu0 0.0
    %1551 = vmatprep.subr.mxu0 0.0
    %1552 = vmatpush1.msra.mxu0 0.0
    %1553 = vmatprep.subr.mxu0 0.0
    %1554 = vmatpush1.msra.mxu0 0.0
    %1555 = vmatprep.subr.mxu0 0.0
    %1556 = vmatpush1.msra.mxu0 0.0
    %1557 = vmatprep.subr.mxu0 0.0
    %1558 = vmatpush1.msra.mxu0 0.0
    %1559 = vmatprep.mubr.f32.mxu0 0.0
    %1560 = vmatmul.mubr.f32.gmra.mrb[0].mxu0 %v1415
    %v1561 = vpop.f32.mrb[0].mxu0
    %v1562 = vadd.f32 0.0, %v1561
    %v1563 = vpop.f32.mrb[0].mxu0
    %1564 = vdwg.mxu0
    %v1565 = vadd.f32 %v1421, %v1491
    %v1566 = vxor.u32 %v1565, 2147483648
    %v1567 = vmul.f32 %v1566, 1.442695
    %v1568 = vpow.pop %v1567
    %v1569 = vadd.f32 %v1568, 1.0
    %v1570 = vrcp.pop %v1569
    %v1571 = vmul.f32 1.0, %v1570
    %v1572 = vadd.f32 %v1422, %v1493
    %v1573 = vxor.u32 %v1572, 2147483648
    %v1574 = vmul.f32 %v1573, 1.442695
    %v1575 = vpow.pop %v1574
    %v1576 = vadd.f32 %v1575, 1.0
    %v1577 = vrcp.pop %v1576
    %v1578 = vmul.f32 1.0, %v1577
    %v1579 = vadd.f32 %v1562, %v723
    %v1580 = vmul.f32 %v1571, %v1579
    %v1581 = vadd.f32 %v1423, %v1580
    %v1582 = vtanh.pop %v1581
    %v1583 = vsub.f32 1.0, %v1578
    %v1584 = vmul.f32 %v1583, %v1582
    %v1585 = vmul.f32 %v1578, %v1415
    %v1586 = vadd.f32 %v1584, %v1585
    %s1587 = scalar_lea.vmem [#allocation4], 40
    %1588 = vst [vmem:[%s1587] sm:$0xff] %v1586
    %s1589 = smul.u32 6, 3
    %s1590 = smul.addr %s1589, 8
    %s1591 = scalar_lea.vmem [#allocation3], %s1590
    %v1592 = vld [vmem:[%s1591] sm:$0xff]
    %v1593 = vld [vmem:[%s1591 + $0x8] sm:$0xff]
    %v1594 = vld [vmem:[%s1591 + $0x10] sm:$0xff]
    %1595 = vmatprep.subr.mxu0 %v509
    %1596 = vmatpush1.msra.mxu0 %v508
    %1597 = vmatprep.subr.mxu0 %v512
    %1598 = vmatpush1.msra.mxu0 %v511
    %1599 = vmatprep.subr.mxu0 %v515
    %1600 = vmatpush1.msra.mxu0 %v514
    %1601 = vmatprep.subr.mxu0 %v518
    %1602 = vmatpush1.msra.mxu0 %v517
    %1603 = vmatprep.subr.mxu0 %v521
    %1604 = vmatpush1.msra.mxu0 %v520
    %1605 = vmatprep.subr.mxu0 %v524
    %1606 = vmatpush1.msra.mxu0 %v523
    %1607 = vmatprep.subr.mxu0 %v527
    %1608 = vmatpush1.msra.mxu0 %v526
    %1609 = vmatprep.subr.mxu0 %v530
    %1610 = vmatpush1.msra.mxu0 %v529
    %1611 = vmatprep.subr.mxu0 %v533
    %1612 = vmatpush1.msra.mxu0 %v532
    %1613 = vmatprep.subr.mxu0 %v536
    %1614 = vmatpush1.msra.mxu0 %v535
    %1615 = vmatprep.subr.mxu0 %v539
    %1616 = vmatpush1.msra.mxu0 %v538
    %1617 = vmatprep.subr.mxu0 %v542
    %1618 = vmatpush1.msra.mxu0 %v541
    %1619 = vmatprep.subr.mxu0 %v545
    %1620 = vmatpush1.msra.mxu0 %v544
    %1621 = vmatprep.subr.mxu0 %v548
    %1622 = vmatpush1.msra.mxu0 %v547
    %1623 = vmatprep.subr.mxu0 %v551
    %1624 = vmatpush1.msra.mxu0 %v550
    %1625 = vmatprep.subr.mxu0 %v554
    %1626 = vmatpush1.msra.mxu0 %v553
    %1627 = vmatprep.subr.mxu0 0.0
    %1628 = vmatpush1.msra.mxu0 0.0
    %1629 = vmatprep.subr.mxu0 0.0
    %1630 = vmatpush1.msra.mxu0 0.0
    %1631 = vmatprep.subr.mxu0 0.0
    %1632 = vmatpush1.msra.mxu0 0.0
    %1633 = vmatprep.subr.mxu0 0.0
    %1634 = vmatpush1.msra.mxu0 0.0
    %1635 = vmatprep.subr.mxu0 0.0
    %1636 = vmatpush1.msra.mxu0 0.0
    %1637 = vmatprep.subr.mxu0 0.0
    %1638 = vmatpush1.msra.mxu0 0.0
    %1639 = vmatprep.subr.mxu0 0.0
    %1640 = vmatpush1.msra.mxu0 0.0
    %1641 = vmatprep.subr.mxu0 0.0
    %1642 = vmatpush1.msra.mxu0 0.0
    %1643 = vmatprep.subr.mxu0 0.0
    %1644 = vmatpush1.msra.mxu0 0.0
    %1645 = vmatprep.subr.mxu0 0.0
    %1646 = vmatpush1.msra.mxu0 0.0
    %1647 = vmatprep.subr.mxu0 0.0
    %1648 = vmatpush1.msra.mxu0 0.0
    %1649 = vmatprep.subr.mxu0 0.0
    %1650 = vmatpush1.msra.mxu0 0.0
    %1651 = vmatprep.subr.mxu0 0.0
    %1652 = vmatpush1.msra.mxu0 0.0
    %1653 = vmatprep.subr.mxu0 0.0
    %1654 = vmatpush1.msra.mxu0 0.0
    %1655 = vmatprep.subr.mxu0 0.0
    %1656 = vmatpush1.msra.mxu0 0.0
    %1657 = vmatprep.subr.mxu0 0.0
    %1658 = vmatpush1.msra.mxu0 0.0
    %1659 = vmatprep.mubr.f32.mxu0 0.0
    %1660 = vmatmul.mubr.f32.gmra.mrb[0].mxu0 %v1586
    %v1661 = vpop.f32.mrb[0].mxu0
    %v1662 = vadd.f32 0.0, %v1661
    %v1663 = vpop.f32.mrb[0].mxu0
    %v1664 = vadd.f32 0.0, %v1663
    %1665 = vdwg.mxu0
    %1666 = vmatprep.subr.mxu0 0.0
    %1667 = vmatpush1.msra.mxu0 %v510
    %1668 = vmatprep.subr.mxu0 0.0
    %1669 = vmatpush1.msra.mxu0 %v513
    %1670 = vmatprep.subr.mxu0 0.0
    %1671 = vmatpush1.msra.mxu0 %v516
    %1672 = vmatprep.subr.mxu0 0.0
    %1673 = vmatpush1.msra.mxu0 %v519
    %1674 = vmatprep.subr.mxu0 0.0
    %1675 = vmatpush1.msra.mxu0 %v522
    %1676 = vmatprep.subr.mxu0 0.0
    %1677 = vmatpush1.msra.mxu0 %v525
    %1678 = vmatprep.subr.mxu0 0.0
    %1679 = vmatpush1.msra.mxu0 %v528
    %1680 = vmatprep.subr.mxu0 0.0
    %1681 = vmatpush1.msra.mxu0 %v531
    %1682 = vmatprep.subr.mxu0 0.0
    %1683 = vmatpush1.msra.mxu0 %v534
    %1684 = vmatprep.subr.mxu0 0.0
    %1685 = vmatpush1.msra.mxu0 %v537
    %1686 = vmatprep.subr.mxu0 0.0
    %1687 = vmatpush1.msra.mxu0 %v540
    %1688 = vmatprep.subr.mxu0 0.0
    %1689 = vmatpush1.msra.mxu0 %v543
    %1690 = vmatprep.subr.mxu0 0.0
    %1691 = vmatpush1.msra.mxu0 %v546
    %1692 = vmatprep.subr.mxu0 0.0
    %1693 = vmatpush1.msra.mxu0 %v549
    %1694 = vmatprep.subr.mxu0 0.0
    %1695 = vmatpush1.msra.mxu0 %v552
    %1696 = vmatprep.subr.mxu0 0.0
    %1697 = vmatpush1.msra.mxu0 %v555
    %1698 = vmatprep.subr.mxu0 0.0
    %1699 = vmatpush1.msra.mxu0 0.0
    %1700 = vmatprep.subr.mxu0 0.0
    %1701 = vmatpush1.msra.mxu0 0.0
    %1702 = vmatprep.subr.mxu0 0.0
    %1703 = vmatpush1.msra.mxu0 0.0
    %1704 = vmatprep.subr.mxu0 0.0
    %1705 = vmatpush1.msra.mxu0 0.0
    %1706 = vmatprep.subr.mxu0 0.0
    %1707 = vmatpush1.msra.mxu0 0.0
    %1708 = vmatprep.subr.mxu0 0.0
    %1709 = vmatpush1.msra.mxu0 0.0
    %1710 = vmatprep.subr.mxu0 0.0
    %1711 = vmatpush1.msra.mxu0 0.0
    %1712 = vmatprep.subr.mxu0 0.0
    %1713 = vmatpush1.msra.mxu0 0.0
    %1714 = vmatprep.subr.mxu0 0.0
    %1715 = vmatpush1.msra.mxu0 0.0
    %1716 = vmatprep.subr.mxu0 0.0
    %1717 = vmatpush1.msra.mxu0 0.0
    %1718 = vmatprep.subr.mxu0 0.0
    %1719 = vmatpush1.msra.mxu0 0.0
    %1720 = vmatprep.subr.mxu0 0.0
    %1721 = vmatpush1.msra.mxu0 0.0
    %1722 = vmatprep.subr.mxu0 0.0
    %1723 = vmatpush1.msra.mxu0 0.0
    %1724 = vmatprep.subr.mxu0 0.0
    %1725 = vmatpush1.msra.mxu0 0.0
    %1726 = vmatprep.subr.mxu0 0.0
    %1727 = vmatpush1.msra.mxu0 0.0
    %1728 = vmatprep.subr.mxu0 0.0
    %1729 = vmatpush1.msra.mxu0 0.0
    %1730 = vmatprep.mubr.f32.mxu0 0.0
    %1731 = vmatmul.mubr.f32.gmra.mrb[0].mxu0 %v1586
    %v1732 = vpop.f32.mrb[0].mxu0
    %v1733 = vadd.f32 0.0, %v1732
    %v1734 = vpop.f32.mrb[0].mxu0
    %1735 = vdwg.mxu0
    %v1736 = vadd.f32 %v1592, %v1662
    %v1737 = vxor.u32 %v1736, 2147483648
    %v1738 = vmul.f32 %v1737, 1.442695
    %v1739 = vpow.pop %v1738
    %v1740 = vadd.f32 %v1739, 1.0
    %v1741 = vrcp.pop %v1740
    %v1742 = vmul.f32 1.0, %v1741
    %v1743 = vadd.f32 %v1593, %v1664
    %v1744 = vxor.u32 %v1743, 2147483648
    %v1745 = vmul.f32 %v1744, 1.442695
    %v1746 = vpow.pop %v1745
    %v1747 = vadd.f32 %v1746, 1.0
    %v1748 = vrcp.pop %v1747
    %v1749 = vmul.f32 1.0, %v1748
    %v1750 = vadd.f32 %v1733, %v723
    %v1751 = vmul.f32 %v1742, %v1750
    %v1752 = vadd.f32 %v1594, %v1751
    %v1753 = vtanh.pop %v1752
    %v1754 = vsub.f32 1.0, %v1749
    %v1755 = vmul.f32 %v1754, %v1753
    %v1756 = vmul.f32 %v1749, %v1586
    %v1757 = vadd.f32 %v1755, %v1756
    %s1758 = scalar_lea.vmem [#allocation4], 48
    %1759 = vst [vmem:[%s1758] sm:$0xff] %v1757
    %s1760 = smul.u32 7, 3
    %s1761 = smul.addr %s1760, 8
    %s1762 = scalar_lea.vmem [#allocation3], %s1761
    %v1763 = vld [vmem:[%s1762] sm:$0xff]
    %v1764 = vld [vmem:[%s1762 + $0x8] sm:$0xff]
    %v1765 = vld [vmem:[%s1762 + $0x10] sm:$0xff]
    %1766 = vmatprep.subr.mxu0 %v509
    %1767 = vmatpush1.msra.mxu0 %v508
    %1768 = vmatprep.subr.mxu0 %v512
    %1769 = vmatpush1.msra.mxu0 %v511
    %1770 = vmatprep.subr.mxu0 %v515
    %1771 = vmatpush1.msra.mxu0 %v514
    %1772 = vmatprep.subr.mxu0 %v518
    %1773 = vmatpush1.msra.mxu0 %v517
    %1774 = vmatprep.subr.mxu0 %v521
    %1775 = vmatpush1.msra.mxu0 %v520
    %1776 = vmatprep.subr.mxu0 %v524
    %1777 = vmatpush1.msra.mxu0 %v523
    %1778 = vmatprep.subr.mxu0 %v527
    %1779 = vmatpush1.msra.mxu0 %v526
    %1780 = vmatprep.subr.mxu0 %v530
    %1781 = vmatpush1.msra.mxu0 %v529
    %1782 = vmatprep.subr.mxu0 %v533
    %1783 = vmatpush1.msra.mxu0 %v532
    %1784 = vmatprep.subr.mxu0 %v536
    %1785 = vmatpush1.msra.mxu0 %v535
    %1786 = vmatprep.subr.mxu0 %v539
    %1787 = vmatpush1.msra.mxu0 %v538
    %1788 = vmatprep.subr.mxu0 %v542
    %1789 = vmatpush1.msra.mxu0 %v541
    %1790 = vmatprep.subr.mxu0 %v545
    %1791 = vmatpush1.msra.mxu0 %v544
    %1792 = vmatprep.subr.mxu0 %v548
    %1793 = vmatpush1.msra.mxu0 %v547
    %1794 = vmatprep.subr.mxu0 %v551
    %1795 = vmatpush1.msra.mxu0 %v550
    %1796 = vmatprep.subr.mxu0 %v554
    %1797 = vmatpush1.msra.mxu0 %v553
    %1798 = vmatprep.subr.mxu0 0.0
    %1799 = vmatpush1.msra.mxu0 0.0
    %1800 = vmatprep.subr.mxu0 0.0
    %1801 = vmatpush1.msra.mxu0 0.0
    %1802 = vmatprep.subr.mxu0 0.0
    %1803 = vmatpush1.msra.mxu0 0.0
    %1804 = vmatprep.subr.mxu0 0.0
    %1805 = vmatpush1.msra.mxu0 0.0
    %1806 = vmatprep.subr.mxu0 0.0
    %1807 = vmatpush1.msra.mxu0 0.0
    %1808 = vmatprep.subr.mxu0 0.0
    %1809 = vmatpush1.msra.mxu0 0.0
    %1810 = vmatprep.subr.mxu0 0.0
    %1811 = vmatpush1.msra.mxu0 0.0
    %1812 = vmatprep.subr.mxu0 0.0
    %1813 = vmatpush1.msra.mxu0 0.0
    %1814 = vmatprep.subr.mxu0 0.0
    %1815 = vmatpush1.msra.mxu0 0.0
    %1816 = vmatprep.subr.mxu0 0.0
    %1817 = vmatpush1.msra.mxu0 0.0
    %1818 = vmatprep.subr.mxu0 0.0
    %1819 = vmatpush1.msra.mxu0 0.0
    %1820 = vmatprep.subr.mxu0 0.0
    %1821 = vmatpush1.msra.mxu0 0.0
    %1822 = vmatprep.subr.mxu0 0.0
    %1823 = vmatpush1.msra.mxu0 0.0
    %1824 = vmatprep.subr.mxu0 0.0
    %1825 = vmatpush1.msra.mxu0 0.0
    %1826 = vmatprep.subr.mxu0 0.0
    %1827 = vmatpush1.msra.mxu0 0.0
    %1828 = vmatprep.subr.mxu0 0.0
    %1829 = vmatpush1.msra.mxu0 0.0
    %1830 = vmatprep.mubr.f32.mxu0 0.0
    %1831 = vmatmul.mubr.f32.gmra.mrb[0].mxu0 %v1757
    %v1832 = vpop.f32.mrb[0].mxu0
    %v1833 = vadd.f32 0.0, %v1832
    %v1834 = vpop.f32.mrb[0].mxu0
    %v1835 = vadd.f32 0.0, %v1834
    %1836 = vdwg.mxu0
    %1837 = vmatprep.subr.mxu0 0.0
    %1838 = vmatpush1.msra.mxu0 %v510
    %1839 = vmatprep.subr.mxu0 0.0
    %1840 = vmatpush1.msra.mxu0 %v513
    %1841 = vmatprep.subr.mxu0 0.0
    %1842 = vmatpush1.msra.mxu0 %v516
    %1843 = vmatprep.subr.mxu0 0.0
    %1844 = vmatpush1.msra.mxu0 %v519
    %1845 = vmatprep.subr.mxu0 0.0
    %1846 = vmatpush1.msra.mxu0 %v522
    %1847 = vmatprep.subr.mxu0 0.0
    %1848 = vmatpush1.msra.mxu0 %v525
    %1849 = vmatprep.subr.mxu0 0.0
    %1850 = vmatpush1.msra.mxu0 %v528
    %1851 = vmatprep.subr.mxu0 0.0
    %1852 = vmatpush1.msra.mxu0 %v531
    %1853 = vmatprep.subr.mxu0 0.0
    %1854 = vmatpush1.msra.mxu0 %v534
    %1855 = vmatprep.subr.mxu0 0.0
    %1856 = vmatpush1.msra.mxu0 %v537
    %1857 = vmatprep.subr.mxu0 0.0
    %1858 = vmatpush1.msra.mxu0 %v540
    %1859 = vmatprep.subr.mxu0 0.0
    %1860 = vmatpush1.msra.mxu0 %v543
    %1861 = vmatprep.subr.mxu0 0.0
    %1862 = vmatpush1.msra.mxu0 %v546
    %1863 = vmatprep.subr.mxu0 0.0
    %1864 = vmatpush1.msra.mxu0 %v549
    %1865 = vmatprep.subr.mxu0 0.0
    %1866 = vmatpush1.msra.mxu0 %v552
    %1867 = vmatprep.subr.mxu0 0.0
    %1868 = vmatpush1.msra.mxu0 %v555
    %1869 = vmatprep.subr.mxu0 0.0
    %1870 = vmatpush1.msra.mxu0 0.0
    %1871 = vmatprep.subr.mxu0 0.0
    %1872 = vmatpush1.msra.mxu0 0.0
    %1873 = vmatprep.subr.mxu0 0.0
    %1874 = vmatpush1.msra.mxu0 0.0
    %1875 = vmatprep.subr.mxu0 0.0
    %1876 = vmatpush1.msra.mxu0 0.0
    %1877 = vmatprep.subr.mxu0 0.0
    %1878 = vmatpush1.msra.mxu0 0.0
    %1879 = vmatprep.subr.mxu0 0.0
    %1880 = vmatpush1.msra.mxu0 0.0
    %1881 = vmatprep.subr.mxu0 0.0
    %1882 = vmatpush1.msra.mxu0 0.0
    %1883 = vmatprep.subr.mxu0 0.0
    %1884 = vmatpush1.msra.mxu0 0.0
    %1885 = vmatprep.subr.mxu0 0.0
    %1886 = vmatpush1.msra.mxu0 0.0
    %1887 = vmatprep.subr.mxu0 0.0
    %1888 = vmatpush1.msra.mxu0 0.0
    %1889 = vmatprep.subr.mxu0 0.0
    %1890 = vmatpush1.msra.mxu0 0.0
    %1891 = vmatprep.subr.mxu0 0.0
    %1892 = vmatpush1.msra.mxu0 0.0
    %1893 = vmatprep.subr.mxu0 0.0
    %1894 = vmatpush1.msra.mxu0 0.0
    %1895 = vmatprep.subr.mxu0 0.0
    %1896 = vmatpush1.msra.mxu0 0.0
    %1897 = vmatprep.subr.mxu0 0.0
    %1898 = vmatpush1.msra.mxu0 0.0
    %1899 = vmatprep.subr.mxu0 0.0
    %1900 = vmatpush1.msra.mxu0 0.0
    %1901 = vmatprep.mubr.f32.mxu0 0.0
    %1902 = vmatmul.mubr.f32.gmra.mrb[0].mxu0 %v1757
    %v1903 = vpop.f32.mrb[0].mxu0
    %v1904 = vadd.f32 0.0, %v1903
    %v1905 = vpop.f32.mrb[0].mxu0
    %1906 = vdwg.mxu0
    %v1907 = vadd.f32 %v1763, %v1833
    %v1908 = vxor.u32 %v1907, 2147483648
    %v1909 = vmul.f32 %v1908, 1.442695
    %v1910 = vpow.pop %v1909
    %v1911 = vadd.f32 %v1910, 1.0
    %v1912 = vrcp.pop %v1911
    %v1913 = vmul.f32 1.0, %v1912
    %v1914 = vadd.f32 %v1764, %v1835
    %v1915 = vxor.u32 %v1914, 2147483648
    %v1916 = vmul.f32 %v1915, 1.442695
    %v1917 = vpow.pop %v1916
    %v1918 = vadd.f32 %v1917, 1.0
    %v1919 = vrcp.pop %v1918
    %v1920 = vmul.f32 1.0, %v1919
    %v1921 = vadd.f32 %v1904, %v723
    %v1922 = vmul.f32 %v1913, %v1921
    %v1923 = vadd.f32 %v1765, %v1922
    %v1924 = vtanh.pop %v1923
    %v1925 = vsub.f32 1.0, %v1920
    %v1926 = vmul.f32 %v1925, %v1924
    %v1927 = vmul.f32 %v1920, %v1757
    %v1928 = vadd.f32 %v1926, %v1927
    %s1929 = scalar_lea.vmem [#allocation4], 56
    %1930 = vst [vmem:[%s1929] sm:$0xff] %v1928
    %s1931 = smul.u32 8, 3
    %s1932 = smul.addr %s1931, 8
    %s1933 = scalar_lea.vmem [#allocation3], %s1932
    %v1934 = vld [vmem:[%s1933] sm:$0xff]
    %v1935 = vld [vmem:[%s1933 + $0x8] sm:$0xff]
    %v1936 = vld [vmem:[%s1933 + $0x10] sm:$0xff]
    %1937 = vmatprep.subr.mxu0 %v509
    %1938 = vmatpush1.msra.mxu0 %v508
    %1939 = vmatprep.subr.mxu0 %v512
    %1940 = vmatpush1.msra.mxu0 %v511
    %1941 = vmatprep.subr.mxu0 %v515
    %1942 = vmatpush1.msra.mxu0 %v514
    %1943 = vmatprep.subr.mxu0 %v518
    %1944 = vmatpush1.msra.mxu0 %v517
    %1945 = vmatprep.subr.mxu0 %v521
    %1946 = vmatpush1.msra.mxu0 %v520
    %1947 = vmatprep.subr.mxu0 %v524
    %1948 = vmatpush1.msra.mxu0 %v523
    %1949 = vmatprep.subr.mxu0 %v527
    %1950 = vmatpush1.msra.mxu0 %v526
    %1951 = vmatprep.subr.mxu0 %v530
    %1952 = vmatpush1.msra.mxu0 %v529
    %1953 = vmatprep.subr.mxu0 %v533
    %1954 = vmatpush1.msra.mxu0 %v532
    %1955 = vmatprep.subr.mxu0 %v536
    %1956 = vmatpush1.msra.mxu0 %v535
    %1957 = vmatprep.subr.mxu0 %v539
    %1958 = vmatpush1.msra.mxu0 %v538
    %1959 = vmatprep.subr.mxu0 %v542
    %1960 = vmatpush1.msra.mxu0 %v541
    %1961 = vmatprep.subr.mxu0 %v545
    %1962 = vmatpush1.msra.mxu0 %v544
    %1963 = vmatprep.subr.mxu0 %v548
    %1964 = vmatpush1.msra.mxu0 %v547
    %1965 = vmatprep.subr.mxu0 %v551
    %1966 = vmatpush1.msra.mxu0 %v550
    %1967 = vmatprep.subr.mxu0 %v554
    %1968 = vmatpush1.msra.mxu0 %v553
    %1969 = vmatprep.subr.mxu0 0.0
    %1970 = vmatpush1.msra.mxu0 0.0
    %1971 = vmatprep.subr.mxu0 0.0
    %1972 = vmatpush1.msra.mxu0 0.0
    %1973 = vmatprep.subr.mxu0 0.0
    %1974 = vmatpush1.msra.mxu0 0.0
    %1975 = vmatprep.subr.mxu0 0.0
    %1976 = vmatpush1.msra.mxu0 0.0
    %1977 = vmatprep.subr.mxu0 0.0
    %1978 = vmatpush1.msra.mxu0 0.0
    %1979 = vmatprep.subr.mxu0 0.0
    %1980 = vmatpush1.msra.mxu0 0.0
    %1981 = vmatprep.subr.mxu0 0.0
    %1982 = vmatpush1.msra.mxu0 0.0
    %1983 = vmatprep.subr.mxu0 0.0
    %1984 = vmatpush1.msra.mxu0 0.0
    %1985 = vmatprep.subr.mxu0 0.0
    %1986 = vmatpush1.msra.mxu0 0.0
    %1987 = vmatprep.subr.mxu0 0.0
    %1988 = vmatpush1.msra.mxu0 0.0
    %1989 = vmatprep.subr.mxu0 0.0
    %1990 = vmatpush1.msra.mxu0 0.0
    %1991 = vmatprep.subr.mxu0 0.0
    %1992 = vmatpush1.msra.mxu0 0.0
    %1993 = vmatprep.subr.mxu0 0.0
    %1994 = vmatpush1.msra.mxu0 0.0
    %1995 = vmatprep.subr.mxu0 0.0
    %1996 = vmatpush1.msra.mxu0 0.0
    %1997 = vmatprep.subr.mxu0 0.0
    %1998 = vmatpush1.msra.mxu0 0.0
    %1999 = vmatprep.subr.mxu0 0.0
    %2000 = vmatpush1.msra.mxu0 0.0
    %2001 = vmatprep.mubr.f32.mxu0 0.0
    %2002 = vmatmul.mubr.f32.gmra.mrb[0].mxu0 %v1928
    %v2003 = vpop.f32.mrb[0].mxu0
    %v2004 = vadd.f32 0.0, %v2003
    %v2005 = vpop.f32.mrb[0].mxu0
    %v2006 = vadd.f32 0.0, %v2005
    %2007 = vdwg.mxu0
    %2008 = vmatprep.subr.mxu0 0.0
    %2009 = vmatpush1.msra.mxu0 %v510
    %2010 = vmatprep.subr.mxu0 0.0
    %2011 = vmatpush1.msra.mxu0 %v513
    %2012 = vmatprep.subr.mxu0 0.0
    %2013 = vmatpush1.msra.mxu0 %v516
    %2014 = vmatprep.subr.mxu0 0.0
    %2015 = vmatpush1.msra.mxu0 %v519
    %2016 = vmatprep.subr.mxu0 0.0
    %2017 = vmatpush1.msra.mxu0 %v522
    %2018 = vmatprep.subr.mxu0 0.0
    %2019 = vmatpush1.msra.mxu0 %v525
    %2020 = vmatprep.subr.mxu0 0.0
    %2021 = vmatpush1.msra.mxu0 %v528
    %2022 = vmatprep.subr.mxu0 0.0
    %2023 = vmatpush1.msra.mxu0 %v531
    %2024 = vmatprep.subr.mxu0 0.0
    %2025 = vmatpush1.msra.mxu0 %v534
    %2026 = vmatprep.subr.mxu0 0.0
    %2027 = vmatpush1.msra.mxu0 %v537
    %2028 = vmatprep.subr.mxu0 0.0
    %2029 = vmatpush1.msra.mxu0 %v540
    %2030 = vmatprep.subr.mxu0 0.0
    %2031 = vmatpush1.msra.mxu0 %v543
    %2032 = vmatprep.subr.mxu0 0.0
    %2033 = vmatpush1.msra.mxu0 %v546
    %2034 = vmatprep.subr.mxu0 0.0
    %2035 = vmatpush1.msra.mxu0 %v549
    %2036 = vmatprep.subr.mxu0 0.0
    %2037 = vmatpush1.msra.mxu0 %v552
    %2038 = vmatprep.subr.mxu0 0.0
    %2039 = vmatpush1.msra.mxu0 %v555
    %2040 = vmatprep.subr.mxu0 0.0
    %2041 = vmatpush1.msra.mxu0 0.0
    %2042 = vmatprep.subr.mxu0 0.0
    %2043 = vmatpush1.msra.mxu0 0.0
    %2044 = vmatprep.subr.mxu0 0.0
    %2045 = vmatpush1.msra.mxu0 0.0
    %2046 = vmatprep.subr.mxu0 0.0
    %2047 = vmatpush1.msra.mxu0 0.0
    %2048 = vmatprep.subr.mxu0 0.0
    %2049 = vmatpush1.msra.mxu0 0.0
    %2050 = vmatprep.subr.mxu0 0.0
    %2051 = vmatpush1.msra.mxu0 0.0
    %2052 = vmatprep.subr.mxu0 0.0
    %2053 = vmatpush1.msra.mxu0 0.0
    %2054 = vmatprep.subr.mxu0 0.0
    %2055 = vmatpush1.msra.mxu0 0.0
    %2056 = vmatprep.subr.mxu0 0.0
    %2057 = vmatpush1.msra.mxu0 0.0
    %2058 = vmatprep.subr.mxu0 0.0
    %2059 = vmatpush1.msra.mxu0 0.0
    %2060 = vmatprep.subr.mxu0 0.0
    %2061 = vmatpush1.msra.mxu0 0.0
    %2062 = vmatprep.subr.mxu0 0.0
    %2063 = vmatpush1.msra.mxu0 0.0
    %2064 = vmatprep.subr.mxu0 0.0
    %2065 = vmatpush1.msra.mxu0 0.0
    %2066 = vmatprep.subr.mxu0 0.0
    %2067 = vmatpush1.msra.mxu0 0.0
    %2068 = vmatprep.subr.mxu0 0.0
    %2069 = vmatpush1.msra.mxu0 0.0
    %2070 = vmatprep.subr.mxu0 0.0
    %2071 = vmatpush1.msra.mxu0 0.0
    %2072 = vmatprep.mubr.f32.mxu0 0.0
    %2073 = vmatmul.mubr.f32.gmra.mrb[0].mxu0 %v1928
    %v2074 = vpop.f32.mrb[0].mxu0
    %v2075 = vadd.f32 0.0, %v2074
    %v2076 = vpop.f32.mrb[0].mxu0
    %2077 = vdwg.mxu0
    %v2078 = vadd.f32 %v1934, %v2004
    %v2079 = vxor.u32 %v2078, 2147483648
    %v2080 = vmul.f32 %v2079, 1.442695
    %v2081 = vpow.pop %v2080
    %v2082 = vadd.f32 %v2081, 1.0
    %v2083 = vrcp.pop %v2082
    %v2084 = vmul.f32 1.0, %v2083
    %v2085 = vadd.f32 %v1935, %v2006
    %v2086 = vxor.u32 %v2085, 2147483648
    %v2087 = vmul.f32 %v2086, 1.442695
    %v2088 = vpow.pop %v2087
    %v2089 = vadd.f32 %v2088, 1.0
    %v2090 = vrcp.pop %v2089
    %v2091 = vmul.f32 1.0, %v2090
    %v2092 = vadd.f32 %v2075, %v723
    %v2093 = vmul.f32 %v2084, %v2092
    %v2094 = vadd.f32 %v1936, %v2093
    %v2095 = vtanh.pop %v2094
    %v2096 = vsub.f32 1.0, %v2091
    %v2097 = vmul.f32 %v2096, %v2095
    %v2098 = vmul.f32 %v2091, %v1928
    %v2099 = vadd.f32 %v2097, %v2098
    %s2100 = scalar_lea.vmem [#allocation4], 64
    %2101 = vst [vmem:[%s2100] sm:$0xff] %v2099
    %s2102 = smul.u32 9, 3
    %s2103 = smul.addr %s2102, 8
    %s2104 = scalar_lea.vmem [#allocation3], %s2103
    %v2105 = vld [vmem:[%s2104] sm:$0xff]
    %v2106 = vld [vmem:[%s2104 + $0x8] sm:$0xff]
    %v2107 = vld [vmem:[%s2104 + $0x10] sm:$0xff]
    %2108 = vmatprep.subr.mxu0 %v509
    %2109 = vmatpush1.msra.mxu0 %v508
    %2110 = vmatprep.subr.mxu0 %v512
    %2111 = vmatpush1.msra.mxu0 %v511
    %2112 = vmatprep.subr.mxu0 %v515
    %2113 = vmatpush1.msra.mxu0 %v514
    %2114 = vmatprep.subr.mxu0 %v518
    %2115 = vmatpush1.msra.mxu0 %v517
    %2116 = vmatprep.subr.mxu0 %v521
    %2117 = vmatpush1.msra.mxu0 %v520
    %2118 = vmatprep.subr.mxu0 %v524
    %2119 = vmatpush1.msra.mxu0 %v523
    %2120 = vmatprep.subr.mxu0 %v527
    %2121 = vmatpush1.msra.mxu0 %v526
    %2122 = vmatprep.subr.mxu0 %v530
    %2123 = vmatpush1.msra.mxu0 %v529
    %2124 = vmatprep.subr.mxu0 %v533
    %2125 = vmatpush1.msra.mxu0 %v532
    %2126 = vmatprep.subr.mxu0 %v536
    %2127 = vmatpush1.msra.mxu0 %v535
    %2128 = vmatprep.subr.mxu0 %v539
    %2129 = vmatpush1.msra.mxu0 %v538
    %2130 = vmatprep.subr.mxu0 %v542
    %2131 = vmatpush1.msra.mxu0 %v541
    %2132 = vmatprep.subr.mxu0 %v545
    %2133 = vmatpush1.msra.mxu0 %v544
    %2134 = vmatprep.subr.mxu0 %v548
    %2135 = vmatpush1.msra.mxu0 %v547
    %2136 = vmatprep.subr.mxu0 %v551
    %2137 = vmatpush1.msra.mxu0 %v550
    %2138 = vmatprep.subr.mxu0 %v554
    %2139 = vmatpush1.msra.mxu0 %v553
    %2140 = vmatprep.subr.mxu0 0.0
    %2141 = vmatpush1.msra.mxu0 0.0
    %2142 = vmatprep.subr.mxu0 0.0
    %2143 = vmatpush1.msra.mxu0 0.0
    %2144 = vmatprep.subr.mxu0 0.0
    %2145 = vmatpush1.msra.mxu0 0.0
    %2146 = vmatprep.subr.mxu0 0.0
    %2147 = vmatpush1.msra.mxu0 0.0
    %2148 = vmatprep.subr.mxu0 0.0
    %2149 = vmatpush1.msra.mxu0 0.0
    %2150 = vmatprep.subr.mxu0 0.0
    %2151 = vmatpush1.msra.mxu0 0.0
    %2152 = vmatprep.subr.mxu0 0.0
    %2153 = vmatpush1.msra.mxu0 0.0
    %2154 = vmatprep.subr.mxu0 0.0
    %2155 = vmatpush1.msra.mxu0 0.0
    %2156 = vmatprep.subr.mxu0 0.0
    %2157 = vmatpush1.msra.mxu0 0.0
    %2158 = vmatprep.subr.mxu0 0.0
    %2159 = vmatpush1.msra.mxu0 0.0
    %2160 = vmatprep.subr.mxu0 0.0
    %2161 = vmatpush1.msra.mxu0 0.0
    %2162 = vmatprep.subr.mxu0 0.0
    %2163 = vmatpush1.msra.mxu0 0.0
    %2164 = vmatprep.subr.mxu0 0.0
    %2165 = vmatpush1.msra.mxu0 0.0
    %2166 = vmatprep.subr.mxu0 0.0
    %2167 = vmatpush1.msra.mxu0 0.0
    %2168 = vmatprep.subr.mxu0 0.0
    %2169 = vmatpush1.msra.mxu0 0.0
    %2170 = vmatprep.subr.mxu0 0.0
    %2171 = vmatpush1.msra.mxu0 0.0
    %2172 = vmatprep.mubr.f32.mxu0 0.0
    %2173 = vmatmul.mubr.f32.gmra.mrb[0].mxu0 %v2099
    %v2174 = vpop.f32.mrb[0].mxu0
    %v2175 = vadd.f32 0.0, %v2174
    %v2176 = vpop.f32.mrb[0].mxu0
    %v2177 = vadd.f32 0.0, %v2176
    %2178 = vdwg.mxu0
    %2179 = vmatprep.subr.mxu0 0.0
    %2180 = vmatpush1.msra.mxu0 %v510
    %2181 = vmatprep.subr.mxu0 0.0
    %2182 = vmatpush1.msra.mxu0 %v513
    %2183 = vmatprep.subr.mxu0 0.0
    %2184 = vmatpush1.msra.mxu0 %v516
    %2185 = vmatprep.subr.mxu0 0.0
    %2186 = vmatpush1.msra.mxu0 %v519
    %2187 = vmatprep.subr.mxu0 0.0
    %2188 = vmatpush1.msra.mxu0 %v522
    %2189 = vmatprep.subr.mxu0 0.0
    %2190 = vmatpush1.msra.mxu0 %v525
    %2191 = vmatprep.subr.mxu0 0.0
    %2192 = vmatpush1.msra.mxu0 %v528
    %2193 = vmatprep.subr.mxu0 0.0
    %2194 = vmatpush1.msra.mxu0 %v531
    %2195 = vmatprep.subr.mxu0 0.0
    %2196 = vmatpush1.msra.mxu0 %v534
    %2197 = vmatprep.subr.mxu0 0.0
    %2198 = vmatpush1.msra.mxu0 %v537
    %2199 = vmatprep.subr.mxu0 0.0
    %2200 = vmatpush1.msra.mxu0 %v540
    %2201 = vmatprep.subr.mxu0 0.0
    %2202 = vmatpush1.msra.mxu0 %v543
    %2203 = vmatprep.subr.mxu0 0.0
    %2204 = vmatpush1.msra.mxu0 %v546
    %2205 = vmatprep.subr.mxu0 0.0
    %2206 = vmatpush1.msra.mxu0 %v549
    %2207 = vmatprep.subr.mxu0 0.0
    %2208 = vmatpush1.msra.mxu0 %v552
    %2209 = vmatprep.subr.mxu0 0.0
    %2210 = vmatpush1.msra.mxu0 %v555
    %2211 = vmatprep.subr.mxu0 0.0
    %2212 = vmatpush1.msra.mxu0 0.0
    %2213 = vmatprep.subr.mxu0 0.0
    %2214 = vmatpush1.msra.mxu0 0.0
    %2215 = vmatprep.subr.mxu0 0.0
    %2216 = vmatpush1.msra.mxu0 0.0
    %2217 = vmatprep.subr.mxu0 0.0
    %2218 = vmatpush1.msra.mxu0 0.0
    %2219 = vmatprep.subr.mxu0 0.0
    %2220 = vmatpush1.msra.mxu0 0.0
    %2221 = vmatprep.subr.mxu0 0.0
    %2222 = vmatpush1.msra.mxu0 0.0
    %2223 = vmatprep.subr.mxu0 0.0
    %2224 = vmatpush1.msra.mxu0 0.0
    %2225 = vmatprep.subr.mxu0 0.0
    %2226 = vmatpush1.msra.mxu0 0.0
    %2227 = vmatprep.subr.mxu0 0.0
    %2228 = vmatpush1.msra.mxu0 0.0
    %2229 = vmatprep.subr.mxu0 0.0
    %2230 = vmatpush1.msra.mxu0 0.0
    %2231 = vmatprep.subr.mxu0 0.0
    %2232 = vmatpush1.msra.mxu0 0.0
    %2233 = vmatprep.subr.mxu0 0.0
    %2234 = vmatpush1.msra.mxu0 0.0
    %2235 = vmatprep.subr.mxu0 0.0
    %2236 = vmatpush1.msra.mxu0 0.0
    %2237 = vmatprep.subr.mxu0 0.0
    %2238 = vmatpush1.msra.mxu0 0.0
    %2239 = vmatprep.subr.mxu0 0.0
    %2240 = vmatpush1.msra.mxu0 0.0
    %2241 = vmatprep.subr.mxu0 0.0
    %2242 = vmatpush1.msra.mxu0 0.0
    %2243 = vmatprep.mubr.f32.mxu0 0.0
    %2244 = vmatmul.mubr.f32.gmra.mrb[0].mxu0 %v2099
    %v2245 = vpop.f32.mrb[0].mxu0
    %v2246 = vadd.f32 0.0, %v2245
    %v2247 = vpop.f32.mrb[0].mxu0
    %2248 = vdwg.mxu0
    %v2249 = vadd.f32 %v2105, %v2175
    %v2250 = vxor.u32 %v2249, 2147483648
    %v2251 = vmul.f32 %v2250, 1.442695
    %v2252 = vpow.pop %v2251
    %v2253 = vadd.f32 %v2252, 1.0
    %v2254 = vrcp.pop %v2253
    %v2255 = vmul.f32 1.0, %v2254
    %v2256 = vadd.f32 %v2106, %v2177
    %v2257 = vxor.u32 %v2256, 2147483648
    %v2258 = vmul.f32 %v2257, 1.442695
    %v2259 = vpow.pop %v2258
    %v2260 = vadd.f32 %v2259, 1.0
    %v2261 = vrcp.pop %v2260
    %v2262 = vmul.f32 1.0, %v2261
    %v2263 = vadd.f32 %v2246, %v723
    %v2264 = vmul.f32 %v2255, %v2263
    %v2265 = vadd.f32 %v2107, %v2264
    %v2266 = vtanh.pop %v2265
    %v2267 = vsub.f32 1.0, %v2262
    %v2268 = vmul.f32 %v2267, %v2266
    %v2269 = vmul.f32 %v2262, %v2099
    %v2270 = vadd.f32 %v2268, %v2269
    %s2271 = scalar_lea.vmem [#allocation4], 72
    %2272 = vst [vmem:[%s2271] sm:$0xff] %v2270
    %s2273 = smul.u32 10, 3
    %s2274 = smul.addr %s2273, 8
    %s2275 = scalar_lea.vmem [#allocation3], %s2274
    %v2276 = vld [vmem:[%s2275] sm:$0xff]
    %v2277 = vld [vmem:[%s2275 + $0x8] sm:$0xff]
    %v2278 = vld [vmem:[%s2275 + $0x10] sm:$0xff]
    %2279 = vmatprep.subr.mxu0 %v509
    %2280 = vmatpush1.msra.mxu0 %v508
    %2281 = vmatprep.subr.mxu0 %v512
    %2282 = vmatpush1.msra.mxu0 %v511
    %2283 = vmatprep.subr.mxu0 %v515
    %2284 = vmatpush1.msra.mxu0 %v514
    %2285 = vmatprep.subr.mxu0 %v518
    %2286 = vmatpush1.msra.mxu0 %v517
    %2287 = vmatprep.subr.mxu0 %v521
    %2288 = vmatpush1.msra.mxu0 %v520
    %2289 = vmatprep.subr.mxu0 %v524
    %2290 = vmatpush1.msra.mxu0 %v523
    %2291 = vmatprep.subr.mxu0 %v527
    %2292 = vmatpush1.msra.mxu0 %v526
    %2293 = vmatprep.subr.mxu0 %v530
    %2294 = vmatpush1.msra.mxu0 %v529
    %2295 = vmatprep.subr.mxu0 %v533
    %2296 = vmatpush1.msra.mxu0 %v532
    %2297 = vmatprep.subr.mxu0 %v536
    %2298 = vmatpush1.msra.mxu0 %v535
    %2299 = vmatprep.subr.mxu0 %v539
    %2300 = vmatpush1.msra.mxu0 %v538
    %2301 = vmatprep.subr.mxu0 %v542
    %2302 = vmatpush1.msra.mxu0 %v541
    %2303 = vmatprep.subr.mxu0 %v545
    %2304 = vmatpush1.msra.mxu0 %v544
    %2305 = vmatprep.subr.mxu0 %v548
    %2306 = vmatpush1.msra.mxu0 %v547
    %2307 = vmatprep.subr.mxu0 %v551
    %2308 = vmatpush1.msra.mxu0 %v550
    %2309 = vmatprep.subr.mxu0 %v554
    %2310 = vmatpush1.msra.mxu0 %v553
    %2311 = vmatprep.subr.mxu0 0.0
    %2312 = vmatpush1.msra.mxu0 0.0
    %2313 = vmatprep.subr.mxu0 0.0
    %2314 = vmatpush1.msra.mxu0 0.0
    %2315 = vmatprep.subr.mxu0 0.0
    %2316 = vmatpush1.msra.mxu0 0.0
    %2317 = vmatprep.subr.mxu0 0.0
    %2318 = vmatpush1.msra.mxu0 0.0
    %2319 = vmatprep.subr.mxu0 0.0
    %2320 = vmatpush1.msra.mxu0 0.0
    %2321 = vmatprep.subr.mxu0 0.0
    %2322 = vmatpush1.msra.mxu0 0.0
    %2323 = vmatprep.subr.mxu0 0.0
    %2324 = vmatpush1.msra.mxu0 0.0
    %2325 = vmatprep.subr.mxu0 0.0
    %2326 = vmatpush1.msra.mxu0 0.0
    %2327 = vmatprep.subr.mxu0 0.0
    %2328 = vmatpush1.msra.mxu0 0.0
    %2329 = vmatprep.subr.mxu0 0.0
    %2330 = vmatpush1.msra.mxu0 0.0
    %2331 = vmatprep.subr.mxu0 0.0
    %2332 = vmatpush1.msra.mxu0 0.0
    %2333 = vmatprep.subr.mxu0 0.0
    %2334 = vmatpush1.msra.mxu0 0.0
    %2335 = vmatprep.subr.mxu0 0.0
    %2336 = vmatpush1.msra.mxu0 0.0
    %2337 = vmatprep.subr.mxu0 0.0
    %2338 = vmatpush1.msra.mxu0 0.0
    %2339 = vmatprep.subr.mxu0 0.0
    %2340 = vmatpush1.msra.mxu0 0.0
    %2341 = vmatprep.subr.mxu0 0.0
    %2342 = vmatpush1.msra.mxu0 0.0
    %2343 = vmatprep.mubr.f32.mxu0 0.0
    %2344 = vmatmul.mubr.f32.gmra.mrb[0].mxu0 %v2270
    %v2345 = vpop.f32.mrb[0].mxu0
    %v2346 = vadd.f32 0.0, %v2345
    %v2347 = vpop.f32.mrb[0].mxu0
    %v2348 = vadd.f32 0.0, %v2347
    %2349 = vdwg.mxu0
    %2350 = vmatprep.subr.mxu0 0.0
    %2351 = vmatpush1.msra.mxu0 %v510
    %2352 = vmatprep.subr.mxu0 0.0
    %2353 = vmatpush1.msra.mxu0 %v513
    %2354 = vmatprep.subr.mxu0 0.0
    %2355 = vmatpush1.msra.mxu0 %v516
    %2356 = vmatprep.subr.mxu0 0.0
    %2357 = vmatpush1.msra.mxu0 %v519
    %2358 = vmatprep.subr.mxu0 0.0
    %2359 = vmatpush1.msra.mxu0 %v522
    %2360 = vmatprep.subr.mxu0 0.0
    %2361 = vmatpush1.msra.mxu0 %v525
    %2362 = vmatprep.subr.mxu0 0.0
    %2363 = vmatpush1.msra.mxu0 %v528
    %2364 = vmatprep.subr.mxu0 0.0
    %2365 = vmatpush1.msra.mxu0 %v531
    %2366 = vmatprep.subr.mxu0 0.0
    %2367 = vmatpush1.msra.mxu0 %v534
    %2368 = vmatprep.subr.mxu0 0.0
    %2369 = vmatpush1.msra.mxu0 %v537
    %2370 = vmatprep.subr.mxu0 0.0
    %2371 = vmatpush1.msra.mxu0 %v540
    %2372 = vmatprep.subr.mxu0 0.0
    %2373 = vmatpush1.msra.mxu0 %v543
    %2374 = vmatprep.subr.mxu0 0.0
    %2375 = vmatpush1.msra.mxu0 %v546
    %2376 = vmatprep.subr.mxu0 0.0
    %2377 = vmatpush1.msra.mxu0 %v549
    %2378 = vmatprep.subr.mxu0 0.0
    %2379 = vmatpush1.msra.mxu0 %v552
    %2380 = vmatprep.subr.mxu0 0.0
    %2381 = vmatpush1.msra.mxu0 %v555
    %2382 = vmatprep.subr.mxu0 0.0
    %2383 = vmatpush1.msra.mxu0 0.0
    %2384 = vmatprep.subr.mxu0 0.0
    %2385 = vmatpush1.msra.mxu0 0.0
    %2386 = vmatprep.subr.mxu0 0.0
    %2387 = vmatpush1.msra.mxu0 0.0
    %2388 = vmatprep.subr.mxu0 0.0
    %2389 = vmatpush1.msra.mxu0 0.0
    %2390 = vmatprep.subr.mxu0 0.0
    %2391 = vmatpush1.msra.mxu0 0.0
    %2392 = vmatprep.subr.mxu0 0.0
    %2393 = vmatpush1.msra.mxu0 0.0
    %2394 = vmatprep.subr.mxu0 0.0
    %2395 = vmatpush1.msra.mxu0 0.0
    %2396 = vmatprep.subr.mxu0 0.0
    %2397 = vmatpush1.msra.mxu0 0.0
    %2398 = vmatprep.subr.mxu0 0.0
    %2399 = vmatpush1.msra.mxu0 0.0
    %2400 = vmatprep.subr.mxu0 0.0
    %2401 = vmatpush1.msra.mxu0 0.0
    %2402 = vmatprep.subr.mxu0 0.0
    %2403 = vmatpush1.msra.mxu0 0.0
    %2404 = vmatprep.subr.mxu0 0.0
    %2405 = vmatpush1.msra.mxu0 0.0
    %2406 = vmatprep.subr.mxu0 0.0
    %2407 = vmatpush1.msra.mxu0 0.0
    %2408 = vmatprep.subr.mxu0 0.0
    %2409 = vmatpush1.msra.mxu0 0.0
    %2410 = vmatprep.subr.mxu0 0.0
    %2411 = vmatpush1.msra.mxu0 0.0
    %2412 = vmatprep.subr.mxu0 0.0
    %2413 = vmatpush1.msra.mxu0 0.0
    %2414 = vmatprep.mubr.f32.mxu0 0.0
    %2415 = vmatmul.mubr.f32.gmra.mrb[0].mxu0 %v2270
    %v2416 = vpop.f32.mrb[0].mxu0
    %v2417 = vadd.f32 0.0, %v2416
    %v2418 = vpop.f32.mrb[0].mxu0
    %2419 = vdwg.mxu0
    %v2420 = vadd.f32 %v2276, %v2346
    %v2421 = vxor.u32 %v2420, 2147483648
    %v2422 = vmul.f32 %v2421, 1.442695
    %v2423 = vpow.pop %v2422
    %v2424 = vadd.f32 %v2423, 1.0
    %v2425 = vrcp.pop %v2424
    %v2426 = vmul.f32 1.0, %v2425
    %v2427 = vadd.f32 %v2277, %v2348
    %v2428 = vxor.u32 %v2427, 2147483648
    %v2429 = vmul.f32 %v2428, 1.442695
    %v2430 = vpow.pop %v2429
    %v2431 = vadd.f32 %v2430, 1.0
    %v2432 = vrcp.pop %v2431
    %v2433 = vmul.f32 1.0, %v2432
    %v2434 = vadd.f32 %v2417, %v723
    %v2435 = vmul.f32 %v2426, %v2434
    %v2436 = vadd.f32 %v2278, %v2435
    %v2437 = vtanh.pop %v2436
    %v2438 = vsub.f32 1.0, %v2433
    %v2439 = vmul.f32 %v2438, %v2437
    %v2440 = vmul.f32 %v2433, %v2270
    %v2441 = vadd.f32 %v2439, %v2440
    %s2442 = scalar_lea.vmem [#allocation4], 80
    %2443 = vst [vmem:[%s2442] sm:$0xff] %v2441
    %s2444 = smul.u32 11, 3
    %s2445 = smul.addr %s2444, 8
    %s2446 = scalar_lea.vmem [#allocation3], %s2445
    %v2447 = vld [vmem:[%s2446] sm:$0xff]
    %v2448 = vld [vmem:[%s2446 + $0x8] sm:$0xff]
    %v2449 = vld [vmem:[%s2446 + $0x10] sm:$0xff]
    %2450 = vmatprep.subr.mxu0 %v509
    %2451 = vmatpush1.msra.mxu0 %v508
    %2452 = vmatprep.subr.mxu0 %v512
    %2453 = vmatpush1.msra.mxu0 %v511
    %2454 = vmatprep.subr.mxu0 %v515
    %2455 = vmatpush1.msra.mxu0 %v514
    %2456 = vmatprep.subr.mxu0 %v518
    %2457 = vmatpush1.msra.mxu0 %v517
    %2458 = vmatprep.subr.mxu0 %v521
    %2459 = vmatpush1.msra.mxu0 %v520
    %2460 = vmatprep.subr.mxu0 %v524
    %2461 = vmatpush1.msra.mxu0 %v523
    %2462 = vmatprep.subr.mxu0 %v527
    %2463 = vmatpush1.msra.mxu0 %v526
    %2464 = vmatprep.subr.mxu0 %v530
    %2465 = vmatpush1.msra.mxu0 %v529
    %2466 = vmatprep.subr.mxu0 %v533
    %2467 = vmatpush1.msra.mxu0 %v532
    %2468 = vmatprep.subr.mxu0 %v536
    %2469 = vmatpush1.msra.mxu0 %v535
    %2470 = vmatprep.subr.mxu0 %v539
    %2471 = vmatpush1.msra.mxu0 %v538
    %2472 = vmatprep.subr.mxu0 %v542
    %2473 = vmatpush1.msra.mxu0 %v541
    %2474 = vmatprep.subr.mxu0 %v545
    %2475 = vmatpush1.msra.mxu0 %v544
    %2476 = vmatprep.subr.mxu0 %v548
    %2477 = vmatpush1.msra.mxu0 %v547
    %2478 = vmatprep.subr.mxu0 %v551
    %2479 = vmatpush1.msra.mxu0 %v550
    %2480 = vmatprep.subr.mxu0 %v554
    %2481 = vmatpush1.msra.mxu0 %v553
    %2482 = vmatprep.subr.mxu0 0.0
    %2483 = vmatpush1.msra.mxu0 0.0
    %2484 = vmatprep.subr.mxu0 0.0
    %2485 = vmatpush1.msra.mxu0 0.0
    %2486 = vmatprep.subr.mxu0 0.0
    %2487 = vmatpush1.msra.mxu0 0.0
    %2488 = vmatprep.subr.mxu0 0.0
    %2489 = vmatpush1.msra.mxu0 0.0
    %2490 = vmatprep.subr.mxu0 0.0
    %2491 = vmatpush1.msra.mxu0 0.0
    %2492 = vmatprep.subr.mxu0 0.0
    %2493 = vmatpush1.msra.mxu0 0.0
    %2494 = vmatprep.subr.mxu0 0.0
    %2495 = vmatpush1.msra.mxu0 0.0
    %2496 = vmatprep.subr.mxu0 0.0
    %2497 = vmatpush1.msra.mxu0 0.0
    %2498 = vmatprep.subr.mxu0 0.0
    %2499 = vmatpush1.msra.mxu0 0.0
    %2500 = vmatprep.subr.mxu0 0.0
    %2501 = vmatpush1.msra.mxu0 0.0
    %2502 = vmatprep.subr.mxu0 0.0
    %2503 = vmatpush1.msra.mxu0 0.0
    %2504 = vmatprep.subr.mxu0 0.0
    %2505 = vmatpush1.msra.mxu0 0.0
    %2506 = vmatprep.subr.mxu0 0.0
    %2507 = vmatpush1.msra.mxu0 0.0
    %2508 = vmatprep.subr.mxu0 0.0
    %2509 = vmatpush1.msra.mxu0 0.0
    %2510 = vmatprep.subr.mxu0 0.0
    %2511 = vmatpush1.msra.mxu0 0.0
    %2512 = vmatprep.subr.mxu0 0.0
    %2513 = vmatpush1.msra.mxu0 0.0
    %2514 = vmatprep.mubr.f32.mxu0 0.0
    %2515 = vmatmul.mubr.f32.gmra.mrb[0].mxu0 %v2441
    %v2516 = vpop.f32.mrb[0].mxu0
    %v2517 = vadd.f32 0.0, %v2516
    %v2518 = vpop.f32.mrb[0].mxu0
    %v2519 = vadd.f32 0.0, %v2518
    %2520 = vdwg.mxu0
    %2521 = vmatprep.subr.mxu0 0.0
    %2522 = vmatpush1.msra.mxu0 %v510
    %2523 = vmatprep.subr.mxu0 0.0
    %2524 = vmatpush1.msra.mxu0 %v513
    %2525 = vmatprep.subr.mxu0 0.0
    %2526 = vmatpush1.msra.mxu0 %v516
    %2527 = vmatprep.subr.mxu0 0.0
    %2528 = vmatpush1.msra.mxu0 %v519
    %2529 = vmatprep.subr.mxu0 0.0
    %2530 = vmatpush1.msra.mxu0 %v522
    %2531 = vmatprep.subr.mxu0 0.0
    %2532 = vmatpush1.msra.mxu0 %v525
    %2533 = vmatprep.subr.mxu0 0.0
    %2534 = vmatpush1.msra.mxu0 %v528
    %2535 = vmatprep.subr.mxu0 0.0
    %2536 = vmatpush1.msra.mxu0 %v531
    %2537 = vmatprep.subr.mxu0 0.0
    %2538 = vmatpush1.msra.mxu0 %v534
    %2539 = vmatprep.subr.mxu0 0.0
    %2540 = vmatpush1.msra.mxu0 %v537
    %2541 = vmatprep.subr.mxu0 0.0
    %2542 = vmatpush1.msra.mxu0 %v540
    %2543 = vmatprep.subr.mxu0 0.0
    %2544 = vmatpush1.msra.mxu0 %v543
    %2545 = vmatprep.subr.mxu0 0.0
    %2546 = vmatpush1.msra.mxu0 %v546
    %2547 = vmatprep.subr.mxu0 0.0
    %2548 = vmatpush1.msra.mxu0 %v549
    %2549 = vmatprep.subr.mxu0 0.0
    %2550 = vmatpush1.msra.mxu0 %v552
    %2551 = vmatprep.subr.mxu0 0.0
    %2552 = vmatpush1.msra.mxu0 %v555
    %2553 = vmatprep.subr.mxu0 0.0
    %2554 = vmatpush1.msra.mxu0 0.0
    %2555 = vmatprep.subr.mxu0 0.0
    %2556 = vmatpush1.msra.mxu0 0.0
    %2557 = vmatprep.subr.mxu0 0.0
    %2558 = vmatpush1.msra.mxu0 0.0
    %2559 = vmatprep.subr.mxu0 0.0
    %2560 = vmatpush1.msra.mxu0 0.0
    %2561 = vmatprep.subr.mxu0 0.0
    %2562 = vmatpush1.msra.mxu0 0.0
    %2563 = vmatprep.subr.mxu0 0.0
    %2564 = vmatpush1.msra.mxu0 0.0
    %2565 = vmatprep.subr.mxu0 0.0
    %2566 = vmatpush1.msra.mxu0 0.0
    %2567 = vmatprep.subr.mxu0 0.0
    %2568 = vmatpush1.msra.mxu0 0.0
    %2569 = vmatprep.subr.mxu0 0.0
    %2570 = vmatpush1.msra.mxu0 0.0
    %2571 = vmatprep.subr.mxu0 0.0
    %2572 = vmatpush1.msra.mxu0 0.0
    %2573 = vmatprep.subr.mxu0 0.0
    %2574 = vmatpush1.msra.mxu0 0.0
    %2575 = vmatprep.subr.mxu0 0.0
    %2576 = vmatpush1.msra.mxu0 0.0
    %2577 = vmatprep.subr.mxu0 0.0
    %2578 = vmatpush1.msra.mxu0 0.0
    %2579 = vmatprep.subr.mxu0 0.0
    %2580 = vmatpush1.msra.mxu0 0.0
    %2581 = vmatprep.subr.mxu0 0.0
    %2582 = vmatpush1.msra.mxu0 0.0
    %2583 = vmatprep.subr.mxu0 0.0
    %2584 = vmatpush1.msra.mxu0 0.0
    %2585 = vmatprep.mubr.f32.mxu0 0.0
    %2586 = vmatmul.mubr.f32.gmra.mrb[0].mxu0 %v2441
    %v2587 = vpop.f32.mrb[0].mxu0
    %v2588 = vadd.f32 0.0, %v2587
    %v2589 = vpop.f32.mrb[0].mxu0
    %2590 = vdwg.mxu0
    %v2591 = vadd.f32 %v2447, %v2517
    %v2592 = vxor.u32 %v2591, 2147483648
    %v2593 = vmul.f32 %v2592, 1.442695
    %v2594 = vpow.pop %v2593
    %v2595 = vadd.f32 %v2594, 1.0
    %v2596 = vrcp.pop %v2595
    %v2597 = vmul.f32 1.0, %v2596
    %v2598 = vadd.f32 %v2448, %v2519
    %v2599 = vxor.u32 %v2598, 2147483648
    %v2600 = vmul.f32 %v2599, 1.442695
    %v2601 = vpow.pop %v2600
    %v2602 = vadd.f32 %v2601, 1.0
    %v2603 = vrcp.pop %v2602
    %v2604 = vmul.f32 1.0, %v2603
    %v2605 = vadd.f32 %v2588, %v723
    %v2606 = vmul.f32 %v2597, %v2605
    %v2607 = vadd.f32 %v2449, %v2606
    %v2608 = vtanh.pop %v2607
    %v2609 = vsub.f32 1.0, %v2604
    %v2610 = vmul.f32 %v2609, %v2608
    %v2611 = vmul.f32 %v2604, %v2441
    %v2612 = vadd.f32 %v2610, %v2611
    %s2613 = scalar_lea.vmem [#allocation4], 88
    %2614 = vst [vmem:[%s2613] sm:$0xff] %v2612
    %s2615 = smul.u32 12, 3
    %s2616 = smul.addr %s2615, 8
    %s2617 = scalar_lea.vmem [#allocation3], %s2616
    %v2618 = vld [vmem:[%s2617] sm:$0xff]
    %v2619 = vld [vmem:[%s2617 + $0x8] sm:$0xff]
    %v2620 = vld [vmem:[%s2617 + $0x10] sm:$0xff]
    %2621 = vmatprep.subr.mxu0 %v509
    %2622 = vmatpush1.msra.mxu0 %v508
    %2623 = vmatprep.subr.mxu0 %v512
    %2624 = vmatpush1.msra.mxu0 %v511
    %2625 = vmatprep.subr.mxu0 %v515
    %2626 = vmatpush1.msra.mxu0 %v514
    %2627 = vmatprep.subr.mxu0 %v518
    %2628 = vmatpush1.msra.mxu0 %v517
    %2629 = vmatprep.subr.mxu0 %v521
    %2630 = vmatpush1.msra.mxu0 %v520
    %2631 = vmatprep.subr.mxu0 %v524
    %2632 = vmatpush1.msra.mxu0 %v523
    %2633 = vmatprep.subr.mxu0 %v527
    %2634 = vmatpush1.msra.mxu0 %v526
    %2635 = vmatprep.subr.mxu0 %v530
    %2636 = vmatpush1.msra.mxu0 %v529
    %2637 = vmatprep.subr.mxu0 %v533
    %2638 = vmatpush1.msra.mxu0 %v532
    %2639 = vmatprep.subr.mxu0 %v536
    %2640 = vmatpush1.msra.mxu0 %v535
    %2641 = vmatprep.subr.mxu0 %v539
    %2642 = vmatpush1.msra.mxu0 %v538
    %2643 = vmatprep.subr.mxu0 %v542
    %2644 = vmatpush1.msra.mxu0 %v541
    %2645 = vmatprep.subr.mxu0 %v545
    %2646 = vmatpush1.msra.mxu0 %v544
    %2647 = vmatprep.subr.mxu0 %v548
    %2648 = vmatpush1.msra.mxu0 %v547
    %2649 = vmatprep.subr.mxu0 %v551
    %2650 = vmatpush1.msra.mxu0 %v550
    %2651 = vmatprep.subr.mxu0 %v554
    %2652 = vmatpush1.msra.mxu0 %v553
    %2653 = vmatprep.subr.mxu0 0.0
    %2654 = vmatpush1.msra.mxu0 0.0
    %2655 = vmatprep.subr.mxu0 0.0
    %2656 = vmatpush1.msra.mxu0 0.0
    %2657 = vmatprep.subr.mxu0 0.0
    %2658 = vmatpush1.msra.mxu0 0.0
    %2659 = vmatprep.subr.mxu0 0.0
    %2660 = vmatpush1.msra.mxu0 0.0
    %2661 = vmatprep.subr.mxu0 0.0
    %2662 = vmatpush1.msra.mxu0 0.0
    %2663 = vmatprep.subr.mxu0 0.0
    %2664 = vmatpush1.msra.mxu0 0.0
    %2665 = vmatprep.subr.mxu0 0.0
    %2666 = vmatpush1.msra.mxu0 0.0
    %2667 = vmatprep.subr.mxu0 0.0
    %2668 = vmatpush1.msra.mxu0 0.0
    %2669 = vmatprep.subr.mxu0 0.0
    %2670 = vmatpush1.msra.mxu0 0.0
    %2671 = vmatprep.subr.mxu0 0.0
    %2672 = vmatpush1.msra.mxu0 0.0
    %2673 = vmatprep.subr.mxu0 0.0
    %2674 = vmatpush1.msra.mxu0 0.0
    %2675 = vmatprep.subr.mxu0 0.0
    %2676 = vmatpush1.msra.mxu0 0.0
    %2677 = vmatprep.subr.mxu0 0.0
    %2678 = vmatpush1.msra.mxu0 0.0
    %2679 = vmatprep.subr.mxu0 0.0
    %2680 = vmatpush1.msra.mxu0 0.0
    %2681 = vmatprep.subr.mxu0 0.0
    %2682 = vmatpush1.msra.mxu0 0.0
    %2683 = vmatprep.subr.mxu0 0.0
    %2684 = vmatpush1.msra.mxu0 0.0
    %2685 = vmatprep.mubr.f32.mxu0 0.0
    %2686 = vmatmul.mubr.f32.gmra.mrb[0].mxu0 %v2612
    %v2687 = vpop.f32.mrb[0].mxu0
    %v2688 = vadd.f32 0.0, %v2687
    %v2689 = vpop.f32.mrb[0].mxu0
    %v2690 = vadd.f32 0.0, %v2689
    %2691 = vdwg.mxu0
    %2692 = vmatprep.subr.mxu0 0.0
    %2693 = vmatpush1.msra.mxu0 %v510
    %2694 = vmatprep.subr.mxu0 0.0
    %2695 = vmatpush1.msra.mxu0 %v513
    %2696 = vmatprep.subr.mxu0 0.0
    %2697 = vmatpush1.msra.mxu0 %v516
    %2698 = vmatprep.subr.mxu0 0.0
    %2699 = vmatpush1.msra.mxu0 %v519
    %2700 = vmatprep.subr.mxu0 0.0
    %2701 = vmatpush1.msra.mxu0 %v522
    %2702 = vmatprep.subr.mxu0 0.0
    %2703 = vmatpush1.msra.mxu0 %v525
    %2704 = vmatprep.subr.mxu0 0.0
    %2705 = vmatpush1.msra.mxu0 %v528
    %2706 = vmatprep.subr.mxu0 0.0
    %2707 = vmatpush1.msra.mxu0 %v531
    %2708 = vmatprep.subr.mxu0 0.0
    %2709 = vmatpush1.msra.mxu0 %v534
    %2710 = vmatprep.subr.mxu0 0.0
    %2711 = vmatpush1.msra.mxu0 %v537
    %2712 = vmatprep.subr.mxu0 0.0
    %2713 = vmatpush1.msra.mxu0 %v540
    %2714 = vmatprep.subr.mxu0 0.0
    %2715 = vmatpush1.msra.mxu0 %v543
    %2716 = vmatprep.subr.mxu0 0.0
    %2717 = vmatpush1.msra.mxu0 %v546
    %2718 = vmatprep.subr.mxu0 0.0
    %2719 = vmatpush1.msra.mxu0 %v549
    %2720 = vmatprep.subr.mxu0 0.0
    %2721 = vmatpush1.msra.mxu0 %v552
    %2722 = vmatprep.subr.mxu0 0.0
    %2723 = vmatpush1.msra.mxu0 %v555
    %2724 = vmatprep.subr.mxu0 0.0
    %2725 = vmatpush1.msra.mxu0 0.0
    %2726 = vmatprep.subr.mxu0 0.0
    %2727 = vmatpush1.msra.mxu0 0.0
    %2728 = vmatprep.subr.mxu0 0.0
    %2729 = vmatpush1.msra.mxu0 0.0
    %2730 = vmatprep.subr.mxu0 0.0
    %2731 = vmatpush1.msra.mxu0 0.0
    %2732 = vmatprep.subr.mxu0 0.0
    %2733 = vmatpush1.msra.mxu0 0.0
    %2734 = vmatprep.subr.mxu0 0.0
    %2735 = vmatpush1.msra.mxu0 0.0
    %2736 = vmatprep.subr.mxu0 0.0
    %2737 = vmatpush1.msra.mxu0 0.0
    %2738 = vmatprep.subr.mxu0 0.0
    %2739 = vmatpush1.msra.mxu0 0.0
    %2740 = vmatprep.subr.mxu0 0.0
    %2741 = vmatpush1.msra.mxu0 0.0
    %2742 = vmatprep.subr.mxu0 0.0
    %2743 = vmatpush1.msra.mxu0 0.0
    %2744 = vmatprep.subr.mxu0 0.0
    %2745 = vmatpush1.msra.mxu0 0.0
    %2746 = vmatprep.subr.mxu0 0.0
    %2747 = vmatpush1.msra.mxu0 0.0
    %2748 = vmatprep.subr.mxu0 0.0
    %2749 = vmatpush1.msra.mxu0 0.0
    %2750 = vmatprep.subr.mxu0 0.0
    %2751 = vmatpush1.msra.mxu0 0.0
    %2752 = vmatprep.subr.mxu0 0.0
    %2753 = vmatpush1.msra.mxu0 0.0
    %2754 = vmatprep.subr.mxu0 0.0
    %2755 = vmatpush1.msra.mxu0 0.0
    %2756 = vmatprep.mubr.f32.mxu0 0.0
    %2757 = vmatmul.mubr.f32.gmra.mrb[0].mxu0 %v2612
    %v2758 = vpop.f32.mrb[0].mxu0
    %v2759 = vadd.f32 0.0, %v2758
    %v2760 = vpop.f32.mrb[0].mxu0
    %2761 = vdwg.mxu0
    %v2762 = vadd.f32 %v2618, %v2688
    %v2763 = vxor.u32 %v2762, 2147483648
    %v2764 = vmul.f32 %v2763, 1.442695
    %v2765 = vpow.pop %v2764
    %v2766 = vadd.f32 %v2765, 1.0
    %v2767 = vrcp.pop %v2766
    %v2768 = vmul.f32 1.0, %v2767
    %v2769 = vadd.f32 %v2619, %v2690
    %v2770 = vxor.u32 %v2769, 2147483648
    %v2771 = vmul.f32 %v2770, 1.442695
    %v2772 = vpow.pop %v2771
    %v2773 = vadd.f32 %v2772, 1.0
    %v2774 = vrcp.pop %v2773
    %v2775 = vmul.f32 1.0, %v2774
    %v2776 = vadd.f32 %v2759, %v723
    %v2777 = vmul.f32 %v2768, %v2776
    %v2778 = vadd.f32 %v2620, %v2777
    %v2779 = vtanh.pop %v2778
    %v2780 = vsub.f32 1.0, %v2775
    %v2781 = vmul.f32 %v2780, %v2779
    %v2782 = vmul.f32 %v2775, %v2612
    %v2783 = vadd.f32 %v2781, %v2782
    %s2784 = scalar_lea.vmem [#allocation4], 96
    %2785 = vst [vmem:[%s2784] sm:$0xff] %v2783
    %s2786 = smul.u32 13, 3
    %s2787 = smul.addr %s2786, 8
    %s2788 = scalar_lea.vmem [#allocation3], %s2787
    %v2789 = vld [vmem:[%s2788] sm:$0xff]
    %v2790 = vld [vmem:[%s2788 + $0x8] sm:$0xff]
    %v2791 = vld [vmem:[%s2788 + $0x10] sm:$0xff]
    %2792 = vmatprep.subr.mxu0 %v509
    %2793 = vmatpush1.msra.mxu0 %v508
    %2794 = vmatprep.subr.mxu0 %v512
    %2795 = vmatpush1.msra.mxu0 %v511
    %2796 = vmatprep.subr.mxu0 %v515
    %2797 = vmatpush1.msra.mxu0 %v514
    %2798 = vmatprep.subr.mxu0 %v518
    %2799 = vmatpush1.msra.mxu0 %v517
    %2800 = vmatprep.subr.mxu0 %v521
    %2801 = vmatpush1.msra.mxu0 %v520
    %2802 = vmatprep.subr.mxu0 %v524
    %2803 = vmatpush1.msra.mxu0 %v523
    %2804 = vmatprep.subr.mxu0 %v527
    %2805 = vmatpush1.msra.mxu0 %v526
    %2806 = vmatprep.subr.mxu0 %v530
    %2807 = vmatpush1.msra.mxu0 %v529
    %2808 = vmatprep.subr.mxu0 %v533
    %2809 = vmatpush1.msra.mxu0 %v532
    %2810 = vmatprep.subr.mxu0 %v536
    %2811 = vmatpush1.msra.mxu0 %v535
    %2812 = vmatprep.subr.mxu0 %v539
    %2813 = vmatpush1.msra.mxu0 %v538
    %2814 = vmatprep.subr.mxu0 %v542
    %2815 = vmatpush1.msra.mxu0 %v541
    %2816 = vmatprep.subr.mxu0 %v545
    %2817 = vmatpush1.msra.mxu0 %v544
    %2818 = vmatprep.subr.mxu0 %v548
    %2819 = vmatpush1.msra.mxu0 %v547
    %2820 = vmatprep.subr.mxu0 %v551
    %2821 = vmatpush1.msra.mxu0 %v550
    %2822 = vmatprep.subr.mxu0 %v554
    %2823 = vmatpush1.msra.mxu0 %v553
    %2824 = vmatprep.subr.mxu0 0.0
    %2825 = vmatpush1.msra.mxu0 0.0
    %2826 = vmatprep.subr.mxu0 0.0
    %2827 = vmatpush1.msra.mxu0 0.0
    %2828 = vmatprep.subr.mxu0 0.0
    %2829 = vmatpush1.msra.mxu0 0.0
    %2830 = vmatprep.subr.mxu0 0.0
    %2831 = vmatpush1.msra.mxu0 0.0
    %2832 = vmatprep.subr.mxu0 0.0
    %2833 = vmatpush1.msra.mxu0 0.0
    %2834 = vmatprep.subr.mxu0 0.0
    %2835 = vmatpush1.msra.mxu0 0.0
    %2836 = vmatprep.subr.mxu0 0.0
    %2837 = vmatpush1.msra.mxu0 0.0
    %2838 = vmatprep.subr.mxu0 0.0
    %2839 = vmatpush1.msra.mxu0 0.0
    %2840 = vmatprep.subr.mxu0 0.0
    %2841 = vmatpush1.msra.mxu0 0.0
    %2842 = vmatprep.subr.mxu0 0.0
    %2843 = vmatpush1.msra.mxu0 0.0
    %2844 = vmatprep.subr.mxu0 0.0
    %2845 = vmatpush1.msra.mxu0 0.0
    %2846 = vmatprep.subr.mxu0 0.0
    %2847 = vmatpush1.msra.mxu0 0.0
    %2848 = vmatprep.subr.mxu0 0.0
    %2849 = vmatpush1.msra.mxu0 0.0
    %2850 = vmatprep.subr.mxu0 0.0
    %2851 = vmatpush1.msra.mxu0 0.0
    %2852 = vmatprep.subr.mxu0 0.0
    %2853 = vmatpush1.msra.mxu0 0.0
    %2854 = vmatprep.subr.mxu0 0.0
    %2855 = vmatpush1.msra.mxu0 0.0
    %2856 = vmatprep.mubr.f32.mxu0 0.0
    %2857 = vmatmul.mubr.f32.gmra.mrb[0].mxu0 %v2783
    %v2858 = vpop.f32.mrb[0].mxu0
    %v2859 = vadd.f32 0.0, %v2858
    %v2860 = vpop.f32.mrb[0].mxu0
    %v2861 = vadd.f32 0.0, %v2860
    %2862 = vdwg.mxu0
    %2863 = vmatprep.subr.mxu0 0.0
    %2864 = vmatpush1.msra.mxu0 %v510
    %2865 = vmatprep.subr.mxu0 0.0
    %2866 = vmatpush1.msra.mxu0 %v513
    %2867 = vmatprep.subr.mxu0 0.0
    %2868 = vmatpush1.msra.mxu0 %v516
    %2869 = vmatprep.subr.mxu0 0.0
    %2870 = vmatpush1.msra.mxu0 %v519
    %2871 = vmatprep.subr.mxu0 0.0
    %2872 = vmatpush1.msra.mxu0 %v522
    %2873 = vmatprep.subr.mxu0 0.0
    %2874 = vmatpush1.msra.mxu0 %v525
    %2875 = vmatprep.subr.mxu0 0.0
    %2876 = vmatpush1.msra.mxu0 %v528
    %2877 = vmatprep.subr.mxu0 0.0
    %2878 = vmatpush1.msra.mxu0 %v531
    %2879 = vmatprep.subr.mxu0 0.0
    %2880 = vmatpush1.msra.mxu0 %v534
    %2881 = vmatprep.subr.mxu0 0.0
    %2882 = vmatpush1.msra.mxu0 %v537
    %2883 = vmatprep.subr.mxu0 0.0
    %2884 = vmatpush1.msra.mxu0 %v540
    %2885 = vmatprep.subr.mxu0 0.0
    %2886 = vmatpush1.msra.mxu0 %v543
    %2887 = vmatprep.subr.mxu0 0.0
    %2888 = vmatpush1.msra.mxu0 %v546
    %2889 = vmatprep.subr.mxu0 0.0
    %2890 = vmatpush1.msra.mxu0 %v549
    %2891 = vmatprep.subr.mxu0 0.0
    %2892 = vmatpush1.msra.mxu0 %v552
    %2893 = vmatprep.subr.mxu0 0.0
    %2894 = vmatpush1.msra.mxu0 %v555
    %2895 = vmatprep.subr.mxu0 0.0
    %2896 = vmatpush1.msra.mxu0 0.0
    %2897 = vmatprep.subr.mxu0 0.0
    %2898 = vmatpush1.msra.mxu0 0.0
    %2899 = vmatprep.subr.mxu0 0.0
    %2900 = vmatpush1.msra.mxu0 0.0
    %2901 = vmatprep.subr.mxu0 0.0
    %2902 = vmatpush1.msra.mxu0 0.0
    %2903 = vmatprep.subr.mxu0 0.0
    %2904 = vmatpush1.msra.mxu0 0.0
    %2905 = vmatprep.subr.mxu0 0.0
    %2906 = vmatpush1.msra.mxu0 0.0
    %2907 = vmatprep.subr.mxu0 0.0
    %2908 = vmatpush1.msra.mxu0 0.0
    %2909 = vmatprep.subr.mxu0 0.0
    %2910 = vmatpush1.msra.mxu0 0.0
    %2911 = vmatprep.subr.mxu0 0.0
    %2912 = vmatpush1.msra.mxu0 0.0
    %2913 = vmatprep.subr.mxu0 0.0
    %2914 = vmatpush1.msra.mxu0 0.0
    %2915 = vmatprep.subr.mxu0 0.0
    %2916 = vmatpush1.msra.mxu0 0.0
    %2917 = vmatprep.subr.mxu0 0.0
    %2918 = vmatpush1.msra.mxu0 0.0
    %2919 = vmatprep.subr.mxu0 0.0
    %2920 = vmatpush1.msra.mxu0 0.0
    %2921 = vmatprep.subr.mxu0 0.0
    %2922 = vmatpush1.msra.mxu0 0.0
    %2923 = vmatprep.subr.mxu0 0.0
    %2924 = vmatpush1.msra.mxu0 0.0
    %2925 = vmatprep.subr.mxu0 0.0
    %2926 = vmatpush1.msra.mxu0 0.0
    %2927 = vmatprep.mubr.f32.mxu0 0.0
    %2928 = vmatmul.mubr.f32.gmra.mrb[0].mxu0 %v2783
    %v2929 = vpop.f32.mrb[0].mxu0
    %v2930 = vadd.f32 0.0, %v2929
    %v2931 = vpop.f32.mrb[0].mxu0
    %2932 = vdwg.mxu0
    %v2933 = vadd.f32 %v2789, %v2859
    %v2934 = vxor.u32 %v2933, 2147483648
    %v2935 = vmul.f32 %v2934, 1.442695
    %v2936 = vpow.pop %v2935
    %v2937 = vadd.f32 %v2936, 1.0
    %v2938 = vrcp.pop %v2937
    %v2939 = vmul.f32 1.0, %v2938
    %v2940 = vadd.f32 %v2790, %v2861
    %v2941 = vxor.u32 %v2940, 2147483648
    %v2942 = vmul.f32 %v2941, 1.442695
    %v2943 = vpow.pop %v2942
    %v2944 = vadd.f32 %v2943, 1.0
    %v2945 = vrcp.pop %v2944
    %v2946 = vmul.f32 1.0, %v2945
    %v2947 = vadd.f32 %v2930, %v723
    %v2948 = vmul.f32 %v2939, %v2947
    %v2949 = vadd.f32 %v2791, %v2948
    %v2950 = vtanh.pop %v2949
    %v2951 = vsub.f32 1.0, %v2946
    %v2952 = vmul.f32 %v2951, %v2950
    %v2953 = vmul.f32 %v2946, %v2783
    %v2954 = vadd.f32 %v2952, %v2953
    %s2955 = scalar_lea.vmem [#allocation4], 104
    %2956 = vst [vmem:[%s2955] sm:$0xff] %v2954
    %s2957 = smul.u32 14, 3
    %s2958 = smul.addr %s2957, 8
    %s2959 = scalar_lea.vmem [#allocation3], %s2958
    %v2960 = vld [vmem:[%s2959] sm:$0xff]
    %v2961 = vld [vmem:[%s2959 + $0x8] sm:$0xff]
    %v2962 = vld [vmem:[%s2959 + $0x10] sm:$0xff]
    %2963 = vmatprep.subr.mxu0 %v509
    %2964 = vmatpush1.msra.mxu0 %v508
    %2965 = vmatprep.subr.mxu0 %v512
    %2966 = vmatpush1.msra.mxu0 %v511
    %2967 = vmatprep.subr.mxu0 %v515
    %2968 = vmatpush1.msra.mxu0 %v514
    %2969 = vmatprep.subr.mxu0 %v518
    %2970 = vmatpush1.msra.mxu0 %v517
    %2971 = vmatprep.subr.mxu0 %v521
    %2972 = vmatpush1.msra.mxu0 %v520
    %2973 = vmatprep.subr.mxu0 %v524
    %2974 = vmatpush1.msra.mxu0 %v523
    %2975 = vmatprep.subr.mxu0 %v527
    %2976 = vmatpush1.msra.mxu0 %v526
    %2977 = vmatprep.subr.mxu0 %v530
    %2978 = vmatpush1.msra.mxu0 %v529
    %2979 = vmatprep.subr.mxu0 %v533
    %2980 = vmatpush1.msra.mxu0 %v532
    %2981 = vmatprep.subr.mxu0 %v536
    %2982 = vmatpush1.msra.mxu0 %v535
    %2983 = vmatprep.subr.mxu0 %v539
    %2984 = vmatpush1.msra.mxu0 %v538
    %2985 = vmatprep.subr.mxu0 %v542
    %2986 = vmatpush1.msra.mxu0 %v541
    %2987 = vmatprep.subr.mxu0 %v545
    %2988 = vmatpush1.msra.mxu0 %v544
    %2989 = vmatprep.subr.mxu0 %v548
    %2990 = vmatpush1.msra.mxu0 %v547
    %2991 = vmatprep.subr.mxu0 %v551
    %2992 = vmatpush1.msra.mxu0 %v550
    %2993 = vmatprep.subr.mxu0 %v554
    %2994 = vmatpush1.msra.mxu0 %v553
    %2995 = vmatprep.subr.mxu0 0.0
    %2996 = vmatpush1.msra.mxu0 0.0
    %2997 = vmatprep.subr.mxu0 0.0
    %2998 = vmatpush1.msra.mxu0 0.0
    %2999 = vmatprep.subr.mxu0 0.0
    %3000 = vmatpush1.msra.mxu0 0.0
    %3001 = vmatprep.subr.mxu0 0.0
    %3002 = vmatpush1.msra.mxu0 0.0
    %3003 = vmatprep.subr.mxu0 0.0
    %3004 = vmatpush1.msra.mxu0 0.0
    %3005 = vmatprep.subr.mxu0 0.0
    %3006 = vmatpush1.msra.mxu0 0.0
    %3007 = vmatprep.subr.mxu0 0.0
    %3008 = vmatpush1.msra.mxu0 0.0
    %3009 = vmatprep.subr.mxu0 0.0
    %3010 = vmatpush1.msra.mxu0 0.0
    %3011 = vmatprep.subr.mxu0 0.0
    %3012 = vmatpush1.msra.mxu0 0.0
    %3013 = vmatprep.subr.mxu0 0.0
    %3014 = vmatpush1.msra.mxu0 0.0
    %3015 = vmatprep.subr.mxu0 0.0
    %3016 = vmatpush1.msra.mxu0 0.0
    %3017 = vmatprep.subr.mxu0 0.0
    %3018 = vmatpush1.msra.mxu0 0.0
    %3019 = vmatprep.subr.mxu0 0.0
    %3020 = vmatpush1.msra.mxu0 0.0
    %3021 = vmatprep.subr.mxu0 0.0
    %3022 = vmatpush1.msra.mxu0 0.0
    %3023 = vmatprep.subr.mxu0 0.0
    %3024 = vmatpush1.msra.mxu0 0.0
    %3025 = vmatprep.subr.mxu0 0.0
    %3026 = vmatpush1.msra.mxu0 0.0
    %3027 = vmatprep.mubr.f32.mxu0 0.0
    %3028 = vmatmul.mubr.f32.gmra.mrb[0].mxu0 %v2954
    %v3029 = vpop.f32.mrb[0].mxu0
    %v3030 = vadd.f32 0.0, %v3029
    %v3031 = vpop.f32.mrb[0].mxu0
    %v3032 = vadd.f32 0.0, %v3031
    %3033 = vdwg.mxu0
    %3034 = vmatprep.subr.mxu0 0.0
    %3035 = vmatpush1.msra.mxu0 %v510
    %3036 = vmatprep.subr.mxu0 0.0
    %3037 = vmatpush1.msra.mxu0 %v513
    %3038 = vmatprep.subr.mxu0 0.0
    %3039 = vmatpush1.msra.mxu0 %v516
    %3040 = vmatprep.subr.mxu0 0.0
    %3041 = vmatpush1.msra.mxu0 %v519
    %3042 = vmatprep.subr.mxu0 0.0
    %3043 = vmatpush1.msra.mxu0 %v522
    %3044 = vmatprep.subr.mxu0 0.0
    %3045 = vmatpush1.msra.mxu0 %v525
    %3046 = vmatprep.subr.mxu0 0.0
    %3047 = vmatpush1.msra.mxu0 %v528
    %3048 = vmatprep.subr.mxu0 0.0
    %3049 = vmatpush1.msra.mxu0 %v531
    %3050 = vmatprep.subr.mxu0 0.0
    %3051 = vmatpush1.msra.mxu0 %v534
    %3052 = vmatprep.subr.mxu0 0.0
    %3053 = vmatpush1.msra.mxu0 %v537
    %3054 = vmatprep.subr.mxu0 0.0
    %3055 = vmatpush1.msra.mxu0 %v540
    %3056 = vmatprep.subr.mxu0 0.0
    %3057 = vmatpush1.msra.mxu0 %v543
    %3058 = vmatprep.subr.mxu0 0.0
    %3059 = vmatpush1.msra.mxu0 %v546
    %3060 = vmatprep.subr.mxu0 0.0
    %3061 = vmatpush1.msra.mxu0 %v549
    %3062 = vmatprep.subr.mxu0 0.0
    %3063 = vmatpush1.msra.mxu0 %v552
    %3064 = vmatprep.subr.mxu0 0.0
    %3065 = vmatpush1.msra.mxu0 %v555
    %3066 = vmatprep.subr.mxu0 0.0
    %3067 = vmatpush1.msra.mxu0 0.0
    %3068 = vmatprep.subr.mxu0 0.0
    %3069 = vmatpush1.msra.mxu0 0.0
    %3070 = vmatprep.subr.mxu0 0.0
    %3071 = vmatpush1.msra.mxu0 0.0
    %3072 = vmatprep.subr.mxu0 0.0
    %3073 = vmatpush1.msra.mxu0 0.0
    %3074 = vmatprep.subr.mxu0 0.0
    %3075 = vmatpush1.msra.mxu0 0.0
    %3076 = vmatprep.subr.mxu0 0.0
    %3077 = vmatpush1.msra.mxu0 0.0
    %3078 = vmatprep.subr.mxu0 0.0
    %3079 = vmatpush1.msra.mxu0 0.0
    %3080 = vmatprep.subr.mxu0 0.0
    %3081 = vmatpush1.msra.mxu0 0.0
    %3082 = vmatprep.subr.mxu0 0.0
    %3083 = vmatpush1.msra.mxu0 0.0
    %3084 = vmatprep.subr.mxu0 0.0
    %3085 = vmatpush1.msra.mxu0 0.0
    %3086 = vmatprep.subr.mxu0 0.0
    %3087 = vmatpush1.msra.mxu0 0.0
    %3088 = vmatprep.subr.mxu0 0.0
    %3089 = vmatpush1.msra.mxu0 0.0
    %3090 = vmatprep.subr.mxu0 0.0
    %3091 = vmatpush1.msra.mxu0 0.0
    %3092 = vmatprep.subr.mxu0 0.0
    %3093 = vmatpush1.msra.mxu0 0.0
    %3094 = vmatprep.subr.mxu0 0.0
    %3095 = vmatpush1.msra.mxu0 0.0
    %3096 = vmatprep.subr.mxu0 0.0
    %3097 = vmatpush1.msra.mxu0 0.0
    %3098 = vmatprep.mubr.f32.mxu0 0.0
    %3099 = vmatmul.mubr.f32.gmra.mrb[0].mxu0 %v2954
    %v3100 = vpop.f32.mrb[0].mxu0
    %v3101 = vadd.f32 0.0, %v3100
    %v3102 = vpop.f32.mrb[0].mxu0
    %3103 = vdwg.mxu0
    %v3104 = vadd.f32 %v2960, %v3030
    %v3105 = vxor.u32 %v3104, 2147483648
    %v3106 = vmul.f32 %v3105, 1.442695
    %v3107 = vpow.pop %v3106
    %v3108 = vadd.f32 %v3107, 1.0
    %v3109 = vrcp.pop %v3108
    %v3110 = vmul.f32 1.0, %v3109
    %v3111 = vadd.f32 %v2961, %v3032
    %v3112 = vxor.u32 %v3111, 2147483648
    %v3113 = vmul.f32 %v3112, 1.442695
    %v3114 = vpow.pop %v3113
    %v3115 = vadd.f32 %v3114, 1.0
    %v3116 = vrcp.pop %v3115
    %v3117 = vmul.f32 1.0, %v3116
    %v3118 = vadd.f32 %v3101, %v723
    %v3119 = vmul.f32 %v3110, %v3118
    %v3120 = vadd.f32 %v2962, %v3119
    %v3121 = vtanh.pop %v3120
    %v3122 = vsub.f32 1.0, %v3117
    %v3123 = vmul.f32 %v3122, %v3121
    %v3124 = vmul.f32 %v3117, %v2954
    %v3125 = vadd.f32 %v3123, %v3124
    %s3126 = scalar_lea.vmem [#allocation4], 112
    %3127 = vst [vmem:[%s3126] sm:$0xff] %v3125
    %s3128 = smul.u32 15, 3
    %s3129 = smul.addr %s3128, 8
    %s3130 = scalar_lea.vmem [#allocation3], %s3129
    %v3131 = vld [vmem:[%s3130] sm:$0xff]
    %v3132 = vld [vmem:[%s3130 + $0x8] sm:$0xff]
    %v3133 = vld [vmem:[%s3130 + $0x10] sm:$0xff]
    %3134 = vmatprep.subr.mxu0 %v509
    %3135 = vmatpush1.msra.mxu0 %v508
    %3136 = vmatprep.subr.mxu0 %v512
    %3137 = vmatpush1.msra.mxu0 %v511
    %3138 = vmatprep.subr.mxu0 %v515
    %3139 = vmatpush1.msra.mxu0 %v514
    %3140 = vmatprep.subr.mxu0 %v518
    %3141 = vmatpush1.msra.mxu0 %v517
    %3142 = vmatprep.subr.mxu0 %v521
    %3143 = vmatpush1.msra.mxu0 %v520
    %3144 = vmatprep.subr.mxu0 %v524
    %3145 = vmatpush1.msra.mxu0 %v523
    %3146 = vmatprep.subr.mxu0 %v527
    %3147 = vmatpush1.msra.mxu0 %v526
    %3148 = vmatprep.subr.mxu0 %v530
    %3149 = vmatpush1.msra.mxu0 %v529
    %3150 = vmatprep.subr.mxu0 %v533
    %3151 = vmatpush1.msra.mxu0 %v532
    %3152 = vmatprep.subr.mxu0 %v536
    %3153 = vmatpush1.msra.mxu0 %v535
    %3154 = vmatprep.subr.mxu0 %v539
    %3155 = vmatpush1.msra.mxu0 %v538
    %3156 = vmatprep.subr.mxu0 %v542
    %3157 = vmatpush1.msra.mxu0 %v541
    %3158 = vmatprep.subr.mxu0 %v545
    %3159 = vmatpush1.msra.mxu0 %v544
    %3160 = vmatprep.subr.mxu0 %v548
    %3161 = vmatpush1.msra.mxu0 %v547
    %3162 = vmatprep.subr.mxu0 %v551
    %3163 = vmatpush1.msra.mxu0 %v550
    %3164 = vmatprep.subr.mxu0 %v554
    %3165 = vmatpush1.msra.mxu0 %v553
    %3166 = vmatprep.subr.mxu0 0.0
    %3167 = vmatpush1.msra.mxu0 0.0
    %3168 = vmatprep.subr.mxu0 0.0
    %3169 = vmatpush1.msra.mxu0 0.0
    %3170 = vmatprep.subr.mxu0 0.0
    %3171 = vmatpush1.msra.mxu0 0.0
    %3172 = vmatprep.subr.mxu0 0.0
    %3173 = vmatpush1.msra.mxu0 0.0
    %3174 = vmatprep.subr.mxu0 0.0
    %3175 = vmatpush1.msra.mxu0 0.0
    %3176 = vmatprep.subr.mxu0 0.0
    %3177 = vmatpush1.msra.mxu0 0.0
    %3178 = vmatprep.subr.mxu0 0.0
    %3179 = vmatpush1.msra.mxu0 0.0
    %3180 = vmatprep.subr.mxu0 0.0
    %3181 = vmatpush1.msra.mxu0 0.0
    %3182 = vmatprep.subr.mxu0 0.0
    %3183 = vmatpush1.msra.mxu0 0.0
    %3184 = vmatprep.subr.mxu0 0.0
    %3185 = vmatpush1.msra.mxu0 0.0
    %3186 = vmatprep.subr.mxu0 0.0
    %3187 = vmatpush1.msra.mxu0 0.0
    %3188 = vmatprep.subr.mxu0 0.0
    %3189 = vmatpush1.msra.mxu0 0.0
    %3190 = vmatprep.subr.mxu0 0.0
    %3191 = vmatpush1.msra.mxu0 0.0
    %3192 = vmatprep.subr.mxu0 0.0
    %3193 = vmatpush1.msra.mxu0 0.0
    %3194 = vmatprep.subr.mxu0 0.0
    %3195 = vmatpush1.msra.mxu0 0.0
    %3196 = vmatprep.subr.mxu0 0.0
    %3197 = vmatpush1.msra.mxu0 0.0
    %3198 = vmatprep.mubr.f32.mxu0 0.0
    %3199 = vmatmul.mubr.f32.gmra.mrb[0].mxu0 %v3125
    %v3200 = vpop.f32.mrb[0].mxu0
    %v3201 = vadd.f32 0.0, %v3200
    %v3202 = vpop.f32.mrb[0].mxu0
    %v3203 = vadd.f32 0.0, %v3202
    %3204 = vdwg.mxu0
    %3205 = vmatprep.subr.mxu0 0.0
    %3206 = vmatpush1.msra.mxu0 %v510
    %3207 = vmatprep.subr.mxu0 0.0
    %3208 = vmatpush1.msra.mxu0 %v513
    %3209 = vmatprep.subr.mxu0 0.0
    %3210 = vmatpush1.msra.mxu0 %v516
    %3211 = vmatprep.subr.mxu0 0.0
    %3212 = vmatpush1.msra.mxu0 %v519
    %3213 = vmatprep.subr.mxu0 0.0
    %3214 = vmatpush1.msra.mxu0 %v522
    %3215 = vmatprep.subr.mxu0 0.0
    %3216 = vmatpush1.msra.mxu0 %v525
    %3217 = vmatprep.subr.mxu0 0.0
    %3218 = vmatpush1.msra.mxu0 %v528
    %3219 = vmatprep.subr.mxu0 0.0
    %3220 = vmatpush1.msra.mxu0 %v531
    %3221 = vmatprep.subr.mxu0 0.0
    %3222 = vmatpush1.msra.mxu0 %v534
    %3223 = vmatprep.subr.mxu0 0.0
    %3224 = vmatpush1.msra.mxu0 %v537
    %3225 = vmatprep.subr.mxu0 0.0
    %3226 = vmatpush1.msra.mxu0 %v540
    %3227 = vmatprep.subr.mxu0 0.0
    %3228 = vmatpush1.msra.mxu0 %v543
    %3229 = vmatprep.subr.mxu0 0.0
    %3230 = vmatpush1.msra.mxu0 %v546
    %3231 = vmatprep.subr.mxu0 0.0
    %3232 = vmatpush1.msra.mxu0 %v549
    %3233 = vmatprep.subr.mxu0 0.0
    %3234 = vmatpush1.msra.mxu0 %v552
    %3235 = vmatprep.subr.mxu0 0.0
    %3236 = vmatpush1.msra.mxu0 %v555
    %3237 = vmatprep.subr.mxu0 0.0
    %3238 = vmatpush1.msra.mxu0 0.0
    %3239 = vmatprep.subr.mxu0 0.0
    %3240 = vmatpush1.msra.mxu0 0.0
    %3241 = vmatprep.subr.mxu0 0.0
    %3242 = vmatpush1.msra.mxu0 0.0
    %3243 = vmatprep.subr.mxu0 0.0
    %3244 = vmatpush1.msra.mxu0 0.0
    %3245 = vmatprep.subr.mxu0 0.0
    %3246 = vmatpush1.msra.mxu0 0.0
    %3247 = vmatprep.subr.mxu0 0.0
    %3248 = vmatpush1.msra.mxu0 0.0
    %3249 = vmatprep.subr.mxu0 0.0
    %3250 = vmatpush1.msra.mxu0 0.0
    %3251 = vmatprep.subr.mxu0 0.0
    %3252 = vmatpush1.msra.mxu0 0.0
    %3253 = vmatprep.subr.mxu0 0.0
    %3254 = vmatpush1.msra.mxu0 0.0
    %3255 = vmatprep.subr.mxu0 0.0
    %3256 = vmatpush1.msra.mxu0 0.0
    %3257 = vmatprep.subr.mxu0 0.0
    %3258 = vmatpush1.msra.mxu0 0.0
    %3259 = vmatprep.subr.mxu0 0.0
    %3260 = vmatpush1.msra.mxu0 0.0
    %3261 = vmatprep.subr.mxu0 0.0
    %3262 = vmatpush1.msra.mxu0 0.0
    %3263 = vmatprep.subr.mxu0 0.0
    %3264 = vmatpush1.msra.mxu0 0.0
    %3265 = vmatprep.subr.mxu0 0.0
    %3266 = vmatpush1.msra.mxu0 0.0
    %3267 = vmatprep.subr.mxu0 0.0
    %3268 = vmatpush1.msra.mxu0 0.0
    %3269 = vmatprep.mubr.f32.mxu0 0.0
    %3270 = vmatmul.mubr.f32.gmra.mrb[0].mxu0 %v3125
    %v3271 = vpop.f32.mrb[0].mxu0
    %v3272 = vadd.f32 0.0, %v3271
    %v3273 = vpop.f32.mrb[0].mxu0
    %3274 = vdwg.mxu0
    %v3275 = vadd.f32 %v3131, %v3201
    %v3276 = vxor.u32 %v3275, 2147483648
    %v3277 = vmul.f32 %v3276, 1.442695
    %v3278 = vpow.pop %v3277
    %v3279 = vadd.f32 %v3278, 1.0
    %v3280 = vrcp.pop %v3279
    %v3281 = vmul.f32 1.0, %v3280
    %v3282 = vadd.f32 %v3132, %v3203
    %v3283 = vxor.u32 %v3282, 2147483648
    %v3284 = vmul.f32 %v3283, 1.442695
    %v3285 = vpow.pop %v3284
    %v3286 = vadd.f32 %v3285, 1.0
    %v3287 = vrcp.pop %v3286
    %v3288 = vmul.f32 1.0, %v3287
    %v3289 = vadd.f32 %v3272, %v723
    %v3290 = vmul.f32 %v3281, %v3289
    %v3291 = vadd.f32 %v3133, %v3290
    %v3292 = vtanh.pop %v3291
    %v3293 = vsub.f32 1.0, %v3288
    %v3294 = vmul.f32 %v3293, %v3292
    %v3295 = vmul.f32 %v3288, %v3125
    %v3296 = vadd.f32 %v3294, %v3295
    %s3297 = scalar_lea.vmem [#allocation4], 120
    %3298 = vst [vmem:[%s3297] sm:$0xff] %v3296
    %3299 = vst [vmem:[#allocation2] sm:$0xff] %v3296
    %v3300 = vld [vmem:[#allocation4] sm:$0xff]
    %v3301 = vld [vmem:[#allocation4 + $0x8] sm:$0xff]
    %v3302 = vld [vmem:[#allocation4 + $0x10] sm:$0xff]
    %v3303 = vld [vmem:[#allocation4 + $0x18] sm:$0xff]
    %v3304 = vld [vmem:[#allocation4 + $0x20] sm:$0xff]
    %v3305 = vld [vmem:[#allocation4 + $0x28] sm:$0xff]
    %v3306 = vld [vmem:[#allocation4 + $0x30] sm:$0xff]
    %v3307 = vld [vmem:[#allocation4 + $0x38] sm:$0xff]
    %v3308 = vld [vmem:[#allocation4 + $0x40] sm:$0xff]
    %v3309 = vld [vmem:[#allocation4 + $0x48] sm:$0xff]
    %v3310 = vld [vmem:[#allocation4 + $0x50] sm:$0xff]
    %v3311 = vld [vmem:[#allocation4 + $0x58] sm:$0xff]
    %v3312 = vld [vmem:[#allocation4 + $0x60] sm:$0xff]
    %v3313 = vld [vmem:[#allocation4 + $0x68] sm:$0xff]
    %v3314 = vld [vmem:[#allocation4 + $0x70] sm:$0xff]
    %v3315 = vld [vmem:[#allocation4 + $0x78] sm:$0xff]
    %v3316 = vld [vmem:[%s5] sm:$0xff]
    %v3317 = vld [vmem:[%s5 + $0x8] sm:$0xff]
    %v3318 = vld [vmem:[%s5 + $0x10] sm:$0xff]
    %v3319 = vld [vmem:[%s5 + $0x18] sm:$0xff]
    %v3320 = vld [vmem:[%s5 + $0x20] sm:$0xff]
    %v3321 = vld [vmem:[%s5 + $0x28] sm:$0xff]
    %v3322 = vld [vmem:[%s5 + $0x30] sm:$0xff]
    %v3323 = vld [vmem:[%s5 + $0x38] sm:$0xff]
    %v3324 = vld [vmem:[%s5 + $0x40] sm:$0xff]
    %v3325 = vld [vmem:[%s5 + $0x48] sm:$0xff]
    %v3326 = vld [vmem:[%s5 + $0x50] sm:$0xff]
    %v3327 = vld [vmem:[%s5 + $0x58] sm:$0xff]
    %v3328 = vld [vmem:[%s5 + $0x60] sm:$0xff]
    %v3329 = vld [vmem:[%s5 + $0x68] sm:$0xff]
    %v3330 = vld [vmem:[%s5 + $0x70] sm:$0xff]
    %v3331 = vld [vmem:[%s5 + $0x78] sm:$0xff]
    %v3332 = vld [vmem:[%s6] sm:$0x1]
    %v3334 = vlaneseq
    %v3335 = vshrl.u32 %v3334, 7
    %v3336 = vsub.s32 0, %v3335
    %v3337 = vrot.slane %v3332, %v3336
    %3339 = vmatprep.subr.mxu0 0.0
    %3340 = vmatpush1.msra.mxu0 %v3316
    %3341 = vmatprep.subr.mxu0 0.0
    %3342 = vmatpush1.msra.mxu0 %v3317
    %3343 = vmatprep.subr.mxu0 0.0
    %3344 = vmatpush1.msra.mxu0 %v3318
    %3345 = vmatprep.subr.mxu0 0.0
    %3346 = vmatpush1.msra.mxu0 %v3319
    %3347 = vmatprep.subr.mxu0 0.0
    %3348 = vmatpush1.msra.mxu0 %v3320
    %3349 = vmatprep.subr.mxu0 0.0
    %3350 = vmatpush1.msra.mxu0 %v3321
    %3351 = vmatprep.subr.mxu0 0.0
    %3352 = vmatpush1.msra.mxu0 %v3322
    %3353 = vmatprep.subr.mxu0 0.0
    %3354 = vmatpush1.msra.mxu0 %v3323
    %3355 = vmatprep.subr.mxu0 0.0
    %3356 = vmatpush1.msra.mxu0 %v3324
    %3357 = vmatprep.subr.mxu0 0.0
    %3358 = vmatpush1.msra.mxu0 %v3325
    %3359 = vmatprep.subr.mxu0 0.0
    %3360 = vmatpush1.msra.mxu0 %v3326
    %3361 = vmatprep.subr.mxu0 0.0
    %3362 = vmatpush1.msra.mxu0 %v3327
    %3363 = vmatprep.subr.mxu0 0.0
    %3364 = vmatpush1.msra.mxu0 %v3328
    %3365 = vmatprep.subr.mxu0 0.0
    %3366 = vmatpush1.msra.mxu0 %v3329
    %3367 = vmatprep.subr.mxu0 0.0
    %3368 = vmatpush1.msra.mxu0 %v3330
    %3369 = vmatprep.subr.mxu0 0.0
    %3370 = vmatpush1.msra.mxu0 %v3331
    %3371 = vmatprep.subr.mxu0 0.0
    %3372 = vmatpush1.msra.mxu0 0.0
    %3373 = vmatprep.subr.mxu0 0.0
    %3374 = vmatpush1.msra.mxu0 0.0
    %3375 = vmatprep.subr.mxu0 0.0
    %3376 = vmatpush1.msra.mxu0 0.0
    %3377 = vmatprep.subr.mxu0 0.0
    %3378 = vmatpush1.msra.mxu0 0.0
    %3379 = vmatprep.subr.mxu0 0.0
    %3380 = vmatpush1.msra.mxu0 0.0
    %3381 = vmatprep.subr.mxu0 0.0
    %3382 = vmatpush1.msra.mxu0 0.0
    %3383 = vmatprep.subr.mxu0 0.0
    %3384 = vmatpush1.msra.mxu0 0.0
    %3385 = vmatprep.subr.mxu0 0.0
    %3386 = vmatpush1.msra.mxu0 0.0
    %3387 = vmatprep.subr.mxu0 0.0
    %3388 = vmatpush1.msra.mxu0 0.0
    %3389 = vmatprep.subr.mxu0 0.0
    %3390 = vmatpush1.msra.mxu0 0.0
    %3391 = vmatprep.subr.mxu0 0.0
    %3392 = vmatpush1.msra.mxu0 0.0
    %3393 = vmatprep.subr.mxu0 0.0
    %3394 = vmatpush1.msra.mxu0 0.0
    %3395 = vmatprep.subr.mxu0 0.0
    %3396 = vmatpush1.msra.mxu0 0.0
    %3397 = vmatprep.subr.mxu0 0.0
    %3398 = vmatpush1.msra.mxu0 0.0
    %3399 = vmatprep.subr.mxu0 0.0
    %3400 = vmatpush1.msra.mxu0 0.0
    %3401 = vmatprep.subr.mxu0 0.0
    %3402 = vmatpush1.msra.mxu0 0.0
    %3403 = vmatprep.mubr.f32.mxu0 0.0
    %3404 = vmatmul.mubr.f32.gmra.mrb[0].mxu0 %v3300
    %v3405 = vpop.f32.mrb[0].mxu0
    %v3406 = vadd.f32 %v3337, %v3405
    %v3407 = vpop.f32.mrb[0].mxu0
    %3408 = vmatprep.mubr.f32.mxu0 0.0
    %3409 = vmatmul.mubr.f32.gmra.mrb[0].mxu0 %v3301
    %v3410 = vpop.f32.mrb[0].mxu0
    %v3411 = vadd.f32 %v3337, %v3410
    %v3412 = vpop.f32.mrb[0].mxu0
    %3413 = vmatprep.mubr.f32.mxu0 0.0
    %3414 = vmatmul.mubr.f32.gmra.mrb[0].mxu0 %v3302
    %v3415 = vpop.f32.mrb[0].mxu0
    %v3416 = vadd.f32 %v3337, %v3415
    %v3417 = vpop.f32.mrb[0].mxu0
    %3418 = vmatprep.mubr.f32.mxu0 0.0
    %3419 = vmatmul.mubr.f32.gmra.mrb[0].mxu0 %v3303
    %v3420 = vpop.f32.mrb[0].mxu0
    %v3421 = vadd.f32 %v3337, %v3420
    %v3422 = vpop.f32.mrb[0].mxu0
    %3423 = vmatprep.mubr.f32.mxu0 0.0
    %3424 = vmatmul.mubr.f32.gmra.mrb[0].mxu0 %v3304
    %v3425 = vpop.f32.mrb[0].mxu0
    %v3426 = vadd.f32 %v3337, %v3425
    %v3427 = vpop.f32.mrb[0].mxu0
    %3428 = vmatprep.mubr.f32.mxu0 0.0
    %3429 = vmatmul.mubr.f32.gmra.mrb[0].mxu0 %v3305
    %v3430 = vpop.f32.mrb[0].mxu0
    %v3431 = vadd.f32 %v3337, %v3430
    %v3432 = vpop.f32.mrb[0].mxu0
    %3433 = vmatprep.mubr.f32.mxu0 0.0
    %3434 = vmatmul.mubr.f32.gmra.mrb[0].mxu0 %v3306
    %v3435 = vpop.f32.mrb[0].mxu0
    %v3436 = vadd.f32 %v3337, %v3435
    %v3437 = vpop.f32.mrb[0].mxu0
    %3438 = vmatprep.mubr.f32.mxu0 0.0
    %3439 = vmatmul.mubr.f32.gmra.mrb[0].mxu0 %v3307
    %v3440 = vpop.f32.mrb[0].mxu0
    %v3441 = vadd.f32 %v3337, %v3440
    %v3442 = vpop.f32.mrb[0].mxu0
    %3443 = vmatprep.mubr.f32.mxu0 0.0
    %3444 = vmatmul.mubr.f32.gmra.mrb[0].mxu0 %v3308
    %v3445 = vpop.f32.mrb[0].mxu0
    %v3446 = vadd.f32 %v3337, %v3445
    %v3447 = vpop.f32.mrb[0].mxu0
    %3448 = vmatprep.mubr.f32.mxu0 0.0
    %3449 = vmatmul.mubr.f32.gmra.mrb[0].mxu0 %v3309
    %v3450 = vpop.f32.mrb[0].mxu0
    %v3451 = vadd.f32 %v3337, %v3450
    %v3452 = vpop.f32.mrb[0].mxu0
    %3453 = vmatprep.mubr.f32.mxu0 0.0
    %3454 = vmatmul.mubr.f32.gmra.mrb[0].mxu0 %v3310
    %v3455 = vpop.f32.mrb[0].mxu0
    %v3456 = vadd.f32 %v3337, %v3455
    %v3457 = vpop.f32.mrb[0].mxu0
    %3458 = vmatprep.mubr.f32.mxu0 0.0
    %3459 = vmatmul.mubr.f32.gmra.mrb[0].mxu0 %v3311
    %v3460 = vpop.f32.mrb[0].mxu0
    %v3461 = vadd.f32 %v3337, %v3460
    %v3462 = vpop.f32.mrb[0].mxu0
    %3463 = vmatprep.mubr.f32.mxu0 0.0
    %3464 = vmatmul.mubr.f32.gmra.mrb[0].mxu0 %v3312
    %v3465 = vpop.f32.mrb[0].mxu0
    %v3466 = vadd.f32 %v3337, %v3465
    %v3467 = vpop.f32.mrb[0].mxu0
    %3468 = vmatprep.mubr.f32.mxu0 0.0
    %3469 = vmatmul.mubr.f32.gmra.mrb[0].mxu0 %v3313
    %v3470 = vpop.f32.mrb[0].mxu0
    %v3471 = vadd.f32 %v3337, %v3470
    %v3472 = vpop.f32.mrb[0].mxu0
    %3473 = vmatprep.mubr.f32.mxu0 0.0
    %3474 = vmatmul.mubr.f32.gmra.mrb[0].mxu0 %v3314
    %v3475 = vpop.f32.mrb[0].mxu0
    %v3476 = vadd.f32 %v3337, %v3475
    %v3477 = vpop.f32.mrb[0].mxu0
    %3478 = vmatprep.mubr.f32.mxu0 0.0
    %3479 = vmatmul.mubr.f32.gmra.mrb[0].mxu0 %v3315
    %v3480 = vpop.f32.mrb[0].mxu0
    %v3481 = vadd.f32 %v3337, %v3480
    %v3482 = vpop.f32.mrb[0].mxu0
    %3483 = vdwg.mxu0
    %3484 = vst [vmem:[#allocation10] sm:$0xff] %v3406
    %3485 = vst [vmem:[#allocation10 + $0x8] sm:$0xff] %v3411
    %3486 = vst [vmem:[#allocation10 + $0x10] sm:$0xff] %v3416
    %3487 = vst [vmem:[#allocation10 + $0x18] sm:$0xff] %v3421
    %3488 = vst [vmem:[#allocation10 + $0x20] sm:$0xff] %v3426
    %3489 = vst [vmem:[#allocation10 + $0x28] sm:$0xff] %v3431
    %3490 = vst [vmem:[#allocation10 + $0x30] sm:$0xff] %v3436
    %3491 = vst [vmem:[#allocation10 + $0x38] sm:$0xff] %v3441
    %3492 = vst [vmem:[#allocation10 + $0x40] sm:$0xff] %v3446
    %3493 = vst [vmem:[#allocation10 + $0x48] sm:$0xff] %v3451
    %3494 = vst [vmem:[#allocation10 + $0x50] sm:$0xff] %v3456
    %3495 = vst [vmem:[#allocation10 + $0x58] sm:$0xff] %v3461
    %3496 = vst [vmem:[#allocation10 + $0x60] sm:$0xff] %v3466
    %3497 = vst [vmem:[#allocation10 + $0x68] sm:$0xff] %v3471
    %3498 = vst [vmem:[#allocation10 + $0x70] sm:$0xff] %v3476
    %3499 = vst [vmem:[#allocation10 + $0x78] sm:$0xff] %v3481
    // Predicated region
    $region42: #{tpu_custom_call.1} parent=1 // pred_check
      _
    $region43: #{tpu_custom_call.1} parent=1 // pred_check_branch
      %3501 = sbr.rel (0) target = $region45
    $region44: #{tpu_custom_call.1} parent=1 // pred_region
      %s3503 = ssub.s32 2048, 2048
      %3504 = vsyncadd [#allocation7], %s3503
      %s3505 = sshll.u32 [#allocation10], 4
      %s3506 = int_to_ptr.vmem [resolvable:$true] %s3505
      %3511 = dma.vmem_to_hbm [thread:$0]  %s3506, 2048, %s7, [#allocation7], 128, 128, 8
    $region45: #{tpu_custom_call.1} parent=1 // pred_fallthru
      _
    // Predicated region
    $region46: #{tpu_custom_call.1} parent=1 // pred_check
      _
    $region47: #{tpu_custom_call.1} parent=1 // pred_check_branch
      %3513 = sbr.rel (0) target = $region49
    $region48: #{tpu_custom_call.1} parent=1 // pred_region
      %3514 = dma.done [#allocation7], 2048
    $region49: #{tpu_custom_call.1} parent=1 // pred_fallthru
      _
    %3515 = vsyncpa [#allocation6], 1
    %3516 = vsyncpa [#allocation9], 1
    %3517 = vsyncpa [#allocation7], 1

</llo_original>
